<compile_context>
chip_gen: v7x
topology: tpu7x:2x2x1
jax: 0.10.0
libtpu: 0.0.40
codegen_flags: <defaults>
</compile_context>

<pallas_src>
import jax
import jax.numpy as jnp
from jax import lax
from jax.experimental import pallas as pl
from jax.experimental.pallas import tpu as pltpu


def _plan_cout_blocking(cout):
    """Pick the Cout block size and the output layout.

    cout_blk must divide Cout and be either a multiple of 128 (dense-lane (H*W, Cb)
    stores, no transpose) or Cout itself (small-Cout fallback that stores (Cb, H*W)
    via one 2-D transpose so the lane dim stays dense).
    """
    if cout % 256 == 0:
        cb = 256
    elif cout % 128 == 0:
        cb = 128
    else:
        cb = cout
    channels_last = (cb % 128 == 0)
    return cb, channels_last


def _make_conv_kernel(channels_last):
    def kernel(xp_ref, w_ref, b_ref, alpha_ref, o_ref):
        # xp_ref   : (1, H+2, W+2, Cin)  zero-padded NHWC input, one batch element (VMEM)
        # w_ref    : (9, Cin, Cb)        tap-major weight block (VMEM; f32 or bf16)
        # b_ref    : (1, Cb)             bias block (VMEM, f32)
        # alpha_ref: (1,)                shared PReLU slope (SMEM scalar)
        # o_ref    : (1, H*W, Cb) if channels_last else (1, Cb, H*W)
        hp, wp, cin = xp_ref.shape[1], xp_ref.shape[2], xp_ref.shape[3]
        h, w = hp - 2, wp - 2
        cdt = w_ref.dtype                      # MXU input dtype (bf16 fast path or f32)

        x = xp_ref[0]                          # (H+2, W+2, Cin)

        acc = None
        for kw in range(3):
            # One sublane-shifted slab per kw (kw == 0 is offset-free).  No im2col
            # concat, no (H*W, 9*Cin) patches buffer.
            slab = x[:, kw:kw + w, :].astype(cdt)            # (H+2, W, Cin)
            for kh in range(3):
                # Leading-dim slice (free) + free (H, W, Cin) -> (H*W, Cin) fold (W%8==0).
                tap = slab[kh:kh + h].reshape(h * w, cin)
                part = jnp.dot(tap, w_ref[kh * 3 + kw],
                               preferred_element_type=jnp.float32)
                acc = part if acc is None else acc + part    # VPU adds hide under MXU

        acc = acc + b_ref[...].astype(jnp.float32)           # (H*W, Cb) + (1, Cb)

        # PReLU: nn.PReLU() default is a single slope shared by every channel, so it
        # commutes with the PixelShuffle permutation and can be applied pre-shuffle.
        a = alpha_ref[0]
        acc = jnp.where(acc > 0.0, acc, a * acc)

        if channels_last:
            o_ref[0] = acc.astype(o_ref.dtype)               # (H*W, Cb): lane = Cb >= 128
        else:
            o_ref[0] = acc.T.astype(o_ref.dtype)             # (Cb, H*W): lane = H*W
    return kernel


def _conv3x3_bias_prelu(xp_nhwc, w3, b2, alpha):
    """Fused 3x3 conv (stride 1, pre-padded input) + bias + PReLU.

    xp_nhwc: (N, H+2, W+2, Cin); w3: (9, Cin, Cout) tap-major; b2: (1, Cout); alpha: (1,).
    Returns ((N, H*W, Cout) or (N, Cout, H*W), channels_last flag).
    """
    n, hp, wp, cin = xp_nhwc.shape
    h, w = hp - 2, wp - 2
    cout = w3.shape[2]
    cb, channels_last = _plan_cout_blocking(cout)
    n_cb = cout // cb

    # Alignment guards (perf review): keep the in-kernel fold and the stores dense.
    assert w % 8 == 0, "W must be a multiple of 8 for the free (H,W,C)->(H*W,C) fold"
    if not channels_last:
        assert (h * w) % 128 == 0, "H*W must be a multiple of 128 for dense (Cout,H*W) stores"

    if channels_last:
        out_shape = jax.ShapeDtypeStruct((n, h * w, cout), xp_nhwc.dtype)
        out_spec = pl.BlockSpec((1, h * w, cb), lambda i, j: (i, 0, j))
    else:
        out_shape = jax.ShapeDtypeStruct((n, cout, h * w), xp_nhwc.dtype)
        out_spec = pl.BlockSpec((1, cb, h * w), lambda i, j: (i, j, 0))

    # Derive the VMEM budget from the actual working set (double-buffered blocks + the
    # f32 accumulator) instead of a fixed 32 MiB; clamp to a safe range for v5e..v7x.
    isz = jnp.dtype(xp_nhwc.dtype).itemsize
    wsz = jnp.dtype(w3.dtype).itemsize
    est = (2 * (hp * wp * cin * isz + 9 * cin * cb * wsz + cb * isz + h * w * cb * isz)
           + h * w * cb * 4 + (1 << 20))
    vmem_limit = int(min(100 * 2**20, max(32 * 2**20, 3 * est // 2)))

    out = pl.pallas_call(
        _make_conv_kernel(channels_last),
        out_shape=out_shape,
        grid_spec=pltpu.PrefetchScalarGridSpec(
            num_scalar_prefetch=0,
            grid=(n, n_cb),
            in_specs=[
                pl.BlockSpec((1, hp, wp, cin), lambda i, j: (i, 0, 0, 0)),
                pl.BlockSpec((9, cin, cb), lambda i, j: (0, 0, j)),
                pl.BlockSpec((1, cb), lambda i, j: (0, j)),
                pl.BlockSpec(memory_space=pltpu.MemorySpace.SMEM),
            ],
            out_specs=out_spec,
        ),
        compiler_params=pltpu.CompilerParams(
            dimension_semantics=("parallel", "parallel"),
            vmem_limit_bytes=vmem_limit,
        ),
    )(xp_nhwc, w3, b2, alpha)
    return out, channels_last


def init_upsample_block_params(key, in_channels, up_scale):
    """Deterministic params mimicking nn.Conv2d / nn.PReLU defaults."""
    cout = in_channels * up_scale ** 2
    k_w, k_b = jax.random.split(key)
    fan_in = in_channels * 3 * 3
    bound = 1.0 / (fan_in ** 0.5)
    w = jax.random.uniform(k_w, (cout, in_channels, 3, 3), jnp.float32, -bound, bound)
    b = jax.random.uniform(k_b, (cout,), jnp.float32, -bound, bound)
    alpha = jnp.full((1,), 0.25, jnp.float32)          # nn.PReLU() default slope
    return {"w": w, "b": b, "alpha": alpha, "up_scale": up_scale}


def prepare_kernel_params(params, use_bf16=False):
    """One-time re-layout of the conv weights/bias for the kernel (off the fwd path).

    use_bf16=True stores the weights in bf16 so the kernel feeds the MXU bf16 operands
    with f32 accumulation (perf review); the strict f32 self-check below keeps f32.
    """
    w, b = params["w"], params["b"]
    cout, cin = w.shape[0], w.shape[1]
    # (Cout, Cin, 3, 3) -> (kh, kw, Cin, Cout) -> (9, Cin, Cout); tap index t = kh*3+kw.
    # Cout keeps PyTorch's (c, i, j) ordering so the PixelShuffle glue stays exact.
    w3 = jnp.transpose(w, (2, 3, 1, 0)).reshape(9, cin, cout)
    if use_bf16:
        w3 = w3.astype(jnp.bfloat16)
    b2 = b.reshape(1, cout)
    return {"w3": w3, "b2": b2, "alpha": params["alpha"], "up_scale": params["up_scale"]}


def upsample_block_forward(x_nchw, kparams):
    """Pallas-backed UpsampleBLock forward. Input/output in NCHW like PyTorch."""
    up = kparams["up_scale"]
    w3, b2, alpha = kparams["w3"], kparams["b2"], kparams["alpha"]
    n, cin, h, w = x_nchw.shape
    cout = w3.shape[2]
    c_img = cout // (up * up)                          # == cin

    # Glue: NCHW -> zero-padded NHWC (one fused XLA copy over the small pre-upsample
    # tensor).
    xp = jnp.pad(jnp.transpose(x_nchw, (0, 2, 3, 1)),
                 ((0, 0), (1, 1), (1, 1), (0, 0)))

    y, channels_last = _conv3x3_bias_prelu(xp, w3, b2, alpha)   # PReLU already applied

    # PixelShuffle(r): out[n, c, h*r+i, w*r+j] = conv[n, c*r*r + i*r + j, h, w]
    if channels_last:
        y = y.reshape(n, h, w, c_img, up, up)
        y = jnp.transpose(y, (0, 3, 1, 4, 2, 5))        # (N, C, H, r, W, r)
    else:
        y = y.reshape(n, c_img, up, up, h, w)
        y = jnp.transpose(y, (0, 1, 4, 2, 5, 3))        # (N, C, H, r, W, r)
    return y.reshape(n, c_img, h * up, w * up)


def _ref_forward(x_nchw, params):
    """Pure-JAX reference (no Pallas) for correctness checking."""
    w, b, alpha, up = params["w"], params["b"], params["alpha"], params["up_scale"]
    y = lax.conv_general_dilated(
        x_nchw, w, window_strides=(1, 1), padding=((1, 1), (1, 1)),
        dimension_numbers=("NCHW", "OIHW", "NCHW"))
    y = y + b[None, :, None, None]
    n, c2, h, w_ = y.shape
    c = c2 // (up * up)
    y = y.reshape(n, c, up, up, h, w_)
    y = jnp.transpose(y, (0, 1, 4, 2, 5, 3)).reshape(n, c, h * up, w_ * up)
    return jnp.where(y > 0.0, y, alpha[0] * y)


if __name__ == "__main__":
    key = jax.random.PRNGKey(0)
    k_x, k_p, k_x2, k_p2 = jax.random.split(key, 4)

    # 1) Toy config (small Cout -> transposed (Cout, H*W) store path), strict f32 check.
    N, C, H, W = 2, 4, 16, 16
    up_scale = 2
    x = jax.random.normal(k_x, (N, C, H, W), jnp.float32)
    params = init_upsample_block_params(k_p, C, up_scale)
    ref = jax.block_until_ready(_ref_forward(x, params))

    out = jax.block_until_ready(
        upsample_block_forward(x, prepare_kernel_params(params, use_bf16=False)))
    assert out.shape == (N, C, H * up_scale, W * up_scale), out.shape
    assert jnp.allclose(out, ref, rtol=1e-5, atol=1e-5), "f32 mismatch vs JAX reference"

    # 2) Same config, bf16 taps/weights with f32 accumulation (looser tolerance).
    out_bf16 = jax.block_until_ready(
        upsample_block_forward(x, prepare_kernel_params(params, use_bf16=True)))
    assert jnp.allclose(out_bf16, ref, rtol=5e-2, atol=5e-2), "bf16 mismatch vs reference"

    # 3) Cout = 128 config exercises the lane-dense (H*W, Cout) store path (no transpose).
    N2, C2, H2, W2, up2 = 1, 8, 8, 8, 4
    x2 = jax.random.normal(k_x2, (N2, C2, H2, W2), jnp.float32)
    params2 = init_upsample_block_params(k_p2, C2, up2)
    out2 = jax.block_until_ready(
        upsample_block_forward(x2, prepare_kernel_params(params2)))
    ref2 = jax.block_until_ready(_ref_forward(x2, params2))
    assert out2.shape == (N2, C2, H2 * up2, W2 * up2), out2.shape
    assert jnp.allclose(out2, ref2, rtol=1e-5, atol=1e-5), "mismatch (Cout=128 path)"

    print("KERNEL_OK")
</pallas_src>

<mosaic_0001>
module attributes {stable_mosaic.version = 11 : i64} {
  func.func @kernel(%arg0: i32, %arg1: i32, %arg2: memref<1x18x18x4xf32, #tpu.memory_space<vmem>>, %arg3: memref<9x4x16xf32, #tpu.memory_space<vmem>>, %arg4: memref<1x16xf32, #tpu.memory_space<vmem>>, %arg5: memref<1xf32, #tpu.memory_space<smem>>, %arg6: memref<1x16x256xf32, #tpu.memory_space<vmem>>) attributes {dimension_semantics = [#tpu.dimension_semantics<parallel>, #tpu.dimension_semantics<parallel>], iteration_bounds = array<i64: 2, 1>, scalar_prefetch = 0 : i64, scratch_operands = 0 : i64, tpu.core_type = #tpu.core_type<tc>, window_params = [{transform_indices = @transform_0, window_bounds = array<i64: 1, 18, 18, 4>}, {transform_indices = @transform_1, window_bounds = array<i64: 9, 4, 16>}, {transform_indices = @transform_2, window_bounds = array<i64: 1, 16>}, {transform_indices = @transform_3, window_bounds = array<i64: 1>}, {transform_indices = @transform_4, window_bounds = array<i64: 1, 16, 256>}]} {
    %c0 = arith.constant 0 : index
    %c0_0 = arith.constant 0 : index
    %c0_1 = arith.constant 0 : index
    %c0_2 = arith.constant 0 : index
    %0 = vector.load %arg2[%c0, %c0_0, %c0_1, %c0_2] : memref<1x18x18x4xf32, #tpu.memory_space<vmem>>, vector<1x18x18x4xf32>
    %1 = vector.shape_cast %0 : vector<1x18x18x4xf32> to vector<18x18x4xf32>
    %2 = vector.extract_strided_slice %1 {offsets = [0, 0, 0], sizes = [18, 16, 4], strides = [1, 1, 1]} : vector<18x18x4xf32> to vector<18x16x4xf32>
    %3 = vector.extract_strided_slice %2 {offsets = [0, 0, 0], sizes = [16, 16, 4], strides = [1, 1, 1]} : vector<18x16x4xf32> to vector<16x16x4xf32>
    %4 = vector.shape_cast %3 : vector<16x16x4xf32> to vector<256x4xf32>
    %c0_3 = arith.constant 0 : index
    %c0_4 = arith.constant 0 : index
    %c0_5 = arith.constant 0 : index
    %5 = vector.load %arg3[%c0_3, %c0_4, %c0_5] : memref<9x4x16xf32, #tpu.memory_space<vmem>>, vector<1x4x16xf32>
    %6 = vector.shape_cast %5 : vector<1x4x16xf32> to vector<4x16xf32>
    %cst = arith.constant dense<0.000000e+00> : vector<256x16xf32>
    %7 = tpu.matmul %4, %6, %cst {dimension_numbers = #tpu.dot_dimension_numbers<[1], [0], [0], [1], [0, 0, 1, 1], [], []>} : vector<256x4xf32>, vector<4x16xf32>, vector<256x16xf32> -> vector<256x16xf32>
    %8 = vector.extract_strided_slice %2 {offsets = [1, 0, 0], sizes = [16, 16, 4], strides = [1, 1, 1]} : vector<18x16x4xf32> to vector<16x16x4xf32>
    %9 = vector.shape_cast %8 : vector<16x16x4xf32> to vector<256x4xf32>
    %c3 = arith.constant 3 : index
    %c0_6 = arith.constant 0 : index
    %c0_7 = arith.constant 0 : index
    %10 = vector.load %arg3[%c3, %c0_6, %c0_7] : memref<9x4x16xf32, #tpu.memory_space<vmem>>, vector<1x4x16xf32>
    %11 = vector.shape_cast %10 : vector<1x4x16xf32> to vector<4x16xf32>
    %cst_8 = arith.constant dense<0.000000e+00> : vector<256x16xf32>
    %12 = tpu.matmul %9, %11, %cst_8 {dimension_numbers = #tpu.dot_dimension_numbers<[1], [0], [0], [1], [0, 0, 1, 1], [], []>} : vector<256x4xf32>, vector<4x16xf32>, vector<256x16xf32> -> vector<256x16xf32>
    %13 = arith.addf %7, %12 : vector<256x16xf32>
    %14 = vector.extract_strided_slice %2 {offsets = [2, 0, 0], sizes = [16, 16, 4], strides = [1, 1, 1]} : vector<18x16x4xf32> to vector<16x16x4xf32>
    %15 = vector.shape_cast %14 : vector<16x16x4xf32> to vector<256x4xf32>
    %c6 = arith.constant 6 : index
    %c0_9 = arith.constant 0 : index
    %c0_10 = arith.constant 0 : index
    %16 = vector.load %arg3[%c6, %c0_9, %c0_10] : memref<9x4x16xf32, #tpu.memory_space<vmem>>, vector<1x4x16xf32>
    %17 = vector.shape_cast %16 : vector<1x4x16xf32> to vector<4x16xf32>
    %cst_11 = arith.constant dense<0.000000e+00> : vector<256x16xf32>
    %18 = tpu.matmul %15, %17, %cst_11 {dimension_numbers = #tpu.dot_dimension_numbers<[1], [0], [0], [1], [0, 0, 1, 1], [], []>} : vector<256x4xf32>, vector<4x16xf32>, vector<256x16xf32> -> vector<256x16xf32>
    %19 = arith.addf %13, %18 : vector<256x16xf32>
    %20 = vector.extract_strided_slice %1 {offsets = [0, 1, 0], sizes = [18, 16, 4], strides = [1, 1, 1]} : vector<18x18x4xf32> to vector<18x16x4xf32>
    %21 = vector.extract_strided_slice %20 {offsets = [0, 0, 0], sizes = [16, 16, 4], strides = [1, 1, 1]} : vector<18x16x4xf32> to vector<16x16x4xf32>
    %22 = vector.shape_cast %21 : vector<16x16x4xf32> to vector<256x4xf32>
    %c1 = arith.constant 1 : index
    %c0_12 = arith.constant 0 : index
    %c0_13 = arith.constant 0 : index
    %23 = vector.load %arg3[%c1, %c0_12, %c0_13] : memref<9x4x16xf32, #tpu.memory_space<vmem>>, vector<1x4x16xf32>
    %24 = vector.shape_cast %23 : vector<1x4x16xf32> to vector<4x16xf32>
    %cst_14 = arith.constant dense<0.000000e+00> : vector<256x16xf32>
    %25 = tpu.matmul %22, %24, %cst_14 {dimension_numbers = #tpu.dot_dimension_numbers<[1], [0], [0], [1], [0, 0, 1, 1], [], []>} : vector<256x4xf32>, vector<4x16xf32>, vector<256x16xf32> -> vector<256x16xf32>
    %26 = arith.addf %19, %25 : vector<256x16xf32>
    %27 = vector.extract_strided_slice %20 {offsets = [1, 0, 0], sizes = [16, 16, 4], strides = [1, 1, 1]} : vector<18x16x4xf32> to vector<16x16x4xf32>
    %28 = vector.shape_cast %27 : vector<16x16x4xf32> to vector<256x4xf32>
    %c4 = arith.constant 4 : index
    %c0_15 = arith.constant 0 : index
    %c0_16 = arith.constant 0 : index
    %29 = vector.load %arg3[%c4, %c0_15, %c0_16] : memref<9x4x16xf32, #tpu.memory_space<vmem>>, vector<1x4x16xf32>
    %30 = vector.shape_cast %29 : vector<1x4x16xf32> to vector<4x16xf32>
    %cst_17 = arith.constant dense<0.000000e+00> : vector<256x16xf32>
    %31 = tpu.matmul %28, %30, %cst_17 {dimension_numbers = #tpu.dot_dimension_numbers<[1], [0], [0], [1], [0, 0, 1, 1], [], []>} : vector<256x4xf32>, vector<4x16xf32>, vector<256x16xf32> -> vector<256x16xf32>
    %32 = arith.addf %26, %31 : vector<256x16xf32>
    %33 = vector.extract_strided_slice %20 {offsets = [2, 0, 0], sizes = [16, 16, 4], strides = [1, 1, 1]} : vector<18x16x4xf32> to vector<16x16x4xf32>
    %34 = vector.shape_cast %33 : vector<16x16x4xf32> to vector<256x4xf32>
    %c7 = arith.constant 7 : index
    %c0_18 = arith.constant 0 : index
    %c0_19 = arith.constant 0 : index
    %35 = vector.load %arg3[%c7, %c0_18, %c0_19] : memref<9x4x16xf32, #tpu.memory_space<vmem>>, vector<1x4x16xf32>
    %36 = vector.shape_cast %35 : vector<1x4x16xf32> to vector<4x16xf32>
    %cst_20 = arith.constant dense<0.000000e+00> : vector<256x16xf32>
    %37 = tpu.matmul %34, %36, %cst_20 {dimension_numbers = #tpu.dot_dimension_numbers<[1], [0], [0], [1], [0, 0, 1, 1], [], []>} : vector<256x4xf32>, vector<4x16xf32>, vector<256x16xf32> -> vector<256x16xf32>
    %38 = arith.addf %32, %37 : vector<256x16xf32>
    %39 = vector.extract_strided_slice %1 {offsets = [0, 2, 0], sizes = [18, 16, 4], strides = [1, 1, 1]} : vector<18x18x4xf32> to vector<18x16x4xf32>
    %40 = vector.extract_strided_slice %39 {offsets = [0, 0, 0], sizes = [16, 16, 4], strides = [1, 1, 1]} : vector<18x16x4xf32> to vector<16x16x4xf32>
    %41 = vector.shape_cast %40 : vector<16x16x4xf32> to vector<256x4xf32>
    %c2 = arith.constant 2 : index
    %c0_21 = arith.constant 0 : index
    %c0_22 = arith.constant 0 : index
    %42 = vector.load %arg3[%c2, %c0_21, %c0_22] : memref<9x4x16xf32, #tpu.memory_space<vmem>>, vector<1x4x16xf32>
    %43 = vector.shape_cast %42 : vector<1x4x16xf32> to vector<4x16xf32>
    %cst_23 = arith.constant dense<0.000000e+00> : vector<256x16xf32>
    %44 = tpu.matmul %41, %43, %cst_23 {dimension_numbers = #tpu.dot_dimension_numbers<[1], [0], [0], [1], [0, 0, 1, 1], [], []>} : vector<256x4xf32>, vector<4x16xf32>, vector<256x16xf32> -> vector<256x16xf32>
    %45 = arith.addf %38, %44 : vector<256x16xf32>
    %46 = vector.extract_strided_slice %39 {offsets = [1, 0, 0], sizes = [16, 16, 4], strides = [1, 1, 1]} : vector<18x16x4xf32> to vector<16x16x4xf32>
    %47 = vector.shape_cast %46 : vector<16x16x4xf32> to vector<256x4xf32>
    %c5 = arith.constant 5 : index
    %c0_24 = arith.constant 0 : index
    %c0_25 = arith.constant 0 : index
    %48 = vector.load %arg3[%c5, %c0_24, %c0_25] : memref<9x4x16xf32, #tpu.memory_space<vmem>>, vector<1x4x16xf32>
    %49 = vector.shape_cast %48 : vector<1x4x16xf32> to vector<4x16xf32>
    %cst_26 = arith.constant dense<0.000000e+00> : vector<256x16xf32>
    %50 = tpu.matmul %47, %49, %cst_26 {dimension_numbers = #tpu.dot_dimension_numbers<[1], [0], [0], [1], [0, 0, 1, 1], [], []>} : vector<256x4xf32>, vector<4x16xf32>, vector<256x16xf32> -> vector<256x16xf32>
    %51 = arith.addf %45, %50 : vector<256x16xf32>
    %52 = vector.extract_strided_slice %39 {offsets = [2, 0, 0], sizes = [16, 16, 4], strides = [1, 1, 1]} : vector<18x16x4xf32> to vector<16x16x4xf32>
    %53 = vector.shape_cast %52 : vector<16x16x4xf32> to vector<256x4xf32>
    %c8 = arith.constant 8 : index
    %c0_27 = arith.constant 0 : index
    %c0_28 = arith.constant 0 : index
    %54 = vector.load %arg3[%c8, %c0_27, %c0_28] : memref<9x4x16xf32, #tpu.memory_space<vmem>>, vector<1x4x16xf32>
    %55 = vector.shape_cast %54 : vector<1x4x16xf32> to vector<4x16xf32>
    %cst_29 = arith.constant dense<0.000000e+00> : vector<256x16xf32>
    %56 = tpu.matmul %53, %55, %cst_29 {dimension_numbers = #tpu.dot_dimension_numbers<[1], [0], [0], [1], [0, 0, 1, 1], [], []>} : vector<256x4xf32>, vector<4x16xf32>, vector<256x16xf32> -> vector<256x16xf32>
    %57 = arith.addf %51, %56 : vector<256x16xf32>
    %c0_30 = arith.constant 0 : index
    %c0_31 = arith.constant 0 : index
    %58 = vector.load %arg4[%c0_30, %c0_31] : memref<1x16xf32, #tpu.memory_space<vmem>>, vector<1x16xf32>
    %59 = vector.broadcast %58 : vector<1x16xf32> to vector<256x16xf32>
    %60 = arith.addf %57, %59 : vector<256x16xf32>
    %c0_32 = arith.constant 0 : index
    %61 = memref.load %arg5[%c0_32] : memref<1xf32, #tpu.memory_space<smem>>
    %cst_33 = arith.constant 0.000000e+00 : f32
    %62 = vector.broadcast %cst_33 : f32 to vector<256x16xf32>
    %63 = arith.cmpf ogt, %60, %62 : vector<256x16xf32>
    %64 = vector.broadcast %61 : f32 to vector<256x16xf32>
    %65 = arith.mulf %64, %60 : vector<256x16xf32>
    %66 = arith.select %63, %60, %65 : vector<256x16xi1>, vector<256x16xf32>
    %67 = tpu.transpose %66, [1, 0] : vector<256x16xf32> -> vector<16x256xf32>
    %c0_34 = arith.constant 0 : index
    %c0_35 = arith.constant 0 : index
    %c0_36 = arith.constant 0 : index
    %68 = vector.load %arg6[%c0_34, %c0_35, %c0_36] : memref<1x16x256xf32, #tpu.memory_space<vmem>>, vector<1x16x256xf32>
    %69 = vector.shape_cast %68 : vector<1x16x256xf32> to vector<16x256xf32>
    %70 = vector.shape_cast %67 : vector<16x256xf32> to vector<1x16x256xf32>
    tpu.vector_store %arg6[%c0_34, %c0_35, %c0_36], %70 {strides = array<i32>} : memref<1x16x256xf32, #tpu.memory_space<vmem>>, vector<1x16x256xf32>,
    return
  }
  func.func @transform_0(%arg0: i32, %arg1: i32) -> (i32, i32, i32, i32) {
    %c0_i32 = arith.constant 0 : i32
    %c0_i32_0 = arith.constant 0 : i32
    %c0_i32_1 = arith.constant 0 : i32
    %c0_i32_2 = arith.constant 0 : i32
    return %arg0, %c0_i32, %c0_i32_0, %c0_i32_1 : i32, i32, i32, i32
  }
  func.func @transform_1(%arg0: i32, %arg1: i32) -> (i32, i32, i32) {
    %c0_i32 = arith.constant 0 : i32
    %c0_i32_0 = arith.constant 0 : i32
    %c0_i32_1 = arith.constant 0 : i32
    return %c0_i32, %c0_i32_0, %arg1 : i32, i32, i32
  }
  func.func @transform_2(%arg0: i32, %arg1: i32) -> (i32, i32) {
    %c0_i32 = arith.constant 0 : i32
    %c0_i32_0 = arith.constant 0 : i32
    return %c0_i32, %arg1 : i32, i32
  }
  func.func @transform_3(%arg0: i32, %arg1: i32) -> i32 {
    %c0_i32 = arith.constant 0 : i32
    %c0_i32_0 = arith.constant 0 : i32
    return %c0_i32 : i32
  }
  func.func @transform_4(%arg0: i32, %arg1: i32) -> (i32, i32, i32) {
    %c0_i32 = arith.constant 0 : i32
    %c0_i32_0 = arith.constant 0 : i32
    return %arg0, %arg1, %c0_i32 : i32, i32, i32
  }
}

</mosaic_0001>

<llo_original>
// kernel: tpu_custom_call.1
$region0: #{tpu_custom_call.1}
  #allocation0 [shape = 'u32[]', space=smem, size = 0x4, offset = 0x4, fixed_abs, tag = 'smem constant byte address 0x4 - core index']
  #allocation1 [shape = 'u32[144,128]{1,0:T(1,128)}', space=vmem, size = 0x12000, scoped, tag = 'internal scratch']
  #allocation2 [shape = 'f32[1]{0:T(128)S(6)}', space=smem, size = 0x200, scoped, tag = 'scoped memory for tpu_custom_call.1']
  %s0 = inlined_call_operand.vmem [shape: f32[2,18,18,4], index: 0, kind: input, shape index: {}]
  %s1 = inlined_call_operand.vmem [shape: f32[9,4,16], index: 1, kind: input, shape index: {}]
  %s2 = inlined_call_operand.vmem [shape: f32[1,16], index: 2, kind: input, shape index: {}]
  %s3 = inlined_call_operand.<no memory space> [shape: f32[1], index: 3, kind: input, shape index: {}]
  %s4 = inlined_call_operand.hbm [shape: f32[2,16,256], index: 4, kind: output, shape index: {}]
  %s5 = sld [smem:[#allocation0]]
  $region49: #{tpu_custom_call.1} parent=0
    _
  %s7 = ssub.s32 1, %s5
  %s8 = scalar_select 0, %s7, %s5
  %9 = sst [smem:[#allocation2]] %s3
  $region1: #{tpu_custom_call.1} parent=0
    #allocation3 [shape = 'u8[32768]{0}', space=vmem, size = 0x8000, scoped, tag = 'output window, operand 0']
    #allocation4 [shape = 's32[2]{0}', space=sflag, size = 0x8, scoped, tag = 'scoped memory for tpu_custom_call.1']
    %10 = vsyncpa [#allocation4], 0
    %s11 = scalar_lea.sflag [#allocation4], 1
    %12 = vsyncpa %s11, 0
    loop: start=0, step=1, limit=4
    $region2: #{tpu_custom_call.1} parent=1 // loop_pre_header
      _
    $region3: #{tpu_custom_call.1} parent=1 // loop_header
      %s14 = sphi 0, %s18
      %p15 = scmp.ge.s32.totalorder %s14, 4
      %s21 = sphi 0, %s33
      %s22 = sphi 0, %s29
      %s23 = sphi 0, %s21
      %s24 = sphi 0, %s22
      %s25 = sphi 0, %s23
      %s26 = sphi 0, %s24
      %s36 = sphi 0, %s38
      %s39 = sphi 0, %s36
      %s40 = sphi 0, %s39
      %s56 = sphi 0, %s40
      %s62 = sphi 0, %s64
      %s65 = sphi 0, %s62
      %s66 = sphi 0, %s65
      %s82 = sphi 0, %s66
      %s88 = sphi 0, %s90
      %s91 = sphi 0, %s88
      %s92 = sphi 0, %s91
      %s108 = sphi 0, %s92
      %s112 = sphi 0, %s112
      %s114 = sphi 0, %s112
      %s115 = sphi 0, %s114
      %s129 = sphi 0, %s115
      %s137 = sphi 0, %s139
      %s140 = sphi 0, %s137
      %s141 = sphi 0, %s140
      %s157 = sphi 0, %s141
    $region4: #{tpu_custom_call.1} parent=1 // loop_header_branch
      %17 = sbr.rel (%p15) target = $region8
    $region5: #{tpu_custom_call.1} parent=1 // loop_body
      %s19 = ssub.s32 %s14, 1
      %s20 = ssub.s32 %s14, 2
      %s27 = sadd.s32 1, %s22
      %p28 = scmp.ge.s32.totalorder %s27, 1
      %s29 = scalar_select %p28, 0, %s27
      %s30 = sadd.s32 1, %s21
      %s31 = scalar_select %p28, %s30, %s21
      %p32 = scmp.ge.s32.totalorder %s31, 2
      %s33 = scalar_select %p32, 0, %s31
      %s34 = ssub.s32 %s21, %s33
      %p35 = scmp.eq.s32.totalorder %s34, 0
      %s37 = sadd.s32 %s36, 1
      %s38 = scalar_select %p35, %s36, %s37
      %p41 = pneg %p35
      %p42 = scmp.eq.s32.totalorder %s14, 1
      %p43 = por %p41, %p42
      %p44 = scmp.ne.s32.totalorder %s36, %s39
      %p45 = scmp.eq.s32.totalorder %s14, 0
      %p46 = por %p44, %p45
      %p47 = scmp.ne.s32.totalorder %s36, %s39
      %p48 = scmp.eq.s32.totalorder %s19, 1
      %p49 = por %p47, %p48
      %p50 = scmp.ne.s32.totalorder %s39, %s40
      %p51 = scmp.eq.s32.totalorder %s19, 0
      %p52 = por %p50, %p51
      %p53 = scmp.ne.s32.totalorder %s39, %s40
      %p54 = scmp.eq.s32.totalorder %s20, 1
      %p55 = por %p53, %p54
      %p57 = scmp.ne.s32.totalorder %s40, %s56
      %p58 = scmp.eq.s32.totalorder %s20, 0
      %p59 = por %p57, %p58
      %s60 = ssub.s32 %s22, %s29
      %p61 = scmp.eq.s32.totalorder %s60, 0
      %s63 = sadd.s32 %s62, 1
      %s64 = scalar_select %p61, %s62, %s63
      %p67 = pneg %p61
      %p68 = scmp.eq.s32.totalorder %s14, 1
      %p69 = por %p67, %p68
      %p70 = scmp.ne.s32.totalorder %s62, %s65
      %p71 = scmp.eq.s32.totalorder %s14, 0
      %p72 = por %p70, %p71
      %p73 = scmp.ne.s32.totalorder %s62, %s65
      %p74 = scmp.eq.s32.totalorder %s19, 1
      %p75 = por %p73, %p74
      %p76 = scmp.ne.s32.totalorder %s65, %s66
      %p77 = scmp.eq.s32.totalorder %s19, 0
      %p78 = por %p76, %p77
      %p79 = scmp.ne.s32.totalorder %s65, %s66
      %p80 = scmp.eq.s32.totalorder %s20, 1
      %p81 = por %p79, %p80
      %p83 = scmp.ne.s32.totalorder %s66, %s82
      %p84 = scmp.eq.s32.totalorder %s20, 0
      %p85 = por %p83, %p84
      %s86 = ssub.s32 %s22, %s29
      %p87 = scmp.eq.s32.totalorder %s86, 0
      %s89 = sadd.s32 %s88, 1
      %s90 = scalar_select %p87, %s88, %s89
      %p93 = pneg %p87
      %p94 = scmp.eq.s32.totalorder %s14, 1
      %p95 = por %p93, %p94
      %p96 = scmp.ne.s32.totalorder %s88, %s91
      %p97 = scmp.eq.s32.totalorder %s14, 0
      %p98 = por %p96, %p97
      %p99 = scmp.ne.s32.totalorder %s88, %s91
      %p100 = scmp.eq.s32.totalorder %s19, 1
      %p101 = por %p99, %p100
      %p102 = scmp.ne.s32.totalorder %s91, %s92
      %p103 = scmp.eq.s32.totalorder %s19, 0
      %p104 = por %p102, %p103
      %p105 = scmp.ne.s32.totalorder %s91, %s92
      %p106 = scmp.eq.s32.totalorder %s20, 1
      %p107 = por %p105, %p106
      %p109 = scmp.ne.s32.totalorder %s92, %s108
      %p110 = scmp.eq.s32.totalorder %s20, 0
      %p111 = por %p109, %p110
      %s113 = sadd.s32 %s112, 1
      %p116 = scmp.eq.s32.totalorder %s14, 1
      %p117 = scmp.ne.s32.totalorder %s112, %s114
      %p118 = scmp.eq.s32.totalorder %s14, 0
      %p119 = por %p117, %p118
      %p120 = scmp.ne.s32.totalorder %s112, %s114
      %p121 = scmp.eq.s32.totalorder %s19, 1
      %p122 = por %p120, %p121
      %p123 = scmp.ne.s32.totalorder %s114, %s115
      %p124 = scmp.eq.s32.totalorder %s19, 0
      %p125 = por %p123, %p124
      %p126 = scmp.ne.s32.totalorder %s114, %s115
      %p127 = scmp.eq.s32.totalorder %s20, 1
      %p128 = por %p126, %p127
      %p130 = scmp.ne.s32.totalorder %s115, %s129
      %p131 = scmp.eq.s32.totalorder %s20, 0
      %p132 = por %p130, %p131
      %s133 = ssub.s32 %s21, %s33
      %s134 = ssub.s32 %s22, %s29
      %s135 = sor.u32 %s133, %s134
      %p136 = scmp.eq.s32.totalorder %s135, 0
      %s138 = sadd.s32 %s137, 1
      %s139 = scalar_select %p136, %s137, %s138
      %p142 = pneg %p136
      %p143 = scmp.eq.s32.totalorder %s14, 1
      %p144 = por %p142, %p143
      %p145 = scmp.ne.s32.totalorder %s137, %s140
      %p146 = scmp.eq.s32.totalorder %s14, 0
      %p147 = por %p145, %p146
      %p148 = scmp.ne.s32.totalorder %s137, %s140
      %p149 = scmp.eq.s32.totalorder %s19, 1
      %p150 = por %p148, %p149
      %p151 = scmp.ne.s32.totalorder %s140, %s141
      %p152 = scmp.eq.s32.totalorder %s19, 0
      %p153 = por %p151, %p152
      %p154 = scmp.ne.s32.totalorder %s140, %s141
      %p155 = scmp.eq.s32.totalorder %s20, 1
      %p156 = por %p154, %p155
      %p158 = scmp.ne.s32.totalorder %s141, %s157
      %p159 = scmp.eq.s32.totalorder %s20, 0
      %p160 = por %p158, %p159
      %p161 = scmp.le.s32.totalorder 1, %s14
      %p162 = scmp.lt.s32.totalorder %s14, 3
      %p163 = pnand %p161, %p162
      %p164 = pneg %p163
      // Predicated region
      $region9: #{tpu_custom_call.1} parent=5 // pred_check
        _
      $region10: #{tpu_custom_call.1} parent=5 // pred_check_branch
        %166 = sbr.rel (%p163) target = $region12
      $region11: #{tpu_custom_call.1} parent=5 // pred_region
        %s167 = ssub.s32 %s14, 1
        // Predicated region
        $region13: #{tpu_custom_call.1} parent=11 // pred_check
          %p168 = pneg %p78
        $region14: #{tpu_custom_call.1} parent=11 // pred_check_branch
          %170 = sbr.rel (%p168) target = $region16
        $region15: #{tpu_custom_call.1} parent=11 // pred_region
          %p171 = scmp.lt.s32.totalorder %s24, 0
          %s172 = scalar_select %p171, %s24, 0
          %s173 = smul.addr %s172, 4
          %s174 = scalar_lea.vmem %s1, %s173
        $region16: #{tpu_custom_call.1} parent=11 // pred_fallthru
          _
        // Predicated region
        $region17: #{tpu_custom_call.1} parent=11 // pred_check
          %p175 = pneg %p104
        $region18: #{tpu_custom_call.1} parent=11 // pred_check_branch
          %177 = sbr.rel (%p175) target = $region20
        $region19: #{tpu_custom_call.1} parent=11 // pred_region
          %p178 = scmp.lt.s32.totalorder %s24, 0
          %s179 = scalar_select %p178, %s24, 0
          %s180 = scalar_lea.vmem %s2, %s179
        $region20: #{tpu_custom_call.1} parent=11 // pred_fallthru
          _
        // Predicated region
        $region21: #{tpu_custom_call.1} parent=11 // pred_check
          %p181 = pneg %p125
        $region22: #{tpu_custom_call.1} parent=11 // pred_check_branch
          %183 = sbr.rel (%p181) target = $region24
        $region23: #{tpu_custom_call.1} parent=11 // pred_region
          _
        $region24: #{tpu_custom_call.1} parent=11 // pred_fallthru
          _
      $region12: #{tpu_custom_call.1} parent=5 // pred_fallthru
        _
      %p184 = scmp.lt.s32.totalorder %s14, 2
      // Predicated region
      $region25: #{tpu_custom_call.1} parent=5 // pred_check
        %p185 = pneg %p184
      $region26: #{tpu_custom_call.1} parent=5 // pred_check_branch
        %187 = sbr.rel (%p185) target = $region28
      $region27: #{tpu_custom_call.1} parent=5 // pred_region
        // Predicated region
        $region29: #{tpu_custom_call.1} parent=27 // pred_check
          %p188 = pneg %p46
        $region30: #{tpu_custom_call.1} parent=27 // pred_check_branch
          %190 = sbr.rel (%p188) target = $region32
        $region31: #{tpu_custom_call.1} parent=27 // pred_region
          %p191 = scmp.lt.s32.totalorder %s21, 1
          %s192 = scalar_select %p191, %s21, 1
          %s193 = smul.addr %s192, 54
          %s194 = smul.addr %s193, 8
          %s195 = scalar_lea.vmem %s0, %s194
        $region32: #{tpu_custom_call.1} parent=27 // pred_fallthru
          _
      $region28: #{tpu_custom_call.1} parent=5 // pred_fallthru
        _
      %p196 = scmp.le.s32.totalorder 1, %s14
      %p197 = scmp.lt.s32.totalorder %s14, 3
      %p198 = pnand %p196, %p197
      %p199 = pneg %p198
      // Predicated region
      $region33: #{tpu_custom_call.1} parent=5 // pred_check
        _
      $region34: #{tpu_custom_call.1} parent=5 // pred_check_branch
        %201 = sbr.rel (%p198) target = $region36
      $region35: #{tpu_custom_call.1} parent=5 // pred_region
        %s202 = ssub.s32 %s14, 1
        %p203 = scmp.lt.s32.totalorder %s23, 1
        %s204 = scalar_select %p203, %s23, 1
        %s205 = smul.addr %s204, 54
        %s206 = smul.addr %s205, 8
        %s207 = scalar_lea.vmem %s0, %s206
        %p208 = pneg %p52
        %p209 = pneg %p49
        %p210 = scmp.lt.s32.totalorder %s24, 0
        %s211 = scalar_select %p210, %s24, 0
        %s212 = smul.addr %s211, 4
        %s213 = scalar_lea.vmem %s1, %s212
        %p214 = pneg %p78
        %p215 = pneg %p75
        %p216 = scmp.lt.s32.totalorder %s24, 0
        %s217 = scalar_select %p216, %s24, 0
        %s218 = scalar_lea.vmem %s2, %s217
        %p219 = pneg %p104
        %p220 = pneg %p101
        %p221 = pneg %p125
        %p222 = pneg %p122
        %p223 = pneg %p153
        %p224 = pneg %p150
        %s225 = sand.u32 %s140, 1
        %s226 = scalar_lea.sflag [#allocation4], %s225
        %s227 = sand.u32 %s140, 1
        %s228 = smul.addr %s227, 32
        %s229 = scalar_lea.vmem [#allocation3], %s228
        %p230 = scmp.lt.s32.totalorder %s23, 1
        %s231 = scalar_select %p230, %s23, 1
        %s232 = smul.addr %s231, 54
        %s233 = smul.addr %s232, 8
        %s234 = scalar_lea.vmem %s0, %s233
        %p235 = scmp.lt.s32.totalorder %s24, 0
        %s236 = scalar_select %p235, %s24, 0
        %s237 = smul.addr %s236, 4
        %s238 = scalar_lea.vmem %s1, %s237
        %p239 = scmp.lt.s32.totalorder %s24, 0
        %s240 = scalar_select %p239, %s24, 0
        %s241 = scalar_lea.vmem %s2, %s240
        %s242 = smul.u32 2, %s24
        %v243 = vld [vmem:[%s234] sm:$0xff]
        %v244 = vld [vmem:[%s234 + $0x8] sm:$0xff]
        %v245 = vld [vmem:[%s234 + $0x10] sm:$0x3]
        %v246 = vld [vmem:[%s234 + $0x18] sm:$0xff]
        %v247 = vld [vmem:[%s234 + $0x20] sm:$0xff]
        %v248 = vld [vmem:[%s234 + $0x28] sm:$0x3]
        %v249 = vld [vmem:[%s234 + $0x30] sm:$0xff]
        %v250 = vld [vmem:[%s234 + $0x38] sm:$0xff]
        %v251 = vld [vmem:[%s234 + $0x40] sm:$0x3]
        %v252 = vld [vmem:[%s234 + $0x48] sm:$0xff]
        %v253 = vld [vmem:[%s234 + $0x50] sm:$0xff]
        %v254 = vld [vmem:[%s234 + $0x58] sm:$0x3]
        %v255 = vld [vmem:[%s234 + $0x60] sm:$0xff]
        %v256 = vld [vmem:[%s234 + $0x68] sm:$0xff]
        %v257 = vld [vmem:[%s234 + $0x70] sm:$0x3]
        %v258 = vld [vmem:[%s234 + $0x78] sm:$0xff]
        %v259 = vld [vmem:[%s234 + $0x80] sm:$0xff]
        %v260 = vld [vmem:[%s234 + $0x88] sm:$0x3]
        %v261 = vld [vmem:[%s234 + $0x90] sm:$0xff]
        %v262 = vld [vmem:[%s234 + $0x98] sm:$0xff]
        %v263 = vld [vmem:[%s234 + $0xa0] sm:$0x3]
        %v264 = vld [vmem:[%s234 + $0xa8] sm:$0xff]
        %v265 = vld [vmem:[%s234 + $0xb0] sm:$0xff]
        %v266 = vld [vmem:[%s234 + $0xb8] sm:$0x3]
        %v267 = vld [vmem:[%s234 + $0xc0] sm:$0xff]
        %v268 = vld [vmem:[%s234 + $0xc8] sm:$0xff]
        %v269 = vld [vmem:[%s234 + $0xd0] sm:$0x3]
        %v270 = vld [vmem:[%s234 + $0xd8] sm:$0xff]
        %v271 = vld [vmem:[%s234 + $0xe0] sm:$0xff]
        %v272 = vld [vmem:[%s234 + $0xe8] sm:$0x3]
        %v273 = vld [vmem:[%s234 + $0xf0] sm:$0xff]
        %v274 = vld [vmem:[%s234 + $0xf8] sm:$0xff]
        %v275 = vld [vmem:[%s234 + $0x100] sm:$0x3]
        %v276 = vld [vmem:[%s234 + $0x108] sm:$0xff]
        %v277 = vld [vmem:[%s234 + $0x110] sm:$0xff]
        %v278 = vld [vmem:[%s234 + $0x118] sm:$0x3]
        %v279 = vld [vmem:[%s234 + $0x120] sm:$0xff]
        %v280 = vld [vmem:[%s234 + $0x128] sm:$0xff]
        %v281 = vld [vmem:[%s234 + $0x130] sm:$0x3]
        %v282 = vld [vmem:[%s234 + $0x138] sm:$0xff]
        %v283 = vld [vmem:[%s234 + $0x140] sm:$0xff]
        %v284 = vld [vmem:[%s234 + $0x148] sm:$0x3]
        %v285 = vld [vmem:[%s234 + $0x150] sm:$0xff]
        %v286 = vld [vmem:[%s234 + $0x158] sm:$0xff]
        %v287 = vld [vmem:[%s234 + $0x160] sm:$0x3]
        %v288 = vld [vmem:[%s234 + $0x168] sm:$0xff]
        %v289 = vld [vmem:[%s234 + $0x170] sm:$0xff]
        %v290 = vld [vmem:[%s234 + $0x178] sm:$0x3]
        %v291 = vld [vmem:[%s234 + $0x180] sm:$0xff]
        %v292 = vld [vmem:[%s234 + $0x188] sm:$0xff]
        %v293 = vld [vmem:[%s234 + $0x190] sm:$0x3]
        %v294 = vld [vmem:[%s234 + $0x198] sm:$0xff]
        %v295 = vld [vmem:[%s234 + $0x1a0] sm:$0xff]
        %v296 = vld [vmem:[%s234 + $0x1a8] sm:$0x3]
        %v297 = vld [vmem:[%s238] sm:$0xf]
        %s298 = scalar_lea.vmem %s238, 12
        %v299 = vld [vmem:[%s298] sm:$0xf]
        %vm300 = vcmask 31744
        %v302 = vsel %vm300, %v246, 0
        %v305 = vsel %vm300, %v247, 0
        %v308 = vsel %vm300, %v249, 0
        %v311 = vsel %vm300, %v250, 0
        %v314 = vsel %vm300, %v252, 0
        %v317 = vsel %vm300, %v253, 0
        %v320 = vsel %vm300, %v255, 0
        %v323 = vsel %vm300, %v256, 0
        %v326 = vsel %vm300, %v258, 0
        %v329 = vsel %vm300, %v259, 0
        %v332 = vsel %vm300, %v261, 0
        %v335 = vsel %vm300, %v262, 0
        %v338 = vsel %vm300, %v264, 0
        %v341 = vsel %vm300, %v265, 0
        %v344 = vsel %vm300, %v267, 0
        %v347 = vsel %vm300, %v268, 0
        %v350 = vsel %vm300, %v270, 0
        %v353 = vsel %vm300, %v271, 0
        %v356 = vsel %vm300, %v273, 0
        %v359 = vsel %vm300, %v274, 0
        %v362 = vsel %vm300, %v276, 0
        %v365 = vsel %vm300, %v277, 0
        %v368 = vsel %vm300, %v279, 0
        %v371 = vsel %vm300, %v280, 0
        %v374 = vsel %vm300, %v282, 0
        %v377 = vsel %vm300, %v283, 0
        %v380 = vsel %vm300, %v285, 0
        %v383 = vsel %vm300, %v286, 0
        %v386 = vsel %vm300, %v288, 0
        %v389 = vsel %vm300, %v289, 0
        %v392 = vsel %vm300, %v291, 0
        %v395 = vsel %vm300, %v292, 0
        %vm397 = vcmask 1043456
        %v399 = vsel %vm397, %v299, 0
        %401 = vmatprep.subr.mxu0 0.0
        %402 = vmatpush1.msra.mxu0 %v399
        %403 = vmatprep.subr.mxu0 0.0
        %404 = vmatpush1.msra.mxu0 0.0
        %405 = vmatprep.subr.mxu0 0.0
        %406 = vmatpush1.msra.mxu0 0.0
        %407 = vmatprep.subr.mxu0 0.0
        %408 = vmatpush1.msra.mxu0 0.0
        %409 = vmatprep.subr.mxu0 0.0
        %410 = vmatpush1.msra.mxu0 0.0
        %411 = vmatprep.subr.mxu0 0.0
        %412 = vmatpush1.msra.mxu0 0.0
        %413 = vmatprep.subr.mxu0 0.0
        %414 = vmatpush1.msra.mxu0 0.0
        %415 = vmatprep.subr.mxu0 0.0
        %416 = vmatpush1.msra.mxu0 0.0
        %417 = vmatprep.subr.mxu0 0.0
        %418 = vmatpush1.msra.mxu0 0.0
        %419 = vmatprep.subr.mxu0 0.0
        %420 = vmatpush1.msra.mxu0 0.0
        %421 = vmatprep.subr.mxu0 0.0
        %422 = vmatpush1.msra.mxu0 0.0
        %423 = vmatprep.subr.mxu0 0.0
        %424 = vmatpush1.msra.mxu0 0.0
        %425 = vmatprep.subr.mxu0 0.0
        %426 = vmatpush1.msra.mxu0 0.0
        %427 = vmatprep.subr.mxu0 0.0
        %428 = vmatpush1.msra.mxu0 0.0
        %429 = vmatprep.subr.mxu0 0.0
        %430 = vmatpush1.msra.mxu0 0.0
        %431 = vmatprep.subr.mxu0 0.0
        %432 = vmatpush1.msra.mxu0 0.0
        %433 = vmatprep.subr.mxu0 0.0
        %434 = vmatpush1.msra.mxu0 0.0
        %435 = vmatprep.subr.mxu0 0.0
        %436 = vmatpush1.msra.mxu0 0.0
        %437 = vmatprep.subr.mxu0 0.0
        %438 = vmatpush1.msra.mxu0 0.0
        %439 = vmatprep.subr.mxu0 0.0
        %440 = vmatpush1.msra.mxu0 0.0
        %441 = vmatprep.subr.mxu0 0.0
        %442 = vmatpush1.msra.mxu0 0.0
        %443 = vmatprep.subr.mxu0 0.0
        %444 = vmatpush1.msra.mxu0 0.0
        %445 = vmatprep.subr.mxu0 0.0
        %446 = vmatpush1.msra.mxu0 0.0
        %447 = vmatprep.subr.mxu0 0.0
        %448 = vmatpush1.msra.mxu0 0.0
        %449 = vmatprep.subr.mxu0 0.0
        %450 = vmatpush1.msra.mxu0 0.0
        %451 = vmatprep.subr.mxu0 0.0
        %452 = vmatpush1.msra.mxu0 0.0
        %453 = vmatprep.subr.mxu0 0.0
        %454 = vmatpush1.msra.mxu0 0.0
        %455 = vmatprep.subr.mxu0 0.0
        %456 = vmatpush1.msra.mxu0 0.0
        %457 = vmatprep.subr.mxu0 0.0
        %458 = vmatpush1.msra.mxu0 0.0
        %459 = vmatprep.subr.mxu0 0.0
        %460 = vmatpush1.msra.mxu0 0.0
        %461 = vmatprep.subr.mxu0 0.0
        %462 = vmatpush1.msra.mxu0 0.0
        %463 = vmatprep.subr.mxu0 0.0
        %464 = vmatpush1.msra.mxu0 0.0
        %465 = vmatprep.mubr.f32.mxu0 0.0
        %466 = vmatmul.mubr.f32.gmra.mrb[0].mxu0 %v302
        %v467 = vpop.f32.mrb[0].mxu0
        %v468 = vadd.f32 0.0, %v467
        %v469 = vpop.f32.mrb[0].mxu0
        %470 = vmatprep.mubr.f32.mxu0 0.0
        %471 = vmatmul.mubr.f32.gmra.mrb[0].mxu0 %v305
        %v472 = vpop.f32.mrb[0].mxu0
        %v473 = vadd.f32 0.0, %v472
        %v474 = vpop.f32.mrb[0].mxu0
        %475 = vmatprep.mubr.f32.mxu0 0.0
        %476 = vmatmul.mubr.f32.gmra.mrb[0].mxu0 %v308
        %v477 = vpop.f32.mrb[0].mxu0
        %v478 = vadd.f32 0.0, %v477
        %v479 = vpop.f32.mrb[0].mxu0
        %480 = vmatprep.mubr.f32.mxu0 0.0
        %481 = vmatmul.mubr.f32.gmra.mrb[0].mxu0 %v311
        %v482 = vpop.f32.mrb[0].mxu0
        %v483 = vadd.f32 0.0, %v482
        %v484 = vpop.f32.mrb[0].mxu0
        %485 = vmatprep.mubr.f32.mxu0 0.0
        %486 = vmatmul.mubr.f32.gmra.mrb[0].mxu0 %v314
        %v487 = vpop.f32.mrb[0].mxu0
        %v488 = vadd.f32 0.0, %v487
        %v489 = vpop.f32.mrb[0].mxu0
        %490 = vmatprep.mubr.f32.mxu0 0.0
        %491 = vmatmul.mubr.f32.gmra.mrb[0].mxu0 %v317
        %v492 = vpop.f32.mrb[0].mxu0
        %v493 = vadd.f32 0.0, %v492
        %v494 = vpop.f32.mrb[0].mxu0
        %495 = vmatprep.mubr.f32.mxu0 0.0
        %496 = vmatmul.mubr.f32.gmra.mrb[0].mxu0 %v320
        %v497 = vpop.f32.mrb[0].mxu0
        %v498 = vadd.f32 0.0, %v497
        %v499 = vpop.f32.mrb[0].mxu0
        %500 = vmatprep.mubr.f32.mxu0 0.0
        %501 = vmatmul.mubr.f32.gmra.mrb[0].mxu0 %v323
        %v502 = vpop.f32.mrb[0].mxu0
        %v503 = vadd.f32 0.0, %v502
        %v504 = vpop.f32.mrb[0].mxu0
        %505 = vmatprep.mubr.f32.mxu0 0.0
        %506 = vmatmul.mubr.f32.gmra.mrb[0].mxu0 %v326
        %v507 = vpop.f32.mrb[0].mxu0
        %v508 = vadd.f32 0.0, %v507
        %v509 = vpop.f32.mrb[0].mxu0
        %510 = vmatprep.mubr.f32.mxu0 0.0
        %511 = vmatmul.mubr.f32.gmra.mrb[0].mxu0 %v329
        %v512 = vpop.f32.mrb[0].mxu0
        %v513 = vadd.f32 0.0, %v512
        %v514 = vpop.f32.mrb[0].mxu0
        %515 = vmatprep.mubr.f32.mxu0 0.0
        %516 = vmatmul.mubr.f32.gmra.mrb[0].mxu0 %v332
        %v517 = vpop.f32.mrb[0].mxu0
        %v518 = vadd.f32 0.0, %v517
        %v519 = vpop.f32.mrb[0].mxu0
        %520 = vmatprep.mubr.f32.mxu0 0.0
        %521 = vmatmul.mubr.f32.gmra.mrb[0].mxu0 %v335
        %v522 = vpop.f32.mrb[0].mxu0
        %v523 = vadd.f32 0.0, %v522
        %v524 = vpop.f32.mrb[0].mxu0
        %525 = vmatprep.mubr.f32.mxu0 0.0
        %526 = vmatmul.mubr.f32.gmra.mrb[0].mxu0 %v338
        %v527 = vpop.f32.mrb[0].mxu0
        %v528 = vadd.f32 0.0, %v527
        %v529 = vpop.f32.mrb[0].mxu0
        %530 = vmatprep.mubr.f32.mxu0 0.0
        %531 = vmatmul.mubr.f32.gmra.mrb[0].mxu0 %v341
        %v532 = vpop.f32.mrb[0].mxu0
        %v533 = vadd.f32 0.0, %v532
        %v534 = vpop.f32.mrb[0].mxu0
        %535 = vmatprep.mubr.f32.mxu0 0.0
        %536 = vmatmul.mubr.f32.gmra.mrb[0].mxu0 %v344
        %v537 = vpop.f32.mrb[0].mxu0
        %v538 = vadd.f32 0.0, %v537
        %v539 = vpop.f32.mrb[0].mxu0
        %540 = vmatprep.mubr.f32.mxu0 0.0
        %541 = vmatmul.mubr.f32.gmra.mrb[0].mxu0 %v347
        %v542 = vpop.f32.mrb[0].mxu0
        %v543 = vadd.f32 0.0, %v542
        %v544 = vpop.f32.mrb[0].mxu0
        %545 = vmatprep.mubr.f32.mxu0 0.0
        %546 = vmatmul.mubr.f32.gmra.mrb[0].mxu0 %v350
        %v547 = vpop.f32.mrb[0].mxu0
        %v548 = vadd.f32 0.0, %v547
        %v549 = vpop.f32.mrb[0].mxu0
        %550 = vmatprep.mubr.f32.mxu0 0.0
        %551 = vmatmul.mubr.f32.gmra.mrb[0].mxu0 %v353
        %v552 = vpop.f32.mrb[0].mxu0
        %v553 = vadd.f32 0.0, %v552
        %v554 = vpop.f32.mrb[0].mxu0
        %555 = vmatprep.mubr.f32.mxu0 0.0
        %556 = vmatmul.mubr.f32.gmra.mrb[0].mxu0 %v356
        %v557 = vpop.f32.mrb[0].mxu0
        %v558 = vadd.f32 0.0, %v557
        %v559 = vpop.f32.mrb[0].mxu0
        %560 = vmatprep.mubr.f32.mxu0 0.0
        %561 = vmatmul.mubr.f32.gmra.mrb[0].mxu0 %v359
        %v562 = vpop.f32.mrb[0].mxu0
        %v563 = vadd.f32 0.0, %v562
        %v564 = vpop.f32.mrb[0].mxu0
        %565 = vmatprep.mubr.f32.mxu0 0.0
        %566 = vmatmul.mubr.f32.gmra.mrb[0].mxu0 %v362
        %v567 = vpop.f32.mrb[0].mxu0
        %v568 = vadd.f32 0.0, %v567
        %v569 = vpop.f32.mrb[0].mxu0
        %570 = vmatprep.mubr.f32.mxu0 0.0
        %571 = vmatmul.mubr.f32.gmra.mrb[0].mxu0 %v365
        %v572 = vpop.f32.mrb[0].mxu0
        %v573 = vadd.f32 0.0, %v572
        %v574 = vpop.f32.mrb[0].mxu0
        %575 = vmatprep.mubr.f32.mxu0 0.0
        %576 = vmatmul.mubr.f32.gmra.mrb[0].mxu0 %v368
        %v577 = vpop.f32.mrb[0].mxu0
        %v578 = vadd.f32 0.0, %v577
        %v579 = vpop.f32.mrb[0].mxu0
        %580 = vmatprep.mubr.f32.mxu0 0.0
        %581 = vmatmul.mubr.f32.gmra.mrb[0].mxu0 %v371
        %v582 = vpop.f32.mrb[0].mxu0
        %v583 = vadd.f32 0.0, %v582
        %v584 = vpop.f32.mrb[0].mxu0
        %585 = vmatprep.mubr.f32.mxu0 0.0
        %586 = vmatmul.mubr.f32.gmra.mrb[0].mxu0 %v374
        %v587 = vpop.f32.mrb[0].mxu0
        %v588 = vadd.f32 0.0, %v587
        %v589 = vpop.f32.mrb[0].mxu0
        %590 = vmatprep.mubr.f32.mxu0 0.0
        %591 = vmatmul.mubr.f32.gmra.mrb[0].mxu0 %v377
        %v592 = vpop.f32.mrb[0].mxu0
        %v593 = vadd.f32 0.0, %v592
        %v594 = vpop.f32.mrb[0].mxu0
        %595 = vmatprep.mubr.f32.mxu0 0.0
        %596 = vmatmul.mubr.f32.gmra.mrb[0].mxu0 %v380
        %v597 = vpop.f32.mrb[0].mxu0
        %v598 = vadd.f32 0.0, %v597
        %v599 = vpop.f32.mrb[0].mxu0
        %600 = vmatprep.mubr.f32.mxu0 0.0
        %601 = vmatmul.mubr.f32.gmra.mrb[0].mxu0 %v383
        %v602 = vpop.f32.mrb[0].mxu0
        %v603 = vadd.f32 0.0, %v602
        %v604 = vpop.f32.mrb[0].mxu0
        %605 = vmatprep.mubr.f32.mxu0 0.0
        %606 = vmatmul.mubr.f32.gmra.mrb[0].mxu0 %v386
        %v607 = vpop.f32.mrb[0].mxu0
        %v608 = vadd.f32 0.0, %v607
        %v609 = vpop.f32.mrb[0].mxu0
        %610 = vmatprep.mubr.f32.mxu0 0.0
        %611 = vmatmul.mubr.f32.gmra.mrb[0].mxu0 %v389
        %v612 = vpop.f32.mrb[0].mxu0
        %v613 = vadd.f32 0.0, %v612
        %v614 = vpop.f32.mrb[0].mxu0
        %615 = vmatprep.mubr.f32.mxu0 0.0
        %616 = vmatmul.mubr.f32.gmra.mrb[0].mxu0 %v392
        %v617 = vpop.f32.mrb[0].mxu0
        %v618 = vadd.f32 0.0, %v617
        %v619 = vpop.f32.mrb[0].mxu0
        %620 = vmatprep.mubr.f32.mxu0 0.0
        %621 = vmatmul.mubr.f32.gmra.mrb[0].mxu0 %v395
        %v622 = vpop.f32.mrb[0].mxu0
        %v623 = vadd.f32 0.0, %v622
        %v624 = vpop.f32.mrb[0].mxu0
        %625 = vdwg.mxu0
        %v627 = vsel %vm300, %v243, 0
        %v630 = vsel %vm300, %v244, 0
        %v633 = vsel %vm397, %v297, 0
        %635 = vmatprep.subr.mxu0 0.0
        %636 = vmatpush1.msra.mxu0 %v633
        %637 = vmatprep.subr.mxu0 0.0
        %638 = vmatpush1.msra.mxu0 0.0
        %639 = vmatprep.subr.mxu0 0.0
        %640 = vmatpush1.msra.mxu0 0.0
        %641 = vmatprep.subr.mxu0 0.0
        %642 = vmatpush1.msra.mxu0 0.0
        %643 = vmatprep.subr.mxu0 0.0
        %644 = vmatpush1.msra.mxu0 0.0
        %645 = vmatprep.subr.mxu0 0.0
        %646 = vmatpush1.msra.mxu0 0.0
        %647 = vmatprep.subr.mxu0 0.0
        %648 = vmatpush1.msra.mxu0 0.0
        %649 = vmatprep.subr.mxu0 0.0
        %650 = vmatpush1.msra.mxu0 0.0
        %651 = vmatprep.subr.mxu0 0.0
        %652 = vmatpush1.msra.mxu0 0.0
        %653 = vmatprep.subr.mxu0 0.0
        %654 = vmatpush1.msra.mxu0 0.0
        %655 = vmatprep.subr.mxu0 0.0
        %656 = vmatpush1.msra.mxu0 0.0
        %657 = vmatprep.subr.mxu0 0.0
        %658 = vmatpush1.msra.mxu0 0.0
        %659 = vmatprep.subr.mxu0 0.0
        %660 = vmatpush1.msra.mxu0 0.0
        %661 = vmatprep.subr.mxu0 0.0
        %662 = vmatpush1.msra.mxu0 0.0
        %663 = vmatprep.subr.mxu0 0.0
        %664 = vmatpush1.msra.mxu0 0.0
        %665 = vmatprep.subr.mxu0 0.0
        %666 = vmatpush1.msra.mxu0 0.0
        %667 = vmatprep.subr.mxu0 0.0
        %668 = vmatpush1.msra.mxu0 0.0
        %669 = vmatprep.subr.mxu0 0.0
        %670 = vmatpush1.msra.mxu0 0.0
        %671 = vmatprep.subr.mxu0 0.0
        %672 = vmatpush1.msra.mxu0 0.0
        %673 = vmatprep.subr.mxu0 0.0
        %674 = vmatpush1.msra.mxu0 0.0
        %675 = vmatprep.subr.mxu0 0.0
        %676 = vmatpush1.msra.mxu0 0.0
        %677 = vmatprep.subr.mxu0 0.0
        %678 = vmatpush1.msra.mxu0 0.0
        %679 = vmatprep.subr.mxu0 0.0
        %680 = vmatpush1.msra.mxu0 0.0
        %681 = vmatprep.subr.mxu0 0.0
        %682 = vmatpush1.msra.mxu0 0.0
        %683 = vmatprep.subr.mxu0 0.0
        %684 = vmatpush1.msra.mxu0 0.0
        %685 = vmatprep.subr.mxu0 0.0
        %686 = vmatpush1.msra.mxu0 0.0
        %687 = vmatprep.subr.mxu0 0.0
        %688 = vmatpush1.msra.mxu0 0.0
        %689 = vmatprep.subr.mxu0 0.0
        %690 = vmatpush1.msra.mxu0 0.0
        %691 = vmatprep.subr.mxu0 0.0
        %692 = vmatpush1.msra.mxu0 0.0
        %693 = vmatprep.subr.mxu0 0.0
        %694 = vmatpush1.msra.mxu0 0.0
        %695 = vmatprep.subr.mxu0 0.0
        %696 = vmatpush1.msra.mxu0 0.0
        %697 = vmatprep.subr.mxu0 0.0
        %698 = vmatpush1.msra.mxu0 0.0
        %699 = vmatprep.mubr.f32.mxu0 0.0
        %700 = vmatmul.mubr.f32.gmra.mrb[0].mxu0 %v627
        %v701 = vpop.f32.mrb[0].mxu0
        %v702 = vadd.f32 %v468, %v701
        %v703 = vpop.f32.mrb[0].mxu0
        %704 = vmatprep.mubr.f32.mxu0 0.0
        %705 = vmatmul.mubr.f32.gmra.mrb[0].mxu0 %v630
        %v706 = vpop.f32.mrb[0].mxu0
        %v707 = vadd.f32 %v473, %v706
        %v708 = vpop.f32.mrb[0].mxu0
        %709 = vmatprep.mubr.f32.mxu0 0.0
        %710 = vmatmul.mubr.f32.gmra.mrb[0].mxu0 %v302
        %v711 = vpop.f32.mrb[0].mxu0
        %v712 = vadd.f32 %v478, %v711
        %v713 = vpop.f32.mrb[0].mxu0
        %714 = vmatprep.mubr.f32.mxu0 0.0
        %715 = vmatmul.mubr.f32.gmra.mrb[0].mxu0 %v305
        %v716 = vpop.f32.mrb[0].mxu0
        %v717 = vadd.f32 %v483, %v716
        %v718 = vpop.f32.mrb[0].mxu0
        %719 = vmatprep.mubr.f32.mxu0 0.0
        %720 = vmatmul.mubr.f32.gmra.mrb[0].mxu0 %v308
        %v721 = vpop.f32.mrb[0].mxu0
        %v722 = vadd.f32 %v488, %v721
        %v723 = vpop.f32.mrb[0].mxu0
        %724 = vmatprep.mubr.f32.mxu0 0.0
        %725 = vmatmul.mubr.f32.gmra.mrb[0].mxu0 %v311
        %v726 = vpop.f32.mrb[0].mxu0
        %v727 = vadd.f32 %v493, %v726
        %v728 = vpop.f32.mrb[0].mxu0
        %729 = vmatprep.mubr.f32.mxu0 0.0
        %730 = vmatmul.mubr.f32.gmra.mrb[0].mxu0 %v314
        %v731 = vpop.f32.mrb[0].mxu0
        %v732 = vadd.f32 %v498, %v731
        %v733 = vpop.f32.mrb[0].mxu0
        %734 = vmatprep.mubr.f32.mxu0 0.0
        %735 = vmatmul.mubr.f32.gmra.mrb[0].mxu0 %v317
        %v736 = vpop.f32.mrb[0].mxu0
        %v737 = vadd.f32 %v503, %v736
        %v738 = vpop.f32.mrb[0].mxu0
        %739 = vmatprep.mubr.f32.mxu0 0.0
        %740 = vmatmul.mubr.f32.gmra.mrb[0].mxu0 %v320
        %v741 = vpop.f32.mrb[0].mxu0
        %v742 = vadd.f32 %v508, %v741
        %v743 = vpop.f32.mrb[0].mxu0
        %744 = vmatprep.mubr.f32.mxu0 0.0
        %745 = vmatmul.mubr.f32.gmra.mrb[0].mxu0 %v323
        %v746 = vpop.f32.mrb[0].mxu0
        %v747 = vadd.f32 %v513, %v746
        %v748 = vpop.f32.mrb[0].mxu0
        %749 = vmatprep.mubr.f32.mxu0 0.0
        %750 = vmatmul.mubr.f32.gmra.mrb[0].mxu0 %v326
        %v751 = vpop.f32.mrb[0].mxu0
        %v752 = vadd.f32 %v518, %v751
        %v753 = vpop.f32.mrb[0].mxu0
        %754 = vmatprep.mubr.f32.mxu0 0.0
        %755 = vmatmul.mubr.f32.gmra.mrb[0].mxu0 %v329
        %v756 = vpop.f32.mrb[0].mxu0
        %v757 = vadd.f32 %v523, %v756
        %v758 = vpop.f32.mrb[0].mxu0
        %759 = vmatprep.mubr.f32.mxu0 0.0
        %760 = vmatmul.mubr.f32.gmra.mrb[0].mxu0 %v332
        %v761 = vpop.f32.mrb[0].mxu0
        %v762 = vadd.f32 %v528, %v761
        %v763 = vpop.f32.mrb[0].mxu0
        %764 = vmatprep.mubr.f32.mxu0 0.0
        %765 = vmatmul.mubr.f32.gmra.mrb[0].mxu0 %v335
        %v766 = vpop.f32.mrb[0].mxu0
        %v767 = vadd.f32 %v533, %v766
        %v768 = vpop.f32.mrb[0].mxu0
        %769 = vmatprep.mubr.f32.mxu0 0.0
        %770 = vmatmul.mubr.f32.gmra.mrb[0].mxu0 %v338
        %v771 = vpop.f32.mrb[0].mxu0
        %v772 = vadd.f32 %v538, %v771
        %v773 = vpop.f32.mrb[0].mxu0
        %774 = vmatprep.mubr.f32.mxu0 0.0
        %775 = vmatmul.mubr.f32.gmra.mrb[0].mxu0 %v341
        %v776 = vpop.f32.mrb[0].mxu0
        %v777 = vadd.f32 %v543, %v776
        %v778 = vpop.f32.mrb[0].mxu0
        %779 = vmatprep.mubr.f32.mxu0 0.0
        %780 = vmatmul.mubr.f32.gmra.mrb[0].mxu0 %v344
        %v781 = vpop.f32.mrb[0].mxu0
        %v782 = vadd.f32 %v548, %v781
        %v783 = vpop.f32.mrb[0].mxu0
        %784 = vmatprep.mubr.f32.mxu0 0.0
        %785 = vmatmul.mubr.f32.gmra.mrb[0].mxu0 %v347
        %v786 = vpop.f32.mrb[0].mxu0
        %v787 = vadd.f32 %v553, %v786
        %v788 = vpop.f32.mrb[0].mxu0
        %789 = vmatprep.mubr.f32.mxu0 0.0
        %790 = vmatmul.mubr.f32.gmra.mrb[0].mxu0 %v350
        %v791 = vpop.f32.mrb[0].mxu0
        %v792 = vadd.f32 %v558, %v791
        %v793 = vpop.f32.mrb[0].mxu0
        %794 = vmatprep.mubr.f32.mxu0 0.0
        %795 = vmatmul.mubr.f32.gmra.mrb[0].mxu0 %v353
        %v796 = vpop.f32.mrb[0].mxu0
        %v797 = vadd.f32 %v563, %v796
        %v798 = vpop.f32.mrb[0].mxu0
        %799 = vmatprep.mubr.f32.mxu0 0.0
        %800 = vmatmul.mubr.f32.gmra.mrb[0].mxu0 %v356
        %v801 = vpop.f32.mrb[0].mxu0
        %v802 = vadd.f32 %v568, %v801
        %v803 = vpop.f32.mrb[0].mxu0
        %804 = vmatprep.mubr.f32.mxu0 0.0
        %805 = vmatmul.mubr.f32.gmra.mrb[0].mxu0 %v359
        %v806 = vpop.f32.mrb[0].mxu0
        %v807 = vadd.f32 %v573, %v806
        %v808 = vpop.f32.mrb[0].mxu0
        %809 = vmatprep.mubr.f32.mxu0 0.0
        %810 = vmatmul.mubr.f32.gmra.mrb[0].mxu0 %v362
        %v811 = vpop.f32.mrb[0].mxu0
        %v812 = vadd.f32 %v578, %v811
        %v813 = vpop.f32.mrb[0].mxu0
        %814 = vmatprep.mubr.f32.mxu0 0.0
        %815 = vmatmul.mubr.f32.gmra.mrb[0].mxu0 %v365
        %v816 = vpop.f32.mrb[0].mxu0
        %v817 = vadd.f32 %v583, %v816
        %v818 = vpop.f32.mrb[0].mxu0
        %819 = vmatprep.mubr.f32.mxu0 0.0
        %820 = vmatmul.mubr.f32.gmra.mrb[0].mxu0 %v368
        %v821 = vpop.f32.mrb[0].mxu0
        %v822 = vadd.f32 %v588, %v821
        %v823 = vpop.f32.mrb[0].mxu0
        %824 = vmatprep.mubr.f32.mxu0 0.0
        %825 = vmatmul.mubr.f32.gmra.mrb[0].mxu0 %v371
        %v826 = vpop.f32.mrb[0].mxu0
        %v827 = vadd.f32 %v593, %v826
        %v828 = vpop.f32.mrb[0].mxu0
        %829 = vmatprep.mubr.f32.mxu0 0.0
        %830 = vmatmul.mubr.f32.gmra.mrb[0].mxu0 %v374
        %v831 = vpop.f32.mrb[0].mxu0
        %v832 = vadd.f32 %v598, %v831
        %v833 = vpop.f32.mrb[0].mxu0
        %834 = vmatprep.mubr.f32.mxu0 0.0
        %835 = vmatmul.mubr.f32.gmra.mrb[0].mxu0 %v377
        %v836 = vpop.f32.mrb[0].mxu0
        %v837 = vadd.f32 %v603, %v836
        %v838 = vpop.f32.mrb[0].mxu0
        %839 = vmatprep.mubr.f32.mxu0 0.0
        %840 = vmatmul.mubr.f32.gmra.mrb[0].mxu0 %v380
        %v841 = vpop.f32.mrb[0].mxu0
        %v842 = vadd.f32 %v608, %v841
        %v843 = vpop.f32.mrb[0].mxu0
        %844 = vmatprep.mubr.f32.mxu0 0.0
        %845 = vmatmul.mubr.f32.gmra.mrb[0].mxu0 %v383
        %v846 = vpop.f32.mrb[0].mxu0
        %v847 = vadd.f32 %v613, %v846
        %v848 = vpop.f32.mrb[0].mxu0
        %849 = vmatprep.mubr.f32.mxu0 0.0
        %850 = vmatmul.mubr.f32.gmra.mrb[0].mxu0 %v386
        %v851 = vpop.f32.mrb[0].mxu0
        %v852 = vadd.f32 %v618, %v851
        %v853 = vpop.f32.mrb[0].mxu0
        %854 = vmatprep.mubr.f32.mxu0 0.0
        %855 = vmatmul.mubr.f32.gmra.mrb[0].mxu0 %v389
        %v856 = vpop.f32.mrb[0].mxu0
        %v857 = vadd.f32 %v623, %v856
        %v858 = vpop.f32.mrb[0].mxu0
        %859 = vdwg.mxu0
        %s860 = scalar_lea.vmem %s238, 24
        %v861 = vld [vmem:[%s860] sm:$0xf]
        %v863 = vsel %vm300, %v294, 0
        %v866 = vsel %vm300, %v295, 0
        %v869 = vsel %vm397, %v861, 0
        %871 = vmatprep.subr.mxu0 0.0
        %872 = vmatpush1.msra.mxu0 %v869
        %873 = vmatprep.subr.mxu0 0.0
        %874 = vmatpush1.msra.mxu0 0.0
        %875 = vmatprep.subr.mxu0 0.0
        %876 = vmatpush1.msra.mxu0 0.0
        %877 = vmatprep.subr.mxu0 0.0
        %878 = vmatpush1.msra.mxu0 0.0
        %879 = vmatprep.subr.mxu0 0.0
        %880 = vmatpush1.msra.mxu0 0.0
        %881 = vmatprep.subr.mxu0 0.0
        %882 = vmatpush1.msra.mxu0 0.0
        %883 = vmatprep.subr.mxu0 0.0
        %884 = vmatpush1.msra.mxu0 0.0
        %885 = vmatprep.subr.mxu0 0.0
        %886 = vmatpush1.msra.mxu0 0.0
        %887 = vmatprep.subr.mxu0 0.0
        %888 = vmatpush1.msra.mxu0 0.0
        %889 = vmatprep.subr.mxu0 0.0
        %890 = vmatpush1.msra.mxu0 0.0
        %891 = vmatprep.subr.mxu0 0.0
        %892 = vmatpush1.msra.mxu0 0.0
        %893 = vmatprep.subr.mxu0 0.0
        %894 = vmatpush1.msra.mxu0 0.0
        %895 = vmatprep.subr.mxu0 0.0
        %896 = vmatpush1.msra.mxu0 0.0
        %897 = vmatprep.subr.mxu0 0.0
        %898 = vmatpush1.msra.mxu0 0.0
        %899 = vmatprep.subr.mxu0 0.0
        %900 = vmatpush1.msra.mxu0 0.0
        %901 = vmatprep.subr.mxu0 0.0
        %902 = vmatpush1.msra.mxu0 0.0
        %903 = vmatprep.subr.mxu0 0.0
        %904 = vmatpush1.msra.mxu0 0.0
        %905 = vmatprep.subr.mxu0 0.0
        %906 = vmatpush1.msra.mxu0 0.0
        %907 = vmatprep.subr.mxu0 0.0
        %908 = vmatpush1.msra.mxu0 0.0
        %909 = vmatprep.subr.mxu0 0.0
        %910 = vmatpush1.msra.mxu0 0.0
        %911 = vmatprep.subr.mxu0 0.0
        %912 = vmatpush1.msra.mxu0 0.0
        %913 = vmatprep.subr.mxu0 0.0
        %914 = vmatpush1.msra.mxu0 0.0
        %915 = vmatprep.subr.mxu0 0.0
        %916 = vmatpush1.msra.mxu0 0.0
        %917 = vmatprep.subr.mxu0 0.0
        %918 = vmatpush1.msra.mxu0 0.0
        %919 = vmatprep.subr.mxu0 0.0
        %920 = vmatpush1.msra.mxu0 0.0
        %921 = vmatprep.subr.mxu0 0.0
        %922 = vmatpush1.msra.mxu0 0.0
        %923 = vmatprep.subr.mxu0 0.0
        %924 = vmatpush1.msra.mxu0 0.0
        %925 = vmatprep.subr.mxu0 0.0
        %926 = vmatpush1.msra.mxu0 0.0
        %927 = vmatprep.subr.mxu0 0.0
        %928 = vmatpush1.msra.mxu0 0.0
        %929 = vmatprep.subr.mxu0 0.0
        %930 = vmatpush1.msra.mxu0 0.0
        %931 = vmatprep.subr.mxu0 0.0
        %932 = vmatpush1.msra.mxu0 0.0
        %933 = vmatprep.subr.mxu0 0.0
        %934 = vmatpush1.msra.mxu0 0.0
        %935 = vmatprep.mubr.f32.mxu0 0.0
        %936 = vmatmul.mubr.f32.gmra.mrb[0].mxu0 %v308
        %v937 = vpop.f32.mrb[0].mxu0
        %v938 = vadd.f32 0.0, %v937
        %v939 = vpop.f32.mrb[0].mxu0
        %940 = vmatprep.mubr.f32.mxu0 0.0
        %941 = vmatmul.mubr.f32.gmra.mrb[0].mxu0 %v311
        %v942 = vpop.f32.mrb[0].mxu0
        %v943 = vadd.f32 0.0, %v942
        %v944 = vpop.f32.mrb[0].mxu0
        %945 = vmatprep.mubr.f32.mxu0 0.0
        %946 = vmatmul.mubr.f32.gmra.mrb[0].mxu0 %v314
        %v947 = vpop.f32.mrb[0].mxu0
        %v948 = vadd.f32 0.0, %v947
        %v949 = vpop.f32.mrb[0].mxu0
        %950 = vmatprep.mubr.f32.mxu0 0.0
        %951 = vmatmul.mubr.f32.gmra.mrb[0].mxu0 %v317
        %v952 = vpop.f32.mrb[0].mxu0
        %v953 = vadd.f32 0.0, %v952
        %v954 = vpop.f32.mrb[0].mxu0
        %955 = vmatprep.mubr.f32.mxu0 0.0
        %956 = vmatmul.mubr.f32.gmra.mrb[0].mxu0 %v320
        %v957 = vpop.f32.mrb[0].mxu0
        %v958 = vadd.f32 0.0, %v957
        %v959 = vpop.f32.mrb[0].mxu0
        %960 = vmatprep.mubr.f32.mxu0 0.0
        %961 = vmatmul.mubr.f32.gmra.mrb[0].mxu0 %v323
        %v962 = vpop.f32.mrb[0].mxu0
        %v963 = vadd.f32 0.0, %v962
        %v964 = vpop.f32.mrb[0].mxu0
        %965 = vmatprep.mubr.f32.mxu0 0.0
        %966 = vmatmul.mubr.f32.gmra.mrb[0].mxu0 %v326
        %v967 = vpop.f32.mrb[0].mxu0
        %v968 = vadd.f32 0.0, %v967
        %v969 = vpop.f32.mrb[0].mxu0
        %970 = vmatprep.mubr.f32.mxu0 0.0
        %971 = vmatmul.mubr.f32.gmra.mrb[0].mxu0 %v329
        %v972 = vpop.f32.mrb[0].mxu0
        %v973 = vadd.f32 0.0, %v972
        %v974 = vpop.f32.mrb[0].mxu0
        %975 = vmatprep.mubr.f32.mxu0 0.0
        %976 = vmatmul.mubr.f32.gmra.mrb[0].mxu0 %v332
        %v977 = vpop.f32.mrb[0].mxu0
        %v978 = vadd.f32 0.0, %v977
        %v979 = vpop.f32.mrb[0].mxu0
        %980 = vmatprep.mubr.f32.mxu0 0.0
        %981 = vmatmul.mubr.f32.gmra.mrb[0].mxu0 %v335
        %v982 = vpop.f32.mrb[0].mxu0
        %v983 = vadd.f32 0.0, %v982
        %v984 = vpop.f32.mrb[0].mxu0
        %985 = vmatprep.mubr.f32.mxu0 0.0
        %986 = vmatmul.mubr.f32.gmra.mrb[0].mxu0 %v338
        %v987 = vpop.f32.mrb[0].mxu0
        %v988 = vadd.f32 0.0, %v987
        %v989 = vpop.f32.mrb[0].mxu0
        %990 = vmatprep.mubr.f32.mxu0 0.0
        %991 = vmatmul.mubr.f32.gmra.mrb[0].mxu0 %v341
        %v992 = vpop.f32.mrb[0].mxu0
        %v993 = vadd.f32 0.0, %v992
        %v994 = vpop.f32.mrb[0].mxu0
        %995 = vmatprep.mubr.f32.mxu0 0.0
        %996 = vmatmul.mubr.f32.gmra.mrb[0].mxu0 %v344
        %v997 = vpop.f32.mrb[0].mxu0
        %v998 = vadd.f32 0.0, %v997
        %v999 = vpop.f32.mrb[0].mxu0
        %1000 = vmatprep.mubr.f32.mxu0 0.0
        %1001 = vmatmul.mubr.f32.gmra.mrb[0].mxu0 %v347
        %v1002 = vpop.f32.mrb[0].mxu0
        %v1003 = vadd.f32 0.0, %v1002
        %v1004 = vpop.f32.mrb[0].mxu0
        %1005 = vmatprep.mubr.f32.mxu0 0.0
        %1006 = vmatmul.mubr.f32.gmra.mrb[0].mxu0 %v350
        %v1007 = vpop.f32.mrb[0].mxu0
        %v1008 = vadd.f32 0.0, %v1007
        %v1009 = vpop.f32.mrb[0].mxu0
        %1010 = vmatprep.mubr.f32.mxu0 0.0
        %1011 = vmatmul.mubr.f32.gmra.mrb[0].mxu0 %v353
        %v1012 = vpop.f32.mrb[0].mxu0
        %v1013 = vadd.f32 0.0, %v1012
        %v1014 = vpop.f32.mrb[0].mxu0
        %1015 = vmatprep.mubr.f32.mxu0 0.0
        %1016 = vmatmul.mubr.f32.gmra.mrb[0].mxu0 %v356
        %v1017 = vpop.f32.mrb[0].mxu0
        %v1018 = vadd.f32 0.0, %v1017
        %v1019 = vpop.f32.mrb[0].mxu0
        %1020 = vmatprep.mubr.f32.mxu0 0.0
        %1021 = vmatmul.mubr.f32.gmra.mrb[0].mxu0 %v359
        %v1022 = vpop.f32.mrb[0].mxu0
        %v1023 = vadd.f32 0.0, %v1022
        %v1024 = vpop.f32.mrb[0].mxu0
        %1025 = vmatprep.mubr.f32.mxu0 0.0
        %1026 = vmatmul.mubr.f32.gmra.mrb[0].mxu0 %v362
        %v1027 = vpop.f32.mrb[0].mxu0
        %v1028 = vadd.f32 0.0, %v1027
        %v1029 = vpop.f32.mrb[0].mxu0
        %1030 = vmatprep.mubr.f32.mxu0 0.0
        %1031 = vmatmul.mubr.f32.gmra.mrb[0].mxu0 %v365
        %v1032 = vpop.f32.mrb[0].mxu0
        %v1033 = vadd.f32 0.0, %v1032
        %v1034 = vpop.f32.mrb[0].mxu0
        %1035 = vmatprep.mubr.f32.mxu0 0.0
        %1036 = vmatmul.mubr.f32.gmra.mrb[0].mxu0 %v368
        %v1037 = vpop.f32.mrb[0].mxu0
        %v1038 = vadd.f32 0.0, %v1037
        %v1039 = vpop.f32.mrb[0].mxu0
        %1040 = vmatprep.mubr.f32.mxu0 0.0
        %1041 = vmatmul.mubr.f32.gmra.mrb[0].mxu0 %v371
        %v1042 = vpop.f32.mrb[0].mxu0
        %v1043 = vadd.f32 0.0, %v1042
        %v1044 = vpop.f32.mrb[0].mxu0
        %1045 = vmatprep.mubr.f32.mxu0 0.0
        %1046 = vmatmul.mubr.f32.gmra.mrb[0].mxu0 %v374
        %v1047 = vpop.f32.mrb[0].mxu0
        %v1048 = vadd.f32 0.0, %v1047
        %v1049 = vpop.f32.mrb[0].mxu0
        %1050 = vmatprep.mubr.f32.mxu0 0.0
        %1051 = vmatmul.mubr.f32.gmra.mrb[0].mxu0 %v377
        %v1052 = vpop.f32.mrb[0].mxu0
        %v1053 = vadd.f32 0.0, %v1052
        %v1054 = vpop.f32.mrb[0].mxu0
        %1055 = vmatprep.mubr.f32.mxu0 0.0
        %1056 = vmatmul.mubr.f32.gmra.mrb[0].mxu0 %v380
        %v1057 = vpop.f32.mrb[0].mxu0
        %v1058 = vadd.f32 0.0, %v1057
        %v1059 = vpop.f32.mrb[0].mxu0
        %1060 = vmatprep.mubr.f32.mxu0 0.0
        %1061 = vmatmul.mubr.f32.gmra.mrb[0].mxu0 %v383
        %v1062 = vpop.f32.mrb[0].mxu0
        %v1063 = vadd.f32 0.0, %v1062
        %v1064 = vpop.f32.mrb[0].mxu0
        %1065 = vmatprep.mubr.f32.mxu0 0.0
        %1066 = vmatmul.mubr.f32.gmra.mrb[0].mxu0 %v386
        %v1067 = vpop.f32.mrb[0].mxu0
        %v1068 = vadd.f32 0.0, %v1067
        %v1069 = vpop.f32.mrb[0].mxu0
        %1070 = vmatprep.mubr.f32.mxu0 0.0
        %1071 = vmatmul.mubr.f32.gmra.mrb[0].mxu0 %v389
        %v1072 = vpop.f32.mrb[0].mxu0
        %v1073 = vadd.f32 0.0, %v1072
        %v1074 = vpop.f32.mrb[0].mxu0
        %1075 = vmatprep.mubr.f32.mxu0 0.0
        %1076 = vmatmul.mubr.f32.gmra.mrb[0].mxu0 %v392
        %v1077 = vpop.f32.mrb[0].mxu0
        %v1078 = vadd.f32 0.0, %v1077
        %v1079 = vpop.f32.mrb[0].mxu0
        %1080 = vmatprep.mubr.f32.mxu0 0.0
        %1081 = vmatmul.mubr.f32.gmra.mrb[0].mxu0 %v395
        %v1082 = vpop.f32.mrb[0].mxu0
        %v1083 = vadd.f32 0.0, %v1082
        %v1084 = vpop.f32.mrb[0].mxu0
        %1085 = vmatprep.mubr.f32.mxu0 0.0
        %1086 = vmatmul.mubr.f32.gmra.mrb[0].mxu0 %v863
        %v1087 = vpop.f32.mrb[0].mxu0
        %v1088 = vadd.f32 0.0, %v1087
        %v1089 = vpop.f32.mrb[0].mxu0
        %1090 = vmatprep.mubr.f32.mxu0 0.0
        %1091 = vmatmul.mubr.f32.gmra.mrb[0].mxu0 %v866
        %v1092 = vpop.f32.mrb[0].mxu0
        %v1093 = vadd.f32 0.0, %v1092
        %v1094 = vpop.f32.mrb[0].mxu0
        %1095 = vdwg.mxu0
        %v1096 = vadd.f32 %v702, %v938
        %v1097 = vadd.f32 %v707, %v943
        %v1098 = vadd.f32 %v712, %v948
        %v1099 = vadd.f32 %v717, %v953
        %v1100 = vadd.f32 %v722, %v958
        %v1101 = vadd.f32 %v727, %v963
        %v1102 = vadd.f32 %v732, %v968
        %v1103 = vadd.f32 %v737, %v973
        %v1104 = vadd.f32 %v742, %v978
        %v1105 = vadd.f32 %v747, %v983
        %v1106 = vadd.f32 %v752, %v988
        %v1107 = vadd.f32 %v757, %v993
        %v1108 = vadd.f32 %v762, %v998
        %v1109 = vadd.f32 %v767, %v1003
        %v1110 = vadd.f32 %v772, %v1008
        %v1111 = vadd.f32 %v777, %v1013
        %v1112 = vadd.f32 %v782, %v1018
        %v1113 = vadd.f32 %v787, %v1023
        %v1114 = vadd.f32 %v792, %v1028
        %v1115 = vadd.f32 %v797, %v1033
        %v1116 = vadd.f32 %v802, %v1038
        %v1117 = vadd.f32 %v807, %v1043
        %v1118 = vadd.f32 %v812, %v1048
        %v1119 = vadd.f32 %v817, %v1053
        %v1120 = vadd.f32 %v822, %v1058
        %v1121 = vadd.f32 %v827, %v1063
        %v1122 = vadd.f32 %v832, %v1068
        %v1123 = vadd.f32 %v837, %v1073
        %v1124 = vadd.f32 %v842, %v1078
        %v1125 = vadd.f32 %v847, %v1083
        %v1126 = vadd.f32 %v852, %v1088
        %v1127 = vadd.f32 %v857, %v1093
        %vm1144 = vcmask 1046528
        %v1145 = vrot.slane %v243, 1
        %v1146 = vrot.slane %v244, 1
        %v1147 = vsel %vm1144, %v1145, %v1146
        %v1148 = vrot.slane %v245, 1
        %v1149 = vsel %vm1144, %v1146, %v1148
        %v1150 = vrot.slane %v246, 1
        %v1151 = vrot.slane %v247, 1
        %v1152 = vsel %vm1144, %v1150, %v1151
        %v1153 = vrot.slane %v248, 1
        %v1154 = vsel %vm1144, %v1151, %v1153
        %v1155 = vrot.slane %v249, 1
        %v1156 = vrot.slane %v250, 1
        %v1157 = vsel %vm1144, %v1155, %v1156
        %v1158 = vrot.slane %v251, 1
        %v1159 = vsel %vm1144, %v1156, %v1158
        %v1160 = vrot.slane %v252, 1
        %v1161 = vrot.slane %v253, 1
        %v1162 = vsel %vm1144, %v1160, %v1161
        %v1163 = vrot.slane %v254, 1
        %v1164 = vsel %vm1144, %v1161, %v1163
        %v1165 = vrot.slane %v255, 1
        %v1166 = vrot.slane %v256, 1
        %v1167 = vsel %vm1144, %v1165, %v1166
        %v1168 = vrot.slane %v257, 1
        %v1169 = vsel %vm1144, %v1166, %v1168
        %v1170 = vrot.slane %v258, 1
        %v1171 = vrot.slane %v259, 1
        %v1172 = vsel %vm1144, %v1170, %v1171
        %v1173 = vrot.slane %v260, 1
        %v1174 = vsel %vm1144, %v1171, %v1173
        %v1175 = vrot.slane %v261, 1
        %v1176 = vrot.slane %v262, 1
        %v1177 = vsel %vm1144, %v1175, %v1176
        %v1178 = vrot.slane %v263, 1
        %v1179 = vsel %vm1144, %v1176, %v1178
        %v1180 = vrot.slane %v264, 1
        %v1181 = vrot.slane %v265, 1
        %v1182 = vsel %vm1144, %v1180, %v1181
        %v1183 = vrot.slane %v266, 1
        %v1184 = vsel %vm1144, %v1181, %v1183
        %v1185 = vrot.slane %v267, 1
        %v1186 = vrot.slane %v268, 1
        %v1187 = vsel %vm1144, %v1185, %v1186
        %v1188 = vrot.slane %v269, 1
        %v1189 = vsel %vm1144, %v1186, %v1188
        %v1190 = vrot.slane %v270, 1
        %v1191 = vrot.slane %v271, 1
        %v1192 = vsel %vm1144, %v1190, %v1191
        %v1193 = vrot.slane %v272, 1
        %v1194 = vsel %vm1144, %v1191, %v1193
        %v1195 = vrot.slane %v273, 1
        %v1196 = vrot.slane %v274, 1
        %v1197 = vsel %vm1144, %v1195, %v1196
        %v1198 = vrot.slane %v275, 1
        %v1199 = vsel %vm1144, %v1196, %v1198
        %v1200 = vrot.slane %v276, 1
        %v1201 = vrot.slane %v277, 1
        %v1202 = vsel %vm1144, %v1200, %v1201
        %v1203 = vrot.slane %v278, 1
        %v1204 = vsel %vm1144, %v1201, %v1203
        %v1205 = vrot.slane %v279, 1
        %v1206 = vrot.slane %v280, 1
        %v1207 = vsel %vm1144, %v1205, %v1206
        %v1208 = vrot.slane %v281, 1
        %v1209 = vsel %vm1144, %v1206, %v1208
        %v1210 = vrot.slane %v282, 1
        %v1211 = vrot.slane %v283, 1
        %v1212 = vsel %vm1144, %v1210, %v1211
        %v1213 = vrot.slane %v284, 1
        %v1214 = vsel %vm1144, %v1211, %v1213
        %v1215 = vrot.slane %v285, 1
        %v1216 = vrot.slane %v286, 1
        %v1217 = vsel %vm1144, %v1215, %v1216
        %v1218 = vrot.slane %v287, 1
        %v1219 = vsel %vm1144, %v1216, %v1218
        %v1220 = vrot.slane %v288, 1
        %v1221 = vrot.slane %v289, 1
        %v1222 = vsel %vm1144, %v1220, %v1221
        %v1223 = vrot.slane %v290, 1
        %v1224 = vsel %vm1144, %v1221, %v1223
        %s1225 = scalar_lea.vmem %s238, 4
        %v1226 = vld [vmem:[%s1225] sm:$0xf]
        %v1227 = vsel %vm300, %v1147, 0
        %v1229 = vsel %vm300, %v1149, 0
        %v1231 = vsel %vm300, %v1152, 0
        %v1233 = vsel %vm300, %v1154, 0
        %v1235 = vsel %vm300, %v1157, 0
        %v1237 = vsel %vm300, %v1159, 0
        %v1239 = vsel %vm300, %v1162, 0
        %v1241 = vsel %vm300, %v1164, 0
        %v1243 = vsel %vm300, %v1167, 0
        %v1245 = vsel %vm300, %v1169, 0
        %v1247 = vsel %vm300, %v1172, 0
        %v1249 = vsel %vm300, %v1174, 0
        %v1251 = vsel %vm300, %v1177, 0
        %v1253 = vsel %vm300, %v1179, 0
        %v1255 = vsel %vm300, %v1182, 0
        %v1257 = vsel %vm300, %v1184, 0
        %v1259 = vsel %vm300, %v1187, 0
        %v1261 = vsel %vm300, %v1189, 0
        %v1263 = vsel %vm300, %v1192, 0
        %v1265 = vsel %vm300, %v1194, 0
        %v1267 = vsel %vm300, %v1197, 0
        %v1269 = vsel %vm300, %v1199, 0
        %v1271 = vsel %vm300, %v1202, 0
        %v1273 = vsel %vm300, %v1204, 0
        %v1275 = vsel %vm300, %v1207, 0
        %v1277 = vsel %vm300, %v1209, 0
        %v1279 = vsel %vm300, %v1212, 0
        %v1281 = vsel %vm300, %v1214, 0
        %v1283 = vsel %vm300, %v1217, 0
        %v1285 = vsel %vm300, %v1219, 0
        %v1287 = vsel %vm300, %v1222, 0
        %v1289 = vsel %vm300, %v1224, 0
        %v1292 = vsel %vm397, %v1226, 0
        %1294 = vmatprep.subr.mxu0 0.0
        %1295 = vmatpush1.msra.mxu0 %v1292
        %1296 = vmatprep.subr.mxu0 0.0
        %1297 = vmatpush1.msra.mxu0 0.0
        %1298 = vmatprep.subr.mxu0 0.0
        %1299 = vmatpush1.msra.mxu0 0.0
        %1300 = vmatprep.subr.mxu0 0.0
        %1301 = vmatpush1.msra.mxu0 0.0
        %1302 = vmatprep.subr.mxu0 0.0
        %1303 = vmatpush1.msra.mxu0 0.0
        %1304 = vmatprep.subr.mxu0 0.0
        %1305 = vmatpush1.msra.mxu0 0.0
        %1306 = vmatprep.subr.mxu0 0.0
        %1307 = vmatpush1.msra.mxu0 0.0
        %1308 = vmatprep.subr.mxu0 0.0
        %1309 = vmatpush1.msra.mxu0 0.0
        %1310 = vmatprep.subr.mxu0 0.0
        %1311 = vmatpush1.msra.mxu0 0.0
        %1312 = vmatprep.subr.mxu0 0.0
        %1313 = vmatpush1.msra.mxu0 0.0
        %1314 = vmatprep.subr.mxu0 0.0
        %1315 = vmatpush1.msra.mxu0 0.0
        %1316 = vmatprep.subr.mxu0 0.0
        %1317 = vmatpush1.msra.mxu0 0.0
        %1318 = vmatprep.subr.mxu0 0.0
        %1319 = vmatpush1.msra.mxu0 0.0
        %1320 = vmatprep.subr.mxu0 0.0
        %1321 = vmatpush1.msra.mxu0 0.0
        %1322 = vmatprep.subr.mxu0 0.0
        %1323 = vmatpush1.msra.mxu0 0.0
        %1324 = vmatprep.subr.mxu0 0.0
        %1325 = vmatpush1.msra.mxu0 0.0
        %1326 = vmatprep.subr.mxu0 0.0
        %1327 = vmatpush1.msra.mxu0 0.0
        %1328 = vmatprep.subr.mxu0 0.0
        %1329 = vmatpush1.msra.mxu0 0.0
        %1330 = vmatprep.subr.mxu0 0.0
        %1331 = vmatpush1.msra.mxu0 0.0
        %1332 = vmatprep.subr.mxu0 0.0
        %1333 = vmatpush1.msra.mxu0 0.0
        %1334 = vmatprep.subr.mxu0 0.0
        %1335 = vmatpush1.msra.mxu0 0.0
        %1336 = vmatprep.subr.mxu0 0.0
        %1337 = vmatpush1.msra.mxu0 0.0
        %1338 = vmatprep.subr.mxu0 0.0
        %1339 = vmatpush1.msra.mxu0 0.0
        %1340 = vmatprep.subr.mxu0 0.0
        %1341 = vmatpush1.msra.mxu0 0.0
        %1342 = vmatprep.subr.mxu0 0.0
        %1343 = vmatpush1.msra.mxu0 0.0
        %1344 = vmatprep.subr.mxu0 0.0
        %1345 = vmatpush1.msra.mxu0 0.0
        %1346 = vmatprep.subr.mxu0 0.0
        %1347 = vmatpush1.msra.mxu0 0.0
        %1348 = vmatprep.subr.mxu0 0.0
        %1349 = vmatpush1.msra.mxu0 0.0
        %1350 = vmatprep.subr.mxu0 0.0
        %1351 = vmatpush1.msra.mxu0 0.0
        %1352 = vmatprep.subr.mxu0 0.0
        %1353 = vmatpush1.msra.mxu0 0.0
        %1354 = vmatprep.subr.mxu0 0.0
        %1355 = vmatpush1.msra.mxu0 0.0
        %1356 = vmatprep.subr.mxu0 0.0
        %1357 = vmatpush1.msra.mxu0 0.0
        %1358 = vmatprep.mubr.f32.mxu0 0.0
        %1359 = vmatmul.mubr.f32.gmra.mrb[0].mxu0 %v1227
        %v1360 = vpop.f32.mrb[0].mxu0
        %v1361 = vadd.f32 0.0, %v1360
        %v1362 = vpop.f32.mrb[0].mxu0
        %1363 = vmatprep.mubr.f32.mxu0 0.0
        %1364 = vmatmul.mubr.f32.gmra.mrb[0].mxu0 %v1229
        %v1365 = vpop.f32.mrb[0].mxu0
        %v1366 = vadd.f32 0.0, %v1365
        %v1367 = vpop.f32.mrb[0].mxu0
        %1368 = vmatprep.mubr.f32.mxu0 0.0
        %1369 = vmatmul.mubr.f32.gmra.mrb[0].mxu0 %v1231
        %v1370 = vpop.f32.mrb[0].mxu0
        %v1371 = vadd.f32 0.0, %v1370
        %v1372 = vpop.f32.mrb[0].mxu0
        %1373 = vmatprep.mubr.f32.mxu0 0.0
        %1374 = vmatmul.mubr.f32.gmra.mrb[0].mxu0 %v1233
        %v1375 = vpop.f32.mrb[0].mxu0
        %v1376 = vadd.f32 0.0, %v1375
        %v1377 = vpop.f32.mrb[0].mxu0
        %1378 = vmatprep.mubr.f32.mxu0 0.0
        %1379 = vmatmul.mubr.f32.gmra.mrb[0].mxu0 %v1235
        %v1380 = vpop.f32.mrb[0].mxu0
        %v1381 = vadd.f32 0.0, %v1380
        %v1382 = vpop.f32.mrb[0].mxu0
        %1383 = vmatprep.mubr.f32.mxu0 0.0
        %1384 = vmatmul.mubr.f32.gmra.mrb[0].mxu0 %v1237
        %v1385 = vpop.f32.mrb[0].mxu0
        %v1386 = vadd.f32 0.0, %v1385
        %v1387 = vpop.f32.mrb[0].mxu0
        %1388 = vmatprep.mubr.f32.mxu0 0.0
        %1389 = vmatmul.mubr.f32.gmra.mrb[0].mxu0 %v1239
        %v1390 = vpop.f32.mrb[0].mxu0
        %v1391 = vadd.f32 0.0, %v1390
        %v1392 = vpop.f32.mrb[0].mxu0
        %1393 = vmatprep.mubr.f32.mxu0 0.0
        %1394 = vmatmul.mubr.f32.gmra.mrb[0].mxu0 %v1241
        %v1395 = vpop.f32.mrb[0].mxu0
        %v1396 = vadd.f32 0.0, %v1395
        %v1397 = vpop.f32.mrb[0].mxu0
        %1398 = vmatprep.mubr.f32.mxu0 0.0
        %1399 = vmatmul.mubr.f32.gmra.mrb[0].mxu0 %v1243
        %v1400 = vpop.f32.mrb[0].mxu0
        %v1401 = vadd.f32 0.0, %v1400
        %v1402 = vpop.f32.mrb[0].mxu0
        %1403 = vmatprep.mubr.f32.mxu0 0.0
        %1404 = vmatmul.mubr.f32.gmra.mrb[0].mxu0 %v1245
        %v1405 = vpop.f32.mrb[0].mxu0
        %v1406 = vadd.f32 0.0, %v1405
        %v1407 = vpop.f32.mrb[0].mxu0
        %1408 = vmatprep.mubr.f32.mxu0 0.0
        %1409 = vmatmul.mubr.f32.gmra.mrb[0].mxu0 %v1247
        %v1410 = vpop.f32.mrb[0].mxu0
        %v1411 = vadd.f32 0.0, %v1410
        %v1412 = vpop.f32.mrb[0].mxu0
        %1413 = vmatprep.mubr.f32.mxu0 0.0
        %1414 = vmatmul.mubr.f32.gmra.mrb[0].mxu0 %v1249
        %v1415 = vpop.f32.mrb[0].mxu0
        %v1416 = vadd.f32 0.0, %v1415
        %v1417 = vpop.f32.mrb[0].mxu0
        %1418 = vmatprep.mubr.f32.mxu0 0.0
        %1419 = vmatmul.mubr.f32.gmra.mrb[0].mxu0 %v1251
        %v1420 = vpop.f32.mrb[0].mxu0
        %v1421 = vadd.f32 0.0, %v1420
        %v1422 = vpop.f32.mrb[0].mxu0
        %1423 = vmatprep.mubr.f32.mxu0 0.0
        %1424 = vmatmul.mubr.f32.gmra.mrb[0].mxu0 %v1253
        %v1425 = vpop.f32.mrb[0].mxu0
        %v1426 = vadd.f32 0.0, %v1425
        %v1427 = vpop.f32.mrb[0].mxu0
        %1428 = vmatprep.mubr.f32.mxu0 0.0
        %1429 = vmatmul.mubr.f32.gmra.mrb[0].mxu0 %v1255
        %v1430 = vpop.f32.mrb[0].mxu0
        %v1431 = vadd.f32 0.0, %v1430
        %v1432 = vpop.f32.mrb[0].mxu0
        %1433 = vmatprep.mubr.f32.mxu0 0.0
        %1434 = vmatmul.mubr.f32.gmra.mrb[0].mxu0 %v1257
        %v1435 = vpop.f32.mrb[0].mxu0
        %v1436 = vadd.f32 0.0, %v1435
        %v1437 = vpop.f32.mrb[0].mxu0
        %1438 = vmatprep.mubr.f32.mxu0 0.0
        %1439 = vmatmul.mubr.f32.gmra.mrb[0].mxu0 %v1259
        %v1440 = vpop.f32.mrb[0].mxu0
        %v1441 = vadd.f32 0.0, %v1440
        %v1442 = vpop.f32.mrb[0].mxu0
        %1443 = vmatprep.mubr.f32.mxu0 0.0
        %1444 = vmatmul.mubr.f32.gmra.mrb[0].mxu0 %v1261
        %v1445 = vpop.f32.mrb[0].mxu0
        %v1446 = vadd.f32 0.0, %v1445
        %v1447 = vpop.f32.mrb[0].mxu0
        %1448 = vmatprep.mubr.f32.mxu0 0.0
        %1449 = vmatmul.mubr.f32.gmra.mrb[0].mxu0 %v1263
        %v1450 = vpop.f32.mrb[0].mxu0
        %v1451 = vadd.f32 0.0, %v1450
        %v1452 = vpop.f32.mrb[0].mxu0
        %1453 = vmatprep.mubr.f32.mxu0 0.0
        %1454 = vmatmul.mubr.f32.gmra.mrb[0].mxu0 %v1265
        %v1455 = vpop.f32.mrb[0].mxu0
        %v1456 = vadd.f32 0.0, %v1455
        %v1457 = vpop.f32.mrb[0].mxu0
        %1458 = vmatprep.mubr.f32.mxu0 0.0
        %1459 = vmatmul.mubr.f32.gmra.mrb[0].mxu0 %v1267
        %v1460 = vpop.f32.mrb[0].mxu0
        %v1461 = vadd.f32 0.0, %v1460
        %v1462 = vpop.f32.mrb[0].mxu0
        %1463 = vmatprep.mubr.f32.mxu0 0.0
        %1464 = vmatmul.mubr.f32.gmra.mrb[0].mxu0 %v1269
        %v1465 = vpop.f32.mrb[0].mxu0
        %v1466 = vadd.f32 0.0, %v1465
        %v1467 = vpop.f32.mrb[0].mxu0
        %1468 = vmatprep.mubr.f32.mxu0 0.0
        %1469 = vmatmul.mubr.f32.gmra.mrb[0].mxu0 %v1271
        %v1470 = vpop.f32.mrb[0].mxu0
        %v1471 = vadd.f32 0.0, %v1470
        %v1472 = vpop.f32.mrb[0].mxu0
        %1473 = vmatprep.mubr.f32.mxu0 0.0
        %1474 = vmatmul.mubr.f32.gmra.mrb[0].mxu0 %v1273
        %v1475 = vpop.f32.mrb[0].mxu0
        %v1476 = vadd.f32 0.0, %v1475
        %v1477 = vpop.f32.mrb[0].mxu0
        %1478 = vmatprep.mubr.f32.mxu0 0.0
        %1479 = vmatmul.mubr.f32.gmra.mrb[0].mxu0 %v1275
        %v1480 = vpop.f32.mrb[0].mxu0
        %v1481 = vadd.f32 0.0, %v1480
        %v1482 = vpop.f32.mrb[0].mxu0
        %1483 = vmatprep.mubr.f32.mxu0 0.0
        %1484 = vmatmul.mubr.f32.gmra.mrb[0].mxu0 %v1277
        %v1485 = vpop.f32.mrb[0].mxu0
        %v1486 = vadd.f32 0.0, %v1485
        %v1487 = vpop.f32.mrb[0].mxu0
        %1488 = vmatprep.mubr.f32.mxu0 0.0
        %1489 = vmatmul.mubr.f32.gmra.mrb[0].mxu0 %v1279
        %v1490 = vpop.f32.mrb[0].mxu0
        %v1491 = vadd.f32 0.0, %v1490
        %v1492 = vpop.f32.mrb[0].mxu0
        %1493 = vmatprep.mubr.f32.mxu0 0.0
        %1494 = vmatmul.mubr.f32.gmra.mrb[0].mxu0 %v1281
        %v1495 = vpop.f32.mrb[0].mxu0
        %v1496 = vadd.f32 0.0, %v1495
        %v1497 = vpop.f32.mrb[0].mxu0
        %1498 = vmatprep.mubr.f32.mxu0 0.0
        %1499 = vmatmul.mubr.f32.gmra.mrb[0].mxu0 %v1283
        %v1500 = vpop.f32.mrb[0].mxu0
        %v1501 = vadd.f32 0.0, %v1500
        %v1502 = vpop.f32.mrb[0].mxu0
        %1503 = vmatprep.mubr.f32.mxu0 0.0
        %1504 = vmatmul.mubr.f32.gmra.mrb[0].mxu0 %v1285
        %v1505 = vpop.f32.mrb[0].mxu0
        %v1506 = vadd.f32 0.0, %v1505
        %v1507 = vpop.f32.mrb[0].mxu0
        %1508 = vmatprep.mubr.f32.mxu0 0.0
        %1509 = vmatmul.mubr.f32.gmra.mrb[0].mxu0 %v1287
        %v1510 = vpop.f32.mrb[0].mxu0
        %v1511 = vadd.f32 0.0, %v1510
        %v1512 = vpop.f32.mrb[0].mxu0
        %1513 = vmatprep.mubr.f32.mxu0 0.0
        %1514 = vmatmul.mubr.f32.gmra.mrb[0].mxu0 %v1289
        %v1515 = vpop.f32.mrb[0].mxu0
        %v1516 = vadd.f32 0.0, %v1515
        %v1517 = vpop.f32.mrb[0].mxu0
        %1518 = vdwg.mxu0
        %v1519 = vadd.f32 %v1096, %v1361
        %v1520 = vadd.f32 %v1097, %v1366
        %v1521 = vadd.f32 %v1098, %v1371
        %v1522 = vadd.f32 %v1099, %v1376
        %v1523 = vadd.f32 %v1100, %v1381
        %v1524 = vadd.f32 %v1101, %v1386
        %v1525 = vadd.f32 %v1102, %v1391
        %v1526 = vadd.f32 %v1103, %v1396
        %v1527 = vadd.f32 %v1104, %v1401
        %v1528 = vadd.f32 %v1105, %v1406
        %v1529 = vadd.f32 %v1106, %v1411
        %v1530 = vadd.f32 %v1107, %v1416
        %v1531 = vadd.f32 %v1108, %v1421
        %v1532 = vadd.f32 %v1109, %v1426
        %v1533 = vadd.f32 %v1110, %v1431
        %v1534 = vadd.f32 %v1111, %v1436
        %v1535 = vadd.f32 %v1112, %v1441
        %v1536 = vadd.f32 %v1113, %v1446
        %v1537 = vadd.f32 %v1114, %v1451
        %v1538 = vadd.f32 %v1115, %v1456
        %v1539 = vadd.f32 %v1116, %v1461
        %v1540 = vadd.f32 %v1117, %v1466
        %v1541 = vadd.f32 %v1118, %v1471
        %v1542 = vadd.f32 %v1119, %v1476
        %v1543 = vadd.f32 %v1120, %v1481
        %v1544 = vadd.f32 %v1121, %v1486
        %v1545 = vadd.f32 %v1122, %v1491
        %v1546 = vadd.f32 %v1123, %v1496
        %v1547 = vadd.f32 %v1124, %v1501
        %v1548 = vadd.f32 %v1125, %v1506
        %v1549 = vadd.f32 %v1126, %v1511
        %v1550 = vadd.f32 %v1127, %v1516
        %v1552 = vrot.slane %v291, 1
        %v1553 = vrot.slane %v292, 1
        %v1554 = vsel %vm1144, %v1552, %v1553
        %v1555 = vrot.slane %v293, 1
        %v1556 = vsel %vm1144, %v1553, %v1555
        %s1557 = scalar_lea.vmem %s238, 16
        %v1558 = vld [vmem:[%s1557] sm:$0xf]
        %v1559 = vsel %vm300, %v1554, 0
        %v1561 = vsel %vm300, %v1556, 0
        %v1564 = vsel %vm397, %v1558, 0
        %1566 = vmatprep.subr.mxu0 0.0
        %1567 = vmatpush1.msra.mxu0 %v1564
        %1568 = vmatprep.subr.mxu0 0.0
        %1569 = vmatpush1.msra.mxu0 0.0
        %1570 = vmatprep.subr.mxu0 0.0
        %1571 = vmatpush1.msra.mxu0 0.0
        %1572 = vmatprep.subr.mxu0 0.0
        %1573 = vmatpush1.msra.mxu0 0.0
        %1574 = vmatprep.subr.mxu0 0.0
        %1575 = vmatpush1.msra.mxu0 0.0
        %1576 = vmatprep.subr.mxu0 0.0
        %1577 = vmatpush1.msra.mxu0 0.0
        %1578 = vmatprep.subr.mxu0 0.0
        %1579 = vmatpush1.msra.mxu0 0.0
        %1580 = vmatprep.subr.mxu0 0.0
        %1581 = vmatpush1.msra.mxu0 0.0
        %1582 = vmatprep.subr.mxu0 0.0
        %1583 = vmatpush1.msra.mxu0 0.0
        %1584 = vmatprep.subr.mxu0 0.0
        %1585 = vmatpush1.msra.mxu0 0.0
        %1586 = vmatprep.subr.mxu0 0.0
        %1587 = vmatpush1.msra.mxu0 0.0
        %1588 = vmatprep.subr.mxu0 0.0
        %1589 = vmatpush1.msra.mxu0 0.0
        %1590 = vmatprep.subr.mxu0 0.0
        %1591 = vmatpush1.msra.mxu0 0.0
        %1592 = vmatprep.subr.mxu0 0.0
        %1593 = vmatpush1.msra.mxu0 0.0
        %1594 = vmatprep.subr.mxu0 0.0
        %1595 = vmatpush1.msra.mxu0 0.0
        %1596 = vmatprep.subr.mxu0 0.0
        %1597 = vmatpush1.msra.mxu0 0.0
        %1598 = vmatprep.subr.mxu0 0.0
        %1599 = vmatpush1.msra.mxu0 0.0
        %1600 = vmatprep.subr.mxu0 0.0
        %1601 = vmatpush1.msra.mxu0 0.0
        %1602 = vmatprep.subr.mxu0 0.0
        %1603 = vmatpush1.msra.mxu0 0.0
        %1604 = vmatprep.subr.mxu0 0.0
        %1605 = vmatpush1.msra.mxu0 0.0
        %1606 = vmatprep.subr.mxu0 0.0
        %1607 = vmatpush1.msra.mxu0 0.0
        %1608 = vmatprep.subr.mxu0 0.0
        %1609 = vmatpush1.msra.mxu0 0.0
        %1610 = vmatprep.subr.mxu0 0.0
        %1611 = vmatpush1.msra.mxu0 0.0
        %1612 = vmatprep.subr.mxu0 0.0
        %1613 = vmatpush1.msra.mxu0 0.0
        %1614 = vmatprep.subr.mxu0 0.0
        %1615 = vmatpush1.msra.mxu0 0.0
        %1616 = vmatprep.subr.mxu0 0.0
        %1617 = vmatpush1.msra.mxu0 0.0
        %1618 = vmatprep.subr.mxu0 0.0
        %1619 = vmatpush1.msra.mxu0 0.0
        %1620 = vmatprep.subr.mxu0 0.0
        %1621 = vmatpush1.msra.mxu0 0.0
        %1622 = vmatprep.subr.mxu0 0.0
        %1623 = vmatpush1.msra.mxu0 0.0
        %1624 = vmatprep.subr.mxu0 0.0
        %1625 = vmatpush1.msra.mxu0 0.0
        %1626 = vmatprep.subr.mxu0 0.0
        %1627 = vmatpush1.msra.mxu0 0.0
        %1628 = vmatprep.subr.mxu0 0.0
        %1629 = vmatpush1.msra.mxu0 0.0
        %1630 = vmatprep.mubr.f32.mxu0 0.0
        %1631 = vmatmul.mubr.f32.gmra.mrb[0].mxu0 %v1231
        %v1632 = vpop.f32.mrb[0].mxu0
        %v1633 = vadd.f32 0.0, %v1632
        %v1634 = vpop.f32.mrb[0].mxu0
        %1635 = vmatprep.mubr.f32.mxu0 0.0
        %1636 = vmatmul.mubr.f32.gmra.mrb[0].mxu0 %v1233
        %v1637 = vpop.f32.mrb[0].mxu0
        %v1638 = vadd.f32 0.0, %v1637
        %v1639 = vpop.f32.mrb[0].mxu0
        %1640 = vmatprep.mubr.f32.mxu0 0.0
        %1641 = vmatmul.mubr.f32.gmra.mrb[0].mxu0 %v1235
        %v1642 = vpop.f32.mrb[0].mxu0
        %v1643 = vadd.f32 0.0, %v1642
        %v1644 = vpop.f32.mrb[0].mxu0
        %1645 = vmatprep.mubr.f32.mxu0 0.0
        %1646 = vmatmul.mubr.f32.gmra.mrb[0].mxu0 %v1237
        %v1647 = vpop.f32.mrb[0].mxu0
        %v1648 = vadd.f32 0.0, %v1647
        %v1649 = vpop.f32.mrb[0].mxu0
        %1650 = vmatprep.mubr.f32.mxu0 0.0
        %1651 = vmatmul.mubr.f32.gmra.mrb[0].mxu0 %v1239
        %v1652 = vpop.f32.mrb[0].mxu0
        %v1653 = vadd.f32 0.0, %v1652
        %v1654 = vpop.f32.mrb[0].mxu0
        %1655 = vmatprep.mubr.f32.mxu0 0.0
        %1656 = vmatmul.mubr.f32.gmra.mrb[0].mxu0 %v1241
        %v1657 = vpop.f32.mrb[0].mxu0
        %v1658 = vadd.f32 0.0, %v1657
        %v1659 = vpop.f32.mrb[0].mxu0
        %1660 = vmatprep.mubr.f32.mxu0 0.0
        %1661 = vmatmul.mubr.f32.gmra.mrb[0].mxu0 %v1243
        %v1662 = vpop.f32.mrb[0].mxu0
        %v1663 = vadd.f32 0.0, %v1662
        %v1664 = vpop.f32.mrb[0].mxu0
        %1665 = vmatprep.mubr.f32.mxu0 0.0
        %1666 = vmatmul.mubr.f32.gmra.mrb[0].mxu0 %v1245
        %v1667 = vpop.f32.mrb[0].mxu0
        %v1668 = vadd.f32 0.0, %v1667
        %v1669 = vpop.f32.mrb[0].mxu0
        %1670 = vmatprep.mubr.f32.mxu0 0.0
        %1671 = vmatmul.mubr.f32.gmra.mrb[0].mxu0 %v1247
        %v1672 = vpop.f32.mrb[0].mxu0
        %v1673 = vadd.f32 0.0, %v1672
        %v1674 = vpop.f32.mrb[0].mxu0
        %1675 = vmatprep.mubr.f32.mxu0 0.0
        %1676 = vmatmul.mubr.f32.gmra.mrb[0].mxu0 %v1249
        %v1677 = vpop.f32.mrb[0].mxu0
        %v1678 = vadd.f32 0.0, %v1677
        %v1679 = vpop.f32.mrb[0].mxu0
        %1680 = vmatprep.mubr.f32.mxu0 0.0
        %1681 = vmatmul.mubr.f32.gmra.mrb[0].mxu0 %v1251
        %v1682 = vpop.f32.mrb[0].mxu0
        %v1683 = vadd.f32 0.0, %v1682
        %v1684 = vpop.f32.mrb[0].mxu0
        %1685 = vmatprep.mubr.f32.mxu0 0.0
        %1686 = vmatmul.mubr.f32.gmra.mrb[0].mxu0 %v1253
        %v1687 = vpop.f32.mrb[0].mxu0
        %v1688 = vadd.f32 0.0, %v1687
        %v1689 = vpop.f32.mrb[0].mxu0
        %1690 = vmatprep.mubr.f32.mxu0 0.0
        %1691 = vmatmul.mubr.f32.gmra.mrb[0].mxu0 %v1255
        %v1692 = vpop.f32.mrb[0].mxu0
        %v1693 = vadd.f32 0.0, %v1692
        %v1694 = vpop.f32.mrb[0].mxu0
        %1695 = vmatprep.mubr.f32.mxu0 0.0
        %1696 = vmatmul.mubr.f32.gmra.mrb[0].mxu0 %v1257
        %v1697 = vpop.f32.mrb[0].mxu0
        %v1698 = vadd.f32 0.0, %v1697
        %v1699 = vpop.f32.mrb[0].mxu0
        %1700 = vmatprep.mubr.f32.mxu0 0.0
        %1701 = vmatmul.mubr.f32.gmra.mrb[0].mxu0 %v1259
        %v1702 = vpop.f32.mrb[0].mxu0
        %v1703 = vadd.f32 0.0, %v1702
        %v1704 = vpop.f32.mrb[0].mxu0
        %1705 = vmatprep.mubr.f32.mxu0 0.0
        %1706 = vmatmul.mubr.f32.gmra.mrb[0].mxu0 %v1261
        %v1707 = vpop.f32.mrb[0].mxu0
        %v1708 = vadd.f32 0.0, %v1707
        %v1709 = vpop.f32.mrb[0].mxu0
        %1710 = vmatprep.mubr.f32.mxu0 0.0
        %1711 = vmatmul.mubr.f32.gmra.mrb[0].mxu0 %v1263
        %v1712 = vpop.f32.mrb[0].mxu0
        %v1713 = vadd.f32 0.0, %v1712
        %v1714 = vpop.f32.mrb[0].mxu0
        %1715 = vmatprep.mubr.f32.mxu0 0.0
        %1716 = vmatmul.mubr.f32.gmra.mrb[0].mxu0 %v1265
        %v1717 = vpop.f32.mrb[0].mxu0
        %v1718 = vadd.f32 0.0, %v1717
        %v1719 = vpop.f32.mrb[0].mxu0
        %1720 = vmatprep.mubr.f32.mxu0 0.0
        %1721 = vmatmul.mubr.f32.gmra.mrb[0].mxu0 %v1267
        %v1722 = vpop.f32.mrb[0].mxu0
        %v1723 = vadd.f32 0.0, %v1722
        %v1724 = vpop.f32.mrb[0].mxu0
        %1725 = vmatprep.mubr.f32.mxu0 0.0
        %1726 = vmatmul.mubr.f32.gmra.mrb[0].mxu0 %v1269
        %v1727 = vpop.f32.mrb[0].mxu0
        %v1728 = vadd.f32 0.0, %v1727
        %v1729 = vpop.f32.mrb[0].mxu0
        %1730 = vmatprep.mubr.f32.mxu0 0.0
        %1731 = vmatmul.mubr.f32.gmra.mrb[0].mxu0 %v1271
        %v1732 = vpop.f32.mrb[0].mxu0
        %v1733 = vadd.f32 0.0, %v1732
        %v1734 = vpop.f32.mrb[0].mxu0
        %1735 = vmatprep.mubr.f32.mxu0 0.0
        %1736 = vmatmul.mubr.f32.gmra.mrb[0].mxu0 %v1273
        %v1737 = vpop.f32.mrb[0].mxu0
        %v1738 = vadd.f32 0.0, %v1737
        %v1739 = vpop.f32.mrb[0].mxu0
        %1740 = vmatprep.mubr.f32.mxu0 0.0
        %1741 = vmatmul.mubr.f32.gmra.mrb[0].mxu0 %v1275
        %v1742 = vpop.f32.mrb[0].mxu0
        %v1743 = vadd.f32 0.0, %v1742
        %v1744 = vpop.f32.mrb[0].mxu0
        %1745 = vmatprep.mubr.f32.mxu0 0.0
        %1746 = vmatmul.mubr.f32.gmra.mrb[0].mxu0 %v1277
        %v1747 = vpop.f32.mrb[0].mxu0
        %v1748 = vadd.f32 0.0, %v1747
        %v1749 = vpop.f32.mrb[0].mxu0
        %1750 = vmatprep.mubr.f32.mxu0 0.0
        %1751 = vmatmul.mubr.f32.gmra.mrb[0].mxu0 %v1279
        %v1752 = vpop.f32.mrb[0].mxu0
        %v1753 = vadd.f32 0.0, %v1752
        %v1754 = vpop.f32.mrb[0].mxu0
        %1755 = vmatprep.mubr.f32.mxu0 0.0
        %1756 = vmatmul.mubr.f32.gmra.mrb[0].mxu0 %v1281
        %v1757 = vpop.f32.mrb[0].mxu0
        %v1758 = vadd.f32 0.0, %v1757
        %v1759 = vpop.f32.mrb[0].mxu0
        %1760 = vmatprep.mubr.f32.mxu0 0.0
        %1761 = vmatmul.mubr.f32.gmra.mrb[0].mxu0 %v1283
        %v1762 = vpop.f32.mrb[0].mxu0
        %v1763 = vadd.f32 0.0, %v1762
        %v1764 = vpop.f32.mrb[0].mxu0
        %1765 = vmatprep.mubr.f32.mxu0 0.0
        %1766 = vmatmul.mubr.f32.gmra.mrb[0].mxu0 %v1285
        %v1767 = vpop.f32.mrb[0].mxu0
        %v1768 = vadd.f32 0.0, %v1767
        %v1769 = vpop.f32.mrb[0].mxu0
        %1770 = vmatprep.mubr.f32.mxu0 0.0
        %1771 = vmatmul.mubr.f32.gmra.mrb[0].mxu0 %v1287
        %v1772 = vpop.f32.mrb[0].mxu0
        %v1773 = vadd.f32 0.0, %v1772
        %v1774 = vpop.f32.mrb[0].mxu0
        %1775 = vmatprep.mubr.f32.mxu0 0.0
        %1776 = vmatmul.mubr.f32.gmra.mrb[0].mxu0 %v1289
        %v1777 = vpop.f32.mrb[0].mxu0
        %v1778 = vadd.f32 0.0, %v1777
        %v1779 = vpop.f32.mrb[0].mxu0
        %1780 = vmatprep.mubr.f32.mxu0 0.0
        %1781 = vmatmul.mubr.f32.gmra.mrb[0].mxu0 %v1559
        %v1782 = vpop.f32.mrb[0].mxu0
        %v1783 = vadd.f32 0.0, %v1782
        %v1784 = vpop.f32.mrb[0].mxu0
        %1785 = vmatprep.mubr.f32.mxu0 0.0
        %1786 = vmatmul.mubr.f32.gmra.mrb[0].mxu0 %v1561
        %v1787 = vpop.f32.mrb[0].mxu0
        %v1788 = vadd.f32 0.0, %v1787
        %v1789 = vpop.f32.mrb[0].mxu0
        %1790 = vdwg.mxu0
        %v1791 = vadd.f32 %v1519, %v1633
        %v1792 = vadd.f32 %v1520, %v1638
        %v1793 = vadd.f32 %v1521, %v1643
        %v1794 = vadd.f32 %v1522, %v1648
        %v1795 = vadd.f32 %v1523, %v1653
        %v1796 = vadd.f32 %v1524, %v1658
        %v1797 = vadd.f32 %v1525, %v1663
        %v1798 = vadd.f32 %v1526, %v1668
        %v1799 = vadd.f32 %v1527, %v1673
        %v1800 = vadd.f32 %v1528, %v1678
        %v1801 = vadd.f32 %v1529, %v1683
        %v1802 = vadd.f32 %v1530, %v1688
        %v1803 = vadd.f32 %v1531, %v1693
        %v1804 = vadd.f32 %v1532, %v1698
        %v1805 = vadd.f32 %v1533, %v1703
        %v1806 = vadd.f32 %v1534, %v1708
        %v1807 = vadd.f32 %v1535, %v1713
        %v1808 = vadd.f32 %v1536, %v1718
        %v1809 = vadd.f32 %v1537, %v1723
        %v1810 = vadd.f32 %v1538, %v1728
        %v1811 = vadd.f32 %v1539, %v1733
        %v1812 = vadd.f32 %v1540, %v1738
        %v1813 = vadd.f32 %v1541, %v1743
        %v1814 = vadd.f32 %v1542, %v1748
        %v1815 = vadd.f32 %v1543, %v1753
        %v1816 = vadd.f32 %v1544, %v1758
        %v1817 = vadd.f32 %v1545, %v1763
        %v1818 = vadd.f32 %v1546, %v1768
        %v1819 = vadd.f32 %v1547, %v1773
        %v1820 = vadd.f32 %v1548, %v1778
        %v1821 = vadd.f32 %v1549, %v1783
        %v1822 = vadd.f32 %v1550, %v1788
        %v1824 = vrot.slane %v294, 1
        %v1825 = vrot.slane %v295, 1
        %v1826 = vsel %vm1144, %v1824, %v1825
        %v1827 = vrot.slane %v296, 1
        %v1828 = vsel %vm1144, %v1825, %v1827
        %s1829 = scalar_lea.vmem %s238, 28
        %v1830 = vld [vmem:[%s1829] sm:$0xf]
        %v1831 = vsel %vm300, %v1826, 0
        %v1833 = vsel %vm300, %v1828, 0
        %v1836 = vsel %vm397, %v1830, 0
        %1838 = vmatprep.subr.mxu0 0.0
        %1839 = vmatpush1.msra.mxu0 %v1836
        %1840 = vmatprep.subr.mxu0 0.0
        %1841 = vmatpush1.msra.mxu0 0.0
        %1842 = vmatprep.subr.mxu0 0.0
        %1843 = vmatpush1.msra.mxu0 0.0
        %1844 = vmatprep.subr.mxu0 0.0
        %1845 = vmatpush1.msra.mxu0 0.0
        %1846 = vmatprep.subr.mxu0 0.0
        %1847 = vmatpush1.msra.mxu0 0.0
        %1848 = vmatprep.subr.mxu0 0.0
        %1849 = vmatpush1.msra.mxu0 0.0
        %1850 = vmatprep.subr.mxu0 0.0
        %1851 = vmatpush1.msra.mxu0 0.0
        %1852 = vmatprep.subr.mxu0 0.0
        %1853 = vmatpush1.msra.mxu0 0.0
        %1854 = vmatprep.subr.mxu0 0.0
        %1855 = vmatpush1.msra.mxu0 0.0
        %1856 = vmatprep.subr.mxu0 0.0
        %1857 = vmatpush1.msra.mxu0 0.0
        %1858 = vmatprep.subr.mxu0 0.0
        %1859 = vmatpush1.msra.mxu0 0.0
        %1860 = vmatprep.subr.mxu0 0.0
        %1861 = vmatpush1.msra.mxu0 0.0
        %1862 = vmatprep.subr.mxu0 0.0
        %1863 = vmatpush1.msra.mxu0 0.0
        %1864 = vmatprep.subr.mxu0 0.0
        %1865 = vmatpush1.msra.mxu0 0.0
        %1866 = vmatprep.subr.mxu0 0.0
        %1867 = vmatpush1.msra.mxu0 0.0
        %1868 = vmatprep.subr.mxu0 0.0
        %1869 = vmatpush1.msra.mxu0 0.0
        %1870 = vmatprep.subr.mxu0 0.0
        %1871 = vmatpush1.msra.mxu0 0.0
        %1872 = vmatprep.subr.mxu0 0.0
        %1873 = vmatpush1.msra.mxu0 0.0
        %1874 = vmatprep.subr.mxu0 0.0
        %1875 = vmatpush1.msra.mxu0 0.0
        %1876 = vmatprep.subr.mxu0 0.0
        %1877 = vmatpush1.msra.mxu0 0.0
        %1878 = vmatprep.subr.mxu0 0.0
        %1879 = vmatpush1.msra.mxu0 0.0
        %1880 = vmatprep.subr.mxu0 0.0
        %1881 = vmatpush1.msra.mxu0 0.0
        %1882 = vmatprep.subr.mxu0 0.0
        %1883 = vmatpush1.msra.mxu0 0.0
        %1884 = vmatprep.subr.mxu0 0.0
        %1885 = vmatpush1.msra.mxu0 0.0
        %1886 = vmatprep.subr.mxu0 0.0
        %1887 = vmatpush1.msra.mxu0 0.0
        %1888 = vmatprep.subr.mxu0 0.0
        %1889 = vmatpush1.msra.mxu0 0.0
        %1890 = vmatprep.subr.mxu0 0.0
        %1891 = vmatpush1.msra.mxu0 0.0
        %1892 = vmatprep.subr.mxu0 0.0
        %1893 = vmatpush1.msra.mxu0 0.0
        %1894 = vmatprep.subr.mxu0 0.0
        %1895 = vmatpush1.msra.mxu0 0.0
        %1896 = vmatprep.subr.mxu0 0.0
        %1897 = vmatpush1.msra.mxu0 0.0
        %1898 = vmatprep.subr.mxu0 0.0
        %1899 = vmatpush1.msra.mxu0 0.0
        %1900 = vmatprep.subr.mxu0 0.0
        %1901 = vmatpush1.msra.mxu0 0.0
        %1902 = vmatprep.mubr.f32.mxu0 0.0
        %1903 = vmatmul.mubr.f32.gmra.mrb[0].mxu0 %v1235
        %v1904 = vpop.f32.mrb[0].mxu0
        %v1905 = vadd.f32 0.0, %v1904
        %v1906 = vpop.f32.mrb[0].mxu0
        %1907 = vmatprep.mubr.f32.mxu0 0.0
        %1908 = vmatmul.mubr.f32.gmra.mrb[0].mxu0 %v1237
        %v1909 = vpop.f32.mrb[0].mxu0
        %v1910 = vadd.f32 0.0, %v1909
        %v1911 = vpop.f32.mrb[0].mxu0
        %1912 = vmatprep.mubr.f32.mxu0 0.0
        %1913 = vmatmul.mubr.f32.gmra.mrb[0].mxu0 %v1239
        %v1914 = vpop.f32.mrb[0].mxu0
        %v1915 = vadd.f32 0.0, %v1914
        %v1916 = vpop.f32.mrb[0].mxu0
        %1917 = vmatprep.mubr.f32.mxu0 0.0
        %1918 = vmatmul.mubr.f32.gmra.mrb[0].mxu0 %v1241
        %v1919 = vpop.f32.mrb[0].mxu0
        %v1920 = vadd.f32 0.0, %v1919
        %v1921 = vpop.f32.mrb[0].mxu0
        %1922 = vmatprep.mubr.f32.mxu0 0.0
        %1923 = vmatmul.mubr.f32.gmra.mrb[0].mxu0 %v1243
        %v1924 = vpop.f32.mrb[0].mxu0
        %v1925 = vadd.f32 0.0, %v1924
        %v1926 = vpop.f32.mrb[0].mxu0
        %1927 = vmatprep.mubr.f32.mxu0 0.0
        %1928 = vmatmul.mubr.f32.gmra.mrb[0].mxu0 %v1245
        %v1929 = vpop.f32.mrb[0].mxu0
        %v1930 = vadd.f32 0.0, %v1929
        %v1931 = vpop.f32.mrb[0].mxu0
        %1932 = vmatprep.mubr.f32.mxu0 0.0
        %1933 = vmatmul.mubr.f32.gmra.mrb[0].mxu0 %v1247
        %v1934 = vpop.f32.mrb[0].mxu0
        %v1935 = vadd.f32 0.0, %v1934
        %v1936 = vpop.f32.mrb[0].mxu0
        %1937 = vmatprep.mubr.f32.mxu0 0.0
        %1938 = vmatmul.mubr.f32.gmra.mrb[0].mxu0 %v1249
        %v1939 = vpop.f32.mrb[0].mxu0
        %v1940 = vadd.f32 0.0, %v1939
        %v1941 = vpop.f32.mrb[0].mxu0
        %1942 = vmatprep.mubr.f32.mxu0 0.0
        %1943 = vmatmul.mubr.f32.gmra.mrb[0].mxu0 %v1251
        %v1944 = vpop.f32.mrb[0].mxu0
        %v1945 = vadd.f32 0.0, %v1944
        %v1946 = vpop.f32.mrb[0].mxu0
        %1947 = vmatprep.mubr.f32.mxu0 0.0
        %1948 = vmatmul.mubr.f32.gmra.mrb[0].mxu0 %v1253
        %v1949 = vpop.f32.mrb[0].mxu0
        %v1950 = vadd.f32 0.0, %v1949
        %v1951 = vpop.f32.mrb[0].mxu0
        %1952 = vmatprep.mubr.f32.mxu0 0.0
        %1953 = vmatmul.mubr.f32.gmra.mrb[0].mxu0 %v1255
        %v1954 = vpop.f32.mrb[0].mxu0
        %v1955 = vadd.f32 0.0, %v1954
        %v1956 = vpop.f32.mrb[0].mxu0
        %1957 = vmatprep.mubr.f32.mxu0 0.0
        %1958 = vmatmul.mubr.f32.gmra.mrb[0].mxu0 %v1257
        %v1959 = vpop.f32.mrb[0].mxu0
        %v1960 = vadd.f32 0.0, %v1959
        %v1961 = vpop.f32.mrb[0].mxu0
        %1962 = vmatprep.mubr.f32.mxu0 0.0
        %1963 = vmatmul.mubr.f32.gmra.mrb[0].mxu0 %v1259
        %v1964 = vpop.f32.mrb[0].mxu0
        %v1965 = vadd.f32 0.0, %v1964
        %v1966 = vpop.f32.mrb[0].mxu0
        %1967 = vmatprep.mubr.f32.mxu0 0.0
        %1968 = vmatmul.mubr.f32.gmra.mrb[0].mxu0 %v1261
        %v1969 = vpop.f32.mrb[0].mxu0
        %v1970 = vadd.f32 0.0, %v1969
        %v1971 = vpop.f32.mrb[0].mxu0
        %1972 = vmatprep.mubr.f32.mxu0 0.0
        %1973 = vmatmul.mubr.f32.gmra.mrb[0].mxu0 %v1263
        %v1974 = vpop.f32.mrb[0].mxu0
        %v1975 = vadd.f32 0.0, %v1974
        %v1976 = vpop.f32.mrb[0].mxu0
        %1977 = vmatprep.mubr.f32.mxu0 0.0
        %1978 = vmatmul.mubr.f32.gmra.mrb[0].mxu0 %v1265
        %v1979 = vpop.f32.mrb[0].mxu0
        %v1980 = vadd.f32 0.0, %v1979
        %v1981 = vpop.f32.mrb[0].mxu0
        %1982 = vmatprep.mubr.f32.mxu0 0.0
        %1983 = vmatmul.mubr.f32.gmra.mrb[0].mxu0 %v1267
        %v1984 = vpop.f32.mrb[0].mxu0
        %v1985 = vadd.f32 0.0, %v1984
        %v1986 = vpop.f32.mrb[0].mxu0
        %1987 = vmatprep.mubr.f32.mxu0 0.0
        %1988 = vmatmul.mubr.f32.gmra.mrb[0].mxu0 %v1269
        %v1989 = vpop.f32.mrb[0].mxu0
        %v1990 = vadd.f32 0.0, %v1989
        %v1991 = vpop.f32.mrb[0].mxu0
        %1992 = vmatprep.mubr.f32.mxu0 0.0
        %1993 = vmatmul.mubr.f32.gmra.mrb[0].mxu0 %v1271
        %v1994 = vpop.f32.mrb[0].mxu0
        %v1995 = vadd.f32 0.0, %v1994
        %v1996 = vpop.f32.mrb[0].mxu0
        %1997 = vmatprep.mubr.f32.mxu0 0.0
        %1998 = vmatmul.mubr.f32.gmra.mrb[0].mxu0 %v1273
        %v1999 = vpop.f32.mrb[0].mxu0
        %v2000 = vadd.f32 0.0, %v1999
        %v2001 = vpop.f32.mrb[0].mxu0
        %2002 = vmatprep.mubr.f32.mxu0 0.0
        %2003 = vmatmul.mubr.f32.gmra.mrb[0].mxu0 %v1275
        %v2004 = vpop.f32.mrb[0].mxu0
        %v2005 = vadd.f32 0.0, %v2004
        %v2006 = vpop.f32.mrb[0].mxu0
        %2007 = vmatprep.mubr.f32.mxu0 0.0
        %2008 = vmatmul.mubr.f32.gmra.mrb[0].mxu0 %v1277
        %v2009 = vpop.f32.mrb[0].mxu0
        %v2010 = vadd.f32 0.0, %v2009
        %v2011 = vpop.f32.mrb[0].mxu0
        %2012 = vmatprep.mubr.f32.mxu0 0.0
        %2013 = vmatmul.mubr.f32.gmra.mrb[0].mxu0 %v1279
        %v2014 = vpop.f32.mrb[0].mxu0
        %v2015 = vadd.f32 0.0, %v2014
        %v2016 = vpop.f32.mrb[0].mxu0
        %2017 = vmatprep.mubr.f32.mxu0 0.0
        %2018 = vmatmul.mubr.f32.gmra.mrb[0].mxu0 %v1281
        %v2019 = vpop.f32.mrb[0].mxu0
        %v2020 = vadd.f32 0.0, %v2019
        %v2021 = vpop.f32.mrb[0].mxu0
        %2022 = vmatprep.mubr.f32.mxu0 0.0
        %2023 = vmatmul.mubr.f32.gmra.mrb[0].mxu0 %v1283
        %v2024 = vpop.f32.mrb[0].mxu0
        %v2025 = vadd.f32 0.0, %v2024
        %v2026 = vpop.f32.mrb[0].mxu0
        %2027 = vmatprep.mubr.f32.mxu0 0.0
        %2028 = vmatmul.mubr.f32.gmra.mrb[0].mxu0 %v1285
        %v2029 = vpop.f32.mrb[0].mxu0
        %v2030 = vadd.f32 0.0, %v2029
        %v2031 = vpop.f32.mrb[0].mxu0
        %2032 = vmatprep.mubr.f32.mxu0 0.0
        %2033 = vmatmul.mubr.f32.gmra.mrb[0].mxu0 %v1287
        %v2034 = vpop.f32.mrb[0].mxu0
        %v2035 = vadd.f32 0.0, %v2034
        %v2036 = vpop.f32.mrb[0].mxu0
        %2037 = vmatprep.mubr.f32.mxu0 0.0
        %2038 = vmatmul.mubr.f32.gmra.mrb[0].mxu0 %v1289
        %v2039 = vpop.f32.mrb[0].mxu0
        %v2040 = vadd.f32 0.0, %v2039
        %v2041 = vpop.f32.mrb[0].mxu0
        %2042 = vmatprep.mubr.f32.mxu0 0.0
        %2043 = vmatmul.mubr.f32.gmra.mrb[0].mxu0 %v1559
        %v2044 = vpop.f32.mrb[0].mxu0
        %v2045 = vadd.f32 0.0, %v2044
        %v2046 = vpop.f32.mrb[0].mxu0
        %2047 = vmatprep.mubr.f32.mxu0 0.0
        %2048 = vmatmul.mubr.f32.gmra.mrb[0].mxu0 %v1561
        %v2049 = vpop.f32.mrb[0].mxu0
        %v2050 = vadd.f32 0.0, %v2049
        %v2051 = vpop.f32.mrb[0].mxu0
        %2052 = vmatprep.mubr.f32.mxu0 0.0
        %2053 = vmatmul.mubr.f32.gmra.mrb[0].mxu0 %v1831
        %v2054 = vpop.f32.mrb[0].mxu0
        %v2055 = vadd.f32 0.0, %v2054
        %v2056 = vpop.f32.mrb[0].mxu0
        %2057 = vmatprep.mubr.f32.mxu0 0.0
        %2058 = vmatmul.mubr.f32.gmra.mrb[0].mxu0 %v1833
        %v2059 = vpop.f32.mrb[0].mxu0
        %v2060 = vadd.f32 0.0, %v2059
        %v2061 = vpop.f32.mrb[0].mxu0
        %2062 = vdwg.mxu0
        %v2063 = vadd.f32 %v1791, %v1905
        %v2064 = vadd.f32 %v1792, %v1910
        %v2065 = vadd.f32 %v1793, %v1915
        %v2066 = vadd.f32 %v1794, %v1920
        %v2067 = vadd.f32 %v1795, %v1925
        %v2068 = vadd.f32 %v1796, %v1930
        %v2069 = vadd.f32 %v1797, %v1935
        %v2070 = vadd.f32 %v1798, %v1940
        %v2071 = vadd.f32 %v1799, %v1945
        %v2072 = vadd.f32 %v1800, %v1950
        %v2073 = vadd.f32 %v1801, %v1955
        %v2074 = vadd.f32 %v1802, %v1960
        %v2075 = vadd.f32 %v1803, %v1965
        %v2076 = vadd.f32 %v1804, %v1970
        %v2077 = vadd.f32 %v1805, %v1975
        %v2078 = vadd.f32 %v1806, %v1980
        %v2079 = vadd.f32 %v1807, %v1985
        %v2080 = vadd.f32 %v1808, %v1990
        %v2081 = vadd.f32 %v1809, %v1995
        %v2082 = vadd.f32 %v1810, %v2000
        %v2083 = vadd.f32 %v1811, %v2005
        %v2084 = vadd.f32 %v1812, %v2010
        %v2085 = vadd.f32 %v1813, %v2015
        %v2086 = vadd.f32 %v1814, %v2020
        %v2087 = vadd.f32 %v1815, %v2025
        %v2088 = vadd.f32 %v1816, %v2030
        %v2089 = vadd.f32 %v1817, %v2035
        %v2090 = vadd.f32 %v1818, %v2040
        %v2091 = vadd.f32 %v1819, %v2045
        %v2092 = vadd.f32 %v1820, %v2050
        %v2093 = vadd.f32 %v1821, %v2055
        %v2094 = vadd.f32 %v1822, %v2060
        %vm2095 = vcmask 1045504
        %v2096 = vrot.slane %v243, 2
        %v2097 = vrot.slane %v244, 2
        %v2098 = vsel %vm2095, %v2096, %v2097
        %v2099 = vrot.slane %v245, 2
        %v2100 = vsel %vm2095, %v2097, %v2099
        %v2101 = vrot.slane %v246, 2
        %v2102 = vrot.slane %v247, 2
        %v2103 = vsel %vm2095, %v2101, %v2102
        %v2104 = vrot.slane %v248, 2
        %v2105 = vsel %vm2095, %v2102, %v2104
        %v2106 = vrot.slane %v249, 2
        %v2107 = vrot.slane %v250, 2
        %v2108 = vsel %vm2095, %v2106, %v2107
        %v2109 = vrot.slane %v251, 2
        %v2110 = vsel %vm2095, %v2107, %v2109
        %v2111 = vrot.slane %v252, 2
        %v2112 = vrot.slane %v253, 2
        %v2113 = vsel %vm2095, %v2111, %v2112
        %v2114 = vrot.slane %v254, 2
        %v2115 = vsel %vm2095, %v2112, %v2114
        %v2116 = vrot.slane %v255, 2
        %v2117 = vrot.slane %v256, 2
        %v2118 = vsel %vm2095, %v2116, %v2117
        %v2119 = vrot.slane %v257, 2
        %v2120 = vsel %vm2095, %v2117, %v2119
        %v2121 = vrot.slane %v258, 2
        %v2122 = vrot.slane %v259, 2
        %v2123 = vsel %vm2095, %v2121, %v2122
        %v2124 = vrot.slane %v260, 2
        %v2125 = vsel %vm2095, %v2122, %v2124
        %v2126 = vrot.slane %v261, 2
        %v2127 = vrot.slane %v262, 2
        %v2128 = vsel %vm2095, %v2126, %v2127
        %v2129 = vrot.slane %v263, 2
        %v2130 = vsel %vm2095, %v2127, %v2129
        %v2131 = vrot.slane %v264, 2
        %v2132 = vrot.slane %v265, 2
        %v2133 = vsel %vm2095, %v2131, %v2132
        %v2134 = vrot.slane %v266, 2
        %v2135 = vsel %vm2095, %v2132, %v2134
        %v2136 = vrot.slane %v267, 2
        %v2137 = vrot.slane %v268, 2
        %v2138 = vsel %vm2095, %v2136, %v2137
        %v2139 = vrot.slane %v269, 2
        %v2140 = vsel %vm2095, %v2137, %v2139
        %v2141 = vrot.slane %v270, 2
        %v2142 = vrot.slane %v271, 2
        %v2143 = vsel %vm2095, %v2141, %v2142
        %v2144 = vrot.slane %v272, 2
        %v2145 = vsel %vm2095, %v2142, %v2144
        %v2146 = vrot.slane %v273, 2
        %v2147 = vrot.slane %v274, 2
        %v2148 = vsel %vm2095, %v2146, %v2147
        %v2149 = vrot.slane %v275, 2
        %v2150 = vsel %vm2095, %v2147, %v2149
        %v2151 = vrot.slane %v276, 2
        %v2152 = vrot.slane %v277, 2
        %v2153 = vsel %vm2095, %v2151, %v2152
        %v2154 = vrot.slane %v278, 2
        %v2155 = vsel %vm2095, %v2152, %v2154
        %v2156 = vrot.slane %v279, 2
        %v2157 = vrot.slane %v280, 2
        %v2158 = vsel %vm2095, %v2156, %v2157
        %v2159 = vrot.slane %v281, 2
        %v2160 = vsel %vm2095, %v2157, %v2159
        %v2161 = vrot.slane %v282, 2
        %v2162 = vrot.slane %v283, 2
        %v2163 = vsel %vm2095, %v2161, %v2162
        %v2164 = vrot.slane %v284, 2
        %v2165 = vsel %vm2095, %v2162, %v2164
        %v2166 = vrot.slane %v285, 2
        %v2167 = vrot.slane %v286, 2
        %v2168 = vsel %vm2095, %v2166, %v2167
        %v2169 = vrot.slane %v287, 2
        %v2170 = vsel %vm2095, %v2167, %v2169
        %v2171 = vrot.slane %v288, 2
        %v2172 = vrot.slane %v289, 2
        %v2173 = vsel %vm2095, %v2171, %v2172
        %v2174 = vrot.slane %v290, 2
        %v2175 = vsel %vm2095, %v2172, %v2174
        %s2176 = scalar_lea.vmem %s238, 8
        %v2177 = vld [vmem:[%s2176] sm:$0xf]
        %v2178 = vsel %vm300, %v2098, 0
        %v2180 = vsel %vm300, %v2100, 0
        %v2182 = vsel %vm300, %v2103, 0
        %v2184 = vsel %vm300, %v2105, 0
        %v2186 = vsel %vm300, %v2108, 0
        %v2188 = vsel %vm300, %v2110, 0
        %v2190 = vsel %vm300, %v2113, 0
        %v2192 = vsel %vm300, %v2115, 0
        %v2194 = vsel %vm300, %v2118, 0
        %v2196 = vsel %vm300, %v2120, 0
        %v2198 = vsel %vm300, %v2123, 0
        %v2200 = vsel %vm300, %v2125, 0
        %v2202 = vsel %vm300, %v2128, 0
        %v2204 = vsel %vm300, %v2130, 0
        %v2206 = vsel %vm300, %v2133, 0
        %v2208 = vsel %vm300, %v2135, 0
        %v2210 = vsel %vm300, %v2138, 0
        %v2212 = vsel %vm300, %v2140, 0
        %v2214 = vsel %vm300, %v2143, 0
        %v2216 = vsel %vm300, %v2145, 0
        %v2218 = vsel %vm300, %v2148, 0
        %v2220 = vsel %vm300, %v2150, 0
        %v2222 = vsel %vm300, %v2153, 0
        %v2224 = vsel %vm300, %v2155, 0
        %v2226 = vsel %vm300, %v2158, 0
        %v2228 = vsel %vm300, %v2160, 0
        %v2230 = vsel %vm300, %v2163, 0
        %v2232 = vsel %vm300, %v2165, 0
        %v2234 = vsel %vm300, %v2168, 0
        %v2236 = vsel %vm300, %v2170, 0
        %v2238 = vsel %vm300, %v2173, 0
        %v2240 = vsel %vm300, %v2175, 0
        %v2243 = vsel %vm397, %v2177, 0
        %2245 = vmatprep.subr.mxu0 0.0
        %2246 = vmatpush1.msra.mxu0 %v2243
        %2247 = vmatprep.subr.mxu0 0.0
        %2248 = vmatpush1.msra.mxu0 0.0
        %2249 = vmatprep.subr.mxu0 0.0
        %2250 = vmatpush1.msra.mxu0 0.0
        %2251 = vmatprep.subr.mxu0 0.0
        %2252 = vmatpush1.msra.mxu0 0.0
        %2253 = vmatprep.subr.mxu0 0.0
        %2254 = vmatpush1.msra.mxu0 0.0
        %2255 = vmatprep.subr.mxu0 0.0
        %2256 = vmatpush1.msra.mxu0 0.0
        %2257 = vmatprep.subr.mxu0 0.0
        %2258 = vmatpush1.msra.mxu0 0.0
        %2259 = vmatprep.subr.mxu0 0.0
        %2260 = vmatpush1.msra.mxu0 0.0
        %2261 = vmatprep.subr.mxu0 0.0
        %2262 = vmatpush1.msra.mxu0 0.0
        %2263 = vmatprep.subr.mxu0 0.0
        %2264 = vmatpush1.msra.mxu0 0.0
        %2265 = vmatprep.subr.mxu0 0.0
        %2266 = vmatpush1.msra.mxu0 0.0
        %2267 = vmatprep.subr.mxu0 0.0
        %2268 = vmatpush1.msra.mxu0 0.0
        %2269 = vmatprep.subr.mxu0 0.0
        %2270 = vmatpush1.msra.mxu0 0.0
        %2271 = vmatprep.subr.mxu0 0.0
        %2272 = vmatpush1.msra.mxu0 0.0
        %2273 = vmatprep.subr.mxu0 0.0
        %2274 = vmatpush1.msra.mxu0 0.0
        %2275 = vmatprep.subr.mxu0 0.0
        %2276 = vmatpush1.msra.mxu0 0.0
        %2277 = vmatprep.subr.mxu0 0.0
        %2278 = vmatpush1.msra.mxu0 0.0
        %2279 = vmatprep.subr.mxu0 0.0
        %2280 = vmatpush1.msra.mxu0 0.0
        %2281 = vmatprep.subr.mxu0 0.0
        %2282 = vmatpush1.msra.mxu0 0.0
        %2283 = vmatprep.subr.mxu0 0.0
        %2284 = vmatpush1.msra.mxu0 0.0
        %2285 = vmatprep.subr.mxu0 0.0
        %2286 = vmatpush1.msra.mxu0 0.0
        %2287 = vmatprep.subr.mxu0 0.0
        %2288 = vmatpush1.msra.mxu0 0.0
        %2289 = vmatprep.subr.mxu0 0.0
        %2290 = vmatpush1.msra.mxu0 0.0
        %2291 = vmatprep.subr.mxu0 0.0
        %2292 = vmatpush1.msra.mxu0 0.0
        %2293 = vmatprep.subr.mxu0 0.0
        %2294 = vmatpush1.msra.mxu0 0.0
        %2295 = vmatprep.subr.mxu0 0.0
        %2296 = vmatpush1.msra.mxu0 0.0
        %2297 = vmatprep.subr.mxu0 0.0
        %2298 = vmatpush1.msra.mxu0 0.0
        %2299 = vmatprep.subr.mxu0 0.0
        %2300 = vmatpush1.msra.mxu0 0.0
        %2301 = vmatprep.subr.mxu0 0.0
        %2302 = vmatpush1.msra.mxu0 0.0
        %2303 = vmatprep.subr.mxu0 0.0
        %2304 = vmatpush1.msra.mxu0 0.0
        %2305 = vmatprep.subr.mxu0 0.0
        %2306 = vmatpush1.msra.mxu0 0.0
        %2307 = vmatprep.subr.mxu0 0.0
        %2308 = vmatpush1.msra.mxu0 0.0
        %2309 = vmatprep.mubr.f32.mxu0 0.0
        %2310 = vmatmul.mubr.f32.gmra.mrb[0].mxu0 %v2178
        %v2311 = vpop.f32.mrb[0].mxu0
        %v2312 = vadd.f32 0.0, %v2311
        %v2313 = vpop.f32.mrb[0].mxu0
        %2314 = vmatprep.mubr.f32.mxu0 0.0
        %2315 = vmatmul.mubr.f32.gmra.mrb[0].mxu0 %v2180
        %v2316 = vpop.f32.mrb[0].mxu0
        %v2317 = vadd.f32 0.0, %v2316
        %v2318 = vpop.f32.mrb[0].mxu0
        %2319 = vmatprep.mubr.f32.mxu0 0.0
        %2320 = vmatmul.mubr.f32.gmra.mrb[0].mxu0 %v2182
        %v2321 = vpop.f32.mrb[0].mxu0
        %v2322 = vadd.f32 0.0, %v2321
        %v2323 = vpop.f32.mrb[0].mxu0
        %2324 = vmatprep.mubr.f32.mxu0 0.0
        %2325 = vmatmul.mubr.f32.gmra.mrb[0].mxu0 %v2184
        %v2326 = vpop.f32.mrb[0].mxu0
        %v2327 = vadd.f32 0.0, %v2326
        %v2328 = vpop.f32.mrb[0].mxu0
        %2329 = vmatprep.mubr.f32.mxu0 0.0
        %2330 = vmatmul.mubr.f32.gmra.mrb[0].mxu0 %v2186
        %v2331 = vpop.f32.mrb[0].mxu0
        %v2332 = vadd.f32 0.0, %v2331
        %v2333 = vpop.f32.mrb[0].mxu0
        %2334 = vmatprep.mubr.f32.mxu0 0.0
        %2335 = vmatmul.mubr.f32.gmra.mrb[0].mxu0 %v2188
        %v2336 = vpop.f32.mrb[0].mxu0
        %v2337 = vadd.f32 0.0, %v2336
        %v2338 = vpop.f32.mrb[0].mxu0
        %2339 = vmatprep.mubr.f32.mxu0 0.0
        %2340 = vmatmul.mubr.f32.gmra.mrb[0].mxu0 %v2190
        %v2341 = vpop.f32.mrb[0].mxu0
        %v2342 = vadd.f32 0.0, %v2341
        %v2343 = vpop.f32.mrb[0].mxu0
        %2344 = vmatprep.mubr.f32.mxu0 0.0
        %2345 = vmatmul.mubr.f32.gmra.mrb[0].mxu0 %v2192
        %v2346 = vpop.f32.mrb[0].mxu0
        %v2347 = vadd.f32 0.0, %v2346
        %v2348 = vpop.f32.mrb[0].mxu0
        %2349 = vmatprep.mubr.f32.mxu0 0.0
        %2350 = vmatmul.mubr.f32.gmra.mrb[0].mxu0 %v2194
        %v2351 = vpop.f32.mrb[0].mxu0
        %v2352 = vadd.f32 0.0, %v2351
        %v2353 = vpop.f32.mrb[0].mxu0
        %2354 = vmatprep.mubr.f32.mxu0 0.0
        %2355 = vmatmul.mubr.f32.gmra.mrb[0].mxu0 %v2196
        %v2356 = vpop.f32.mrb[0].mxu0
        %v2357 = vadd.f32 0.0, %v2356
        %v2358 = vpop.f32.mrb[0].mxu0
        %2359 = vmatprep.mubr.f32.mxu0 0.0
        %2360 = vmatmul.mubr.f32.gmra.mrb[0].mxu0 %v2198
        %v2361 = vpop.f32.mrb[0].mxu0
        %v2362 = vadd.f32 0.0, %v2361
        %v2363 = vpop.f32.mrb[0].mxu0
        %2364 = vmatprep.mubr.f32.mxu0 0.0
        %2365 = vmatmul.mubr.f32.gmra.mrb[0].mxu0 %v2200
        %v2366 = vpop.f32.mrb[0].mxu0
        %v2367 = vadd.f32 0.0, %v2366
        %v2368 = vpop.f32.mrb[0].mxu0
        %2369 = vmatprep.mubr.f32.mxu0 0.0
        %2370 = vmatmul.mubr.f32.gmra.mrb[0].mxu0 %v2202
        %v2371 = vpop.f32.mrb[0].mxu0
        %v2372 = vadd.f32 0.0, %v2371
        %v2373 = vpop.f32.mrb[0].mxu0
        %2374 = vmatprep.mubr.f32.mxu0 0.0
        %2375 = vmatmul.mubr.f32.gmra.mrb[0].mxu0 %v2204
        %v2376 = vpop.f32.mrb[0].mxu0
        %v2377 = vadd.f32 0.0, %v2376
        %v2378 = vpop.f32.mrb[0].mxu0
        %2379 = vmatprep.mubr.f32.mxu0 0.0
        %2380 = vmatmul.mubr.f32.gmra.mrb[0].mxu0 %v2206
        %v2381 = vpop.f32.mrb[0].mxu0
        %v2382 = vadd.f32 0.0, %v2381
        %v2383 = vpop.f32.mrb[0].mxu0
        %2384 = vmatprep.mubr.f32.mxu0 0.0
        %2385 = vmatmul.mubr.f32.gmra.mrb[0].mxu0 %v2208
        %v2386 = vpop.f32.mrb[0].mxu0
        %v2387 = vadd.f32 0.0, %v2386
        %v2388 = vpop.f32.mrb[0].mxu0
        %2389 = vmatprep.mubr.f32.mxu0 0.0
        %2390 = vmatmul.mubr.f32.gmra.mrb[0].mxu0 %v2210
        %v2391 = vpop.f32.mrb[0].mxu0
        %v2392 = vadd.f32 0.0, %v2391
        %v2393 = vpop.f32.mrb[0].mxu0
        %2394 = vmatprep.mubr.f32.mxu0 0.0
        %2395 = vmatmul.mubr.f32.gmra.mrb[0].mxu0 %v2212
        %v2396 = vpop.f32.mrb[0].mxu0
        %v2397 = vadd.f32 0.0, %v2396
        %v2398 = vpop.f32.mrb[0].mxu0
        %2399 = vmatprep.mubr.f32.mxu0 0.0
        %2400 = vmatmul.mubr.f32.gmra.mrb[0].mxu0 %v2214
        %v2401 = vpop.f32.mrb[0].mxu0
        %v2402 = vadd.f32 0.0, %v2401
        %v2403 = vpop.f32.mrb[0].mxu0
        %2404 = vmatprep.mubr.f32.mxu0 0.0
        %2405 = vmatmul.mubr.f32.gmra.mrb[0].mxu0 %v2216
        %v2406 = vpop.f32.mrb[0].mxu0
        %v2407 = vadd.f32 0.0, %v2406
        %v2408 = vpop.f32.mrb[0].mxu0
        %2409 = vmatprep.mubr.f32.mxu0 0.0
        %2410 = vmatmul.mubr.f32.gmra.mrb[0].mxu0 %v2218
        %v2411 = vpop.f32.mrb[0].mxu0
        %v2412 = vadd.f32 0.0, %v2411
        %v2413 = vpop.f32.mrb[0].mxu0
        %2414 = vmatprep.mubr.f32.mxu0 0.0
        %2415 = vmatmul.mubr.f32.gmra.mrb[0].mxu0 %v2220
        %v2416 = vpop.f32.mrb[0].mxu0
        %v2417 = vadd.f32 0.0, %v2416
        %v2418 = vpop.f32.mrb[0].mxu0
        %2419 = vmatprep.mubr.f32.mxu0 0.0
        %2420 = vmatmul.mubr.f32.gmra.mrb[0].mxu0 %v2222
        %v2421 = vpop.f32.mrb[0].mxu0
        %v2422 = vadd.f32 0.0, %v2421
        %v2423 = vpop.f32.mrb[0].mxu0
        %2424 = vmatprep.mubr.f32.mxu0 0.0
        %2425 = vmatmul.mubr.f32.gmra.mrb[0].mxu0 %v2224
        %v2426 = vpop.f32.mrb[0].mxu0
        %v2427 = vadd.f32 0.0, %v2426
        %v2428 = vpop.f32.mrb[0].mxu0
        %2429 = vmatprep.mubr.f32.mxu0 0.0
        %2430 = vmatmul.mubr.f32.gmra.mrb[0].mxu0 %v2226
        %v2431 = vpop.f32.mrb[0].mxu0
        %v2432 = vadd.f32 0.0, %v2431
        %v2433 = vpop.f32.mrb[0].mxu0
        %2434 = vmatprep.mubr.f32.mxu0 0.0
        %2435 = vmatmul.mubr.f32.gmra.mrb[0].mxu0 %v2228
        %v2436 = vpop.f32.mrb[0].mxu0
        %v2437 = vadd.f32 0.0, %v2436
        %v2438 = vpop.f32.mrb[0].mxu0
        %2439 = vmatprep.mubr.f32.mxu0 0.0
        %2440 = vmatmul.mubr.f32.gmra.mrb[0].mxu0 %v2230
        %v2441 = vpop.f32.mrb[0].mxu0
        %v2442 = vadd.f32 0.0, %v2441
        %v2443 = vpop.f32.mrb[0].mxu0
        %2444 = vmatprep.mubr.f32.mxu0 0.0
        %2445 = vmatmul.mubr.f32.gmra.mrb[0].mxu0 %v2232
        %v2446 = vpop.f32.mrb[0].mxu0
        %v2447 = vadd.f32 0.0, %v2446
        %v2448 = vpop.f32.mrb[0].mxu0
        %2449 = vmatprep.mubr.f32.mxu0 0.0
        %2450 = vmatmul.mubr.f32.gmra.mrb[0].mxu0 %v2234
        %v2451 = vpop.f32.mrb[0].mxu0
        %v2452 = vadd.f32 0.0, %v2451
        %v2453 = vpop.f32.mrb[0].mxu0
        %2454 = vmatprep.mubr.f32.mxu0 0.0
        %2455 = vmatmul.mubr.f32.gmra.mrb[0].mxu0 %v2236
        %v2456 = vpop.f32.mrb[0].mxu0
        %v2457 = vadd.f32 0.0, %v2456
        %v2458 = vpop.f32.mrb[0].mxu0
        %2459 = vmatprep.mubr.f32.mxu0 0.0
        %2460 = vmatmul.mubr.f32.gmra.mrb[0].mxu0 %v2238
        %v2461 = vpop.f32.mrb[0].mxu0
        %v2462 = vadd.f32 0.0, %v2461
        %v2463 = vpop.f32.mrb[0].mxu0
        %2464 = vmatprep.mubr.f32.mxu0 0.0
        %2465 = vmatmul.mubr.f32.gmra.mrb[0].mxu0 %v2240
        %v2466 = vpop.f32.mrb[0].mxu0
        %v2467 = vadd.f32 0.0, %v2466
        %v2468 = vpop.f32.mrb[0].mxu0
        %2469 = vdwg.mxu0
        %v2470 = vadd.f32 %v2063, %v2312
        %v2471 = vadd.f32 %v2064, %v2317
        %v2472 = vadd.f32 %v2065, %v2322
        %v2473 = vadd.f32 %v2066, %v2327
        %v2474 = vadd.f32 %v2067, %v2332
        %v2475 = vadd.f32 %v2068, %v2337
        %v2476 = vadd.f32 %v2069, %v2342
        %v2477 = vadd.f32 %v2070, %v2347
        %v2478 = vadd.f32 %v2071, %v2352
        %v2479 = vadd.f32 %v2072, %v2357
        %v2480 = vadd.f32 %v2073, %v2362
        %v2481 = vadd.f32 %v2074, %v2367
        %v2482 = vadd.f32 %v2075, %v2372
        %v2483 = vadd.f32 %v2076, %v2377
        %v2484 = vadd.f32 %v2077, %v2382
        %v2485 = vadd.f32 %v2078, %v2387
        %v2486 = vadd.f32 %v2079, %v2392
        %v2487 = vadd.f32 %v2080, %v2397
        %v2488 = vadd.f32 %v2081, %v2402
        %v2489 = vadd.f32 %v2082, %v2407
        %v2490 = vadd.f32 %v2083, %v2412
        %v2491 = vadd.f32 %v2084, %v2417
        %v2492 = vadd.f32 %v2085, %v2422
        %v2493 = vadd.f32 %v2086, %v2427
        %v2494 = vadd.f32 %v2087, %v2432
        %v2495 = vadd.f32 %v2088, %v2437
        %v2496 = vadd.f32 %v2089, %v2442
        %v2497 = vadd.f32 %v2090, %v2447
        %v2498 = vadd.f32 %v2091, %v2452
        %v2499 = vadd.f32 %v2092, %v2457
        %v2500 = vadd.f32 %v2093, %v2462
        %v2501 = vadd.f32 %v2094, %v2467
        %v2502 = vrot.slane %v291, 2
        %v2503 = vrot.slane %v292, 2
        %v2504 = vsel %vm2095, %v2502, %v2503
        %v2505 = vrot.slane %v293, 2
        %v2506 = vsel %vm2095, %v2503, %v2505
        %s2507 = scalar_lea.vmem %s238, 20
        %v2508 = vld [vmem:[%s2507] sm:$0xf]
        %v2509 = vsel %vm300, %v2504, 0
        %v2511 = vsel %vm300, %v2506, 0
        %v2514 = vsel %vm397, %v2508, 0
        %2516 = vmatprep.subr.mxu0 0.0
        %2517 = vmatpush1.msra.mxu0 %v2514
        %2518 = vmatprep.subr.mxu0 0.0
        %2519 = vmatpush1.msra.mxu0 0.0
        %2520 = vmatprep.subr.mxu0 0.0
        %2521 = vmatpush1.msra.mxu0 0.0
        %2522 = vmatprep.subr.mxu0 0.0
        %2523 = vmatpush1.msra.mxu0 0.0
        %2524 = vmatprep.subr.mxu0 0.0
        %2525 = vmatpush1.msra.mxu0 0.0
        %2526 = vmatprep.subr.mxu0 0.0
        %2527 = vmatpush1.msra.mxu0 0.0
        %2528 = vmatprep.subr.mxu0 0.0
        %2529 = vmatpush1.msra.mxu0 0.0
        %2530 = vmatprep.subr.mxu0 0.0
        %2531 = vmatpush1.msra.mxu0 0.0
        %2532 = vmatprep.subr.mxu0 0.0
        %2533 = vmatpush1.msra.mxu0 0.0
        %2534 = vmatprep.subr.mxu0 0.0
        %2535 = vmatpush1.msra.mxu0 0.0
        %2536 = vmatprep.subr.mxu0 0.0
        %2537 = vmatpush1.msra.mxu0 0.0
        %2538 = vmatprep.subr.mxu0 0.0
        %2539 = vmatpush1.msra.mxu0 0.0
        %2540 = vmatprep.subr.mxu0 0.0
        %2541 = vmatpush1.msra.mxu0 0.0
        %2542 = vmatprep.subr.mxu0 0.0
        %2543 = vmatpush1.msra.mxu0 0.0
        %2544 = vmatprep.subr.mxu0 0.0
        %2545 = vmatpush1.msra.mxu0 0.0
        %2546 = vmatprep.subr.mxu0 0.0
        %2547 = vmatpush1.msra.mxu0 0.0
        %2548 = vmatprep.subr.mxu0 0.0
        %2549 = vmatpush1.msra.mxu0 0.0
        %2550 = vmatprep.subr.mxu0 0.0
        %2551 = vmatpush1.msra.mxu0 0.0
        %2552 = vmatprep.subr.mxu0 0.0
        %2553 = vmatpush1.msra.mxu0 0.0
        %2554 = vmatprep.subr.mxu0 0.0
        %2555 = vmatpush1.msra.mxu0 0.0
        %2556 = vmatprep.subr.mxu0 0.0
        %2557 = vmatpush1.msra.mxu0 0.0
        %2558 = vmatprep.subr.mxu0 0.0
        %2559 = vmatpush1.msra.mxu0 0.0
        %2560 = vmatprep.subr.mxu0 0.0
        %2561 = vmatpush1.msra.mxu0 0.0
        %2562 = vmatprep.subr.mxu0 0.0
        %2563 = vmatpush1.msra.mxu0 0.0
        %2564 = vmatprep.subr.mxu0 0.0
        %2565 = vmatpush1.msra.mxu0 0.0
        %2566 = vmatprep.subr.mxu0 0.0
        %2567 = vmatpush1.msra.mxu0 0.0
        %2568 = vmatprep.subr.mxu0 0.0
        %2569 = vmatpush1.msra.mxu0 0.0
        %2570 = vmatprep.subr.mxu0 0.0
        %2571 = vmatpush1.msra.mxu0 0.0
        %2572 = vmatprep.subr.mxu0 0.0
        %2573 = vmatpush1.msra.mxu0 0.0
        %2574 = vmatprep.subr.mxu0 0.0
        %2575 = vmatpush1.msra.mxu0 0.0
        %2576 = vmatprep.subr.mxu0 0.0
        %2577 = vmatpush1.msra.mxu0 0.0
        %2578 = vmatprep.subr.mxu0 0.0
        %2579 = vmatpush1.msra.mxu0 0.0
        %2580 = vmatprep.mubr.f32.mxu0 0.0
        %2581 = vmatmul.mubr.f32.gmra.mrb[0].mxu0 %v2182
        %v2582 = vpop.f32.mrb[0].mxu0
        %v2583 = vadd.f32 0.0, %v2582
        %v2584 = vpop.f32.mrb[0].mxu0
        %2585 = vmatprep.mubr.f32.mxu0 0.0
        %2586 = vmatmul.mubr.f32.gmra.mrb[0].mxu0 %v2184
        %v2587 = vpop.f32.mrb[0].mxu0
        %v2588 = vadd.f32 0.0, %v2587
        %v2589 = vpop.f32.mrb[0].mxu0
        %2590 = vmatprep.mubr.f32.mxu0 0.0
        %2591 = vmatmul.mubr.f32.gmra.mrb[0].mxu0 %v2186
        %v2592 = vpop.f32.mrb[0].mxu0
        %v2593 = vadd.f32 0.0, %v2592
        %v2594 = vpop.f32.mrb[0].mxu0
        %2595 = vmatprep.mubr.f32.mxu0 0.0
        %2596 = vmatmul.mubr.f32.gmra.mrb[0].mxu0 %v2188
        %v2597 = vpop.f32.mrb[0].mxu0
        %v2598 = vadd.f32 0.0, %v2597
        %v2599 = vpop.f32.mrb[0].mxu0
        %2600 = vmatprep.mubr.f32.mxu0 0.0
        %2601 = vmatmul.mubr.f32.gmra.mrb[0].mxu0 %v2190
        %v2602 = vpop.f32.mrb[0].mxu0
        %v2603 = vadd.f32 0.0, %v2602
        %v2604 = vpop.f32.mrb[0].mxu0
        %2605 = vmatprep.mubr.f32.mxu0 0.0
        %2606 = vmatmul.mubr.f32.gmra.mrb[0].mxu0 %v2192
        %v2607 = vpop.f32.mrb[0].mxu0
        %v2608 = vadd.f32 0.0, %v2607
        %v2609 = vpop.f32.mrb[0].mxu0
        %2610 = vmatprep.mubr.f32.mxu0 0.0
        %2611 = vmatmul.mubr.f32.gmra.mrb[0].mxu0 %v2194
        %v2612 = vpop.f32.mrb[0].mxu0
        %v2613 = vadd.f32 0.0, %v2612
        %v2614 = vpop.f32.mrb[0].mxu0
        %2615 = vmatprep.mubr.f32.mxu0 0.0
        %2616 = vmatmul.mubr.f32.gmra.mrb[0].mxu0 %v2196
        %v2617 = vpop.f32.mrb[0].mxu0
        %v2618 = vadd.f32 0.0, %v2617
        %v2619 = vpop.f32.mrb[0].mxu0
        %2620 = vmatprep.mubr.f32.mxu0 0.0
        %2621 = vmatmul.mubr.f32.gmra.mrb[0].mxu0 %v2198
        %v2622 = vpop.f32.mrb[0].mxu0
        %v2623 = vadd.f32 0.0, %v2622
        %v2624 = vpop.f32.mrb[0].mxu0
        %2625 = vmatprep.mubr.f32.mxu0 0.0
        %2626 = vmatmul.mubr.f32.gmra.mrb[0].mxu0 %v2200
        %v2627 = vpop.f32.mrb[0].mxu0
        %v2628 = vadd.f32 0.0, %v2627
        %v2629 = vpop.f32.mrb[0].mxu0
        %2630 = vmatprep.mubr.f32.mxu0 0.0
        %2631 = vmatmul.mubr.f32.gmra.mrb[0].mxu0 %v2202
        %v2632 = vpop.f32.mrb[0].mxu0
        %v2633 = vadd.f32 0.0, %v2632
        %v2634 = vpop.f32.mrb[0].mxu0
        %2635 = vmatprep.mubr.f32.mxu0 0.0
        %2636 = vmatmul.mubr.f32.gmra.mrb[0].mxu0 %v2204
        %v2637 = vpop.f32.mrb[0].mxu0
        %v2638 = vadd.f32 0.0, %v2637
        %v2639 = vpop.f32.mrb[0].mxu0
        %2640 = vmatprep.mubr.f32.mxu0 0.0
        %2641 = vmatmul.mubr.f32.gmra.mrb[0].mxu0 %v2206
        %v2642 = vpop.f32.mrb[0].mxu0
        %v2643 = vadd.f32 0.0, %v2642
        %v2644 = vpop.f32.mrb[0].mxu0
        %2645 = vmatprep.mubr.f32.mxu0 0.0
        %2646 = vmatmul.mubr.f32.gmra.mrb[0].mxu0 %v2208
        %v2647 = vpop.f32.mrb[0].mxu0
        %v2648 = vadd.f32 0.0, %v2647
        %v2649 = vpop.f32.mrb[0].mxu0
        %2650 = vmatprep.mubr.f32.mxu0 0.0
        %2651 = vmatmul.mubr.f32.gmra.mrb[0].mxu0 %v2210
        %v2652 = vpop.f32.mrb[0].mxu0
        %v2653 = vadd.f32 0.0, %v2652
        %v2654 = vpop.f32.mrb[0].mxu0
        %2655 = vmatprep.mubr.f32.mxu0 0.0
        %2656 = vmatmul.mubr.f32.gmra.mrb[0].mxu0 %v2212
        %v2657 = vpop.f32.mrb[0].mxu0
        %v2658 = vadd.f32 0.0, %v2657
        %v2659 = vpop.f32.mrb[0].mxu0
        %2660 = vmatprep.mubr.f32.mxu0 0.0
        %2661 = vmatmul.mubr.f32.gmra.mrb[0].mxu0 %v2214
        %v2662 = vpop.f32.mrb[0].mxu0
        %v2663 = vadd.f32 0.0, %v2662
        %v2664 = vpop.f32.mrb[0].mxu0
        %2665 = vmatprep.mubr.f32.mxu0 0.0
        %2666 = vmatmul.mubr.f32.gmra.mrb[0].mxu0 %v2216
        %v2667 = vpop.f32.mrb[0].mxu0
        %v2668 = vadd.f32 0.0, %v2667
        %v2669 = vpop.f32.mrb[0].mxu0
        %2670 = vmatprep.mubr.f32.mxu0 0.0
        %2671 = vmatmul.mubr.f32.gmra.mrb[0].mxu0 %v2218
        %v2672 = vpop.f32.mrb[0].mxu0
        %v2673 = vadd.f32 0.0, %v2672
        %v2674 = vpop.f32.mrb[0].mxu0
        %2675 = vmatprep.mubr.f32.mxu0 0.0
        %2676 = vmatmul.mubr.f32.gmra.mrb[0].mxu0 %v2220
        %v2677 = vpop.f32.mrb[0].mxu0
        %v2678 = vadd.f32 0.0, %v2677
        %v2679 = vpop.f32.mrb[0].mxu0
        %2680 = vmatprep.mubr.f32.mxu0 0.0
        %2681 = vmatmul.mubr.f32.gmra.mrb[0].mxu0 %v2222
        %v2682 = vpop.f32.mrb[0].mxu0
        %v2683 = vadd.f32 0.0, %v2682
        %v2684 = vpop.f32.mrb[0].mxu0
        %2685 = vmatprep.mubr.f32.mxu0 0.0
        %2686 = vmatmul.mubr.f32.gmra.mrb[0].mxu0 %v2224
        %v2687 = vpop.f32.mrb[0].mxu0
        %v2688 = vadd.f32 0.0, %v2687
        %v2689 = vpop.f32.mrb[0].mxu0
        %2690 = vmatprep.mubr.f32.mxu0 0.0
        %2691 = vmatmul.mubr.f32.gmra.mrb[0].mxu0 %v2226
        %v2692 = vpop.f32.mrb[0].mxu0
        %v2693 = vadd.f32 0.0, %v2692
        %v2694 = vpop.f32.mrb[0].mxu0
        %2695 = vmatprep.mubr.f32.mxu0 0.0
        %2696 = vmatmul.mubr.f32.gmra.mrb[0].mxu0 %v2228
        %v2697 = vpop.f32.mrb[0].mxu0
        %v2698 = vadd.f32 0.0, %v2697
        %v2699 = vpop.f32.mrb[0].mxu0
        %2700 = vmatprep.mubr.f32.mxu0 0.0
        %2701 = vmatmul.mubr.f32.gmra.mrb[0].mxu0 %v2230
        %v2702 = vpop.f32.mrb[0].mxu0
        %v2703 = vadd.f32 0.0, %v2702
        %v2704 = vpop.f32.mrb[0].mxu0
        %2705 = vmatprep.mubr.f32.mxu0 0.0
        %2706 = vmatmul.mubr.f32.gmra.mrb[0].mxu0 %v2232
        %v2707 = vpop.f32.mrb[0].mxu0
        %v2708 = vadd.f32 0.0, %v2707
        %v2709 = vpop.f32.mrb[0].mxu0
        %2710 = vmatprep.mubr.f32.mxu0 0.0
        %2711 = vmatmul.mubr.f32.gmra.mrb[0].mxu0 %v2234
        %v2712 = vpop.f32.mrb[0].mxu0
        %v2713 = vadd.f32 0.0, %v2712
        %v2714 = vpop.f32.mrb[0].mxu0
        %2715 = vmatprep.mubr.f32.mxu0 0.0
        %2716 = vmatmul.mubr.f32.gmra.mrb[0].mxu0 %v2236
        %v2717 = vpop.f32.mrb[0].mxu0
        %v2718 = vadd.f32 0.0, %v2717
        %v2719 = vpop.f32.mrb[0].mxu0
        %2720 = vmatprep.mubr.f32.mxu0 0.0
        %2721 = vmatmul.mubr.f32.gmra.mrb[0].mxu0 %v2238
        %v2722 = vpop.f32.mrb[0].mxu0
        %v2723 = vadd.f32 0.0, %v2722
        %v2724 = vpop.f32.mrb[0].mxu0
        %2725 = vmatprep.mubr.f32.mxu0 0.0
        %2726 = vmatmul.mubr.f32.gmra.mrb[0].mxu0 %v2240
        %v2727 = vpop.f32.mrb[0].mxu0
        %v2728 = vadd.f32 0.0, %v2727
        %v2729 = vpop.f32.mrb[0].mxu0
        %2730 = vmatprep.mubr.f32.mxu0 0.0
        %2731 = vmatmul.mubr.f32.gmra.mrb[0].mxu0 %v2509
        %v2732 = vpop.f32.mrb[0].mxu0
        %v2733 = vadd.f32 0.0, %v2732
        %v2734 = vpop.f32.mrb[0].mxu0
        %2735 = vmatprep.mubr.f32.mxu0 0.0
        %2736 = vmatmul.mubr.f32.gmra.mrb[0].mxu0 %v2511
        %v2737 = vpop.f32.mrb[0].mxu0
        %v2738 = vadd.f32 0.0, %v2737
        %v2739 = vpop.f32.mrb[0].mxu0
        %2740 = vdwg.mxu0
        %v2741 = vadd.f32 %v2470, %v2583
        %v2742 = vadd.f32 %v2471, %v2588
        %v2743 = vadd.f32 %v2472, %v2593
        %v2744 = vadd.f32 %v2473, %v2598
        %v2745 = vadd.f32 %v2474, %v2603
        %v2746 = vadd.f32 %v2475, %v2608
        %v2747 = vadd.f32 %v2476, %v2613
        %v2748 = vadd.f32 %v2477, %v2618
        %v2749 = vadd.f32 %v2478, %v2623
        %v2750 = vadd.f32 %v2479, %v2628
        %v2751 = vadd.f32 %v2480, %v2633
        %v2752 = vadd.f32 %v2481, %v2638
        %v2753 = vadd.f32 %v2482, %v2643
        %v2754 = vadd.f32 %v2483, %v2648
        %v2755 = vadd.f32 %v2484, %v2653
        %v2756 = vadd.f32 %v2485, %v2658
        %v2757 = vadd.f32 %v2486, %v2663
        %v2758 = vadd.f32 %v2487, %v2668
        %v2759 = vadd.f32 %v2488, %v2673
        %v2760 = vadd.f32 %v2489, %v2678
        %v2761 = vadd.f32 %v2490, %v2683
        %v2762 = vadd.f32 %v2491, %v2688
        %v2763 = vadd.f32 %v2492, %v2693
        %v2764 = vadd.f32 %v2493, %v2698
        %v2765 = vadd.f32 %v2494, %v2703
        %v2766 = vadd.f32 %v2495, %v2708
        %v2767 = vadd.f32 %v2496, %v2713
        %v2768 = vadd.f32 %v2497, %v2718
        %v2769 = vadd.f32 %v2498, %v2723
        %v2770 = vadd.f32 %v2499, %v2728
        %v2771 = vadd.f32 %v2500, %v2733
        %v2772 = vadd.f32 %v2501, %v2738
        %v2773 = vrot.slane %v294, 2
        %v2774 = vrot.slane %v295, 2
        %v2775 = vsel %vm2095, %v2773, %v2774
        %v2776 = vrot.slane %v296, 2
        %v2777 = vsel %vm2095, %v2774, %v2776
        %s2778 = scalar_lea.vmem %s238, 32
        %v2779 = vld [vmem:[%s2778] sm:$0xf]
        %v2780 = vsel %vm300, %v2775, 0
        %v2782 = vsel %vm300, %v2777, 0
        %v2785 = vsel %vm397, %v2779, 0
        %2787 = vmatprep.subr.mxu0 0.0
        %2788 = vmatpush1.msra.mxu0 %v2785
        %2789 = vmatprep.subr.mxu0 0.0
        %2790 = vmatpush1.msra.mxu0 0.0
        %2791 = vmatprep.subr.mxu0 0.0
        %2792 = vmatpush1.msra.mxu0 0.0
        %2793 = vmatprep.subr.mxu0 0.0
        %2794 = vmatpush1.msra.mxu0 0.0
        %2795 = vmatprep.subr.mxu0 0.0
        %2796 = vmatpush1.msra.mxu0 0.0
        %2797 = vmatprep.subr.mxu0 0.0
        %2798 = vmatpush1.msra.mxu0 0.0
        %2799 = vmatprep.subr.mxu0 0.0
        %2800 = vmatpush1.msra.mxu0 0.0
        %2801 = vmatprep.subr.mxu0 0.0
        %2802 = vmatpush1.msra.mxu0 0.0
        %2803 = vmatprep.subr.mxu0 0.0
        %2804 = vmatpush1.msra.mxu0 0.0
        %2805 = vmatprep.subr.mxu0 0.0
        %2806 = vmatpush1.msra.mxu0 0.0
        %2807 = vmatprep.subr.mxu0 0.0
        %2808 = vmatpush1.msra.mxu0 0.0
        %2809 = vmatprep.subr.mxu0 0.0
        %2810 = vmatpush1.msra.mxu0 0.0
        %2811 = vmatprep.subr.mxu0 0.0
        %2812 = vmatpush1.msra.mxu0 0.0
        %2813 = vmatprep.subr.mxu0 0.0
        %2814 = vmatpush1.msra.mxu0 0.0
        %2815 = vmatprep.subr.mxu0 0.0
        %2816 = vmatpush1.msra.mxu0 0.0
        %2817 = vmatprep.subr.mxu0 0.0
        %2818 = vmatpush1.msra.mxu0 0.0
        %2819 = vmatprep.subr.mxu0 0.0
        %2820 = vmatpush1.msra.mxu0 0.0
        %2821 = vmatprep.subr.mxu0 0.0
        %2822 = vmatpush1.msra.mxu0 0.0
        %2823 = vmatprep.subr.mxu0 0.0
        %2824 = vmatpush1.msra.mxu0 0.0
        %2825 = vmatprep.subr.mxu0 0.0
        %2826 = vmatpush1.msra.mxu0 0.0
        %2827 = vmatprep.subr.mxu0 0.0
        %2828 = vmatpush1.msra.mxu0 0.0
        %2829 = vmatprep.subr.mxu0 0.0
        %2830 = vmatpush1.msra.mxu0 0.0
        %2831 = vmatprep.subr.mxu0 0.0
        %2832 = vmatpush1.msra.mxu0 0.0
        %2833 = vmatprep.subr.mxu0 0.0
        %2834 = vmatpush1.msra.mxu0 0.0
        %2835 = vmatprep.subr.mxu0 0.0
        %2836 = vmatpush1.msra.mxu0 0.0
        %2837 = vmatprep.subr.mxu0 0.0
        %2838 = vmatpush1.msra.mxu0 0.0
        %2839 = vmatprep.subr.mxu0 0.0
        %2840 = vmatpush1.msra.mxu0 0.0
        %2841 = vmatprep.subr.mxu0 0.0
        %2842 = vmatpush1.msra.mxu0 0.0
        %2843 = vmatprep.subr.mxu0 0.0
        %2844 = vmatpush1.msra.mxu0 0.0
        %2845 = vmatprep.subr.mxu0 0.0
        %2846 = vmatpush1.msra.mxu0 0.0
        %2847 = vmatprep.subr.mxu0 0.0
        %2848 = vmatpush1.msra.mxu0 0.0
        %2849 = vmatprep.subr.mxu0 0.0
        %2850 = vmatpush1.msra.mxu0 0.0
        %2851 = vmatprep.mubr.f32.mxu0 0.0
        %2852 = vmatmul.mubr.f32.gmra.mrb[0].mxu0 %v2186
        %v2853 = vpop.f32.mrb[0].mxu0
        %v2854 = vadd.f32 0.0, %v2853
        %v2855 = vpop.f32.mrb[0].mxu0
        %2856 = vmatprep.mubr.f32.mxu0 0.0
        %2857 = vmatmul.mubr.f32.gmra.mrb[0].mxu0 %v2188
        %v2858 = vpop.f32.mrb[0].mxu0
        %v2859 = vadd.f32 0.0, %v2858
        %v2860 = vpop.f32.mrb[0].mxu0
        %2861 = vmatprep.mubr.f32.mxu0 0.0
        %2862 = vmatmul.mubr.f32.gmra.mrb[0].mxu0 %v2190
        %v2863 = vpop.f32.mrb[0].mxu0
        %v2864 = vadd.f32 0.0, %v2863
        %v2865 = vpop.f32.mrb[0].mxu0
        %2866 = vmatprep.mubr.f32.mxu0 0.0
        %2867 = vmatmul.mubr.f32.gmra.mrb[0].mxu0 %v2192
        %v2868 = vpop.f32.mrb[0].mxu0
        %v2869 = vadd.f32 0.0, %v2868
        %v2870 = vpop.f32.mrb[0].mxu0
        %2871 = vmatprep.mubr.f32.mxu0 0.0
        %2872 = vmatmul.mubr.f32.gmra.mrb[0].mxu0 %v2194
        %v2873 = vpop.f32.mrb[0].mxu0
        %v2874 = vadd.f32 0.0, %v2873
        %v2875 = vpop.f32.mrb[0].mxu0
        %2876 = vmatprep.mubr.f32.mxu0 0.0
        %2877 = vmatmul.mubr.f32.gmra.mrb[0].mxu0 %v2196
        %v2878 = vpop.f32.mrb[0].mxu0
        %v2879 = vadd.f32 0.0, %v2878
        %v2880 = vpop.f32.mrb[0].mxu0
        %2881 = vmatprep.mubr.f32.mxu0 0.0
        %2882 = vmatmul.mubr.f32.gmra.mrb[0].mxu0 %v2198
        %v2883 = vpop.f32.mrb[0].mxu0
        %v2884 = vadd.f32 0.0, %v2883
        %v2885 = vpop.f32.mrb[0].mxu0
        %2886 = vmatprep.mubr.f32.mxu0 0.0
        %2887 = vmatmul.mubr.f32.gmra.mrb[0].mxu0 %v2200
        %v2888 = vpop.f32.mrb[0].mxu0
        %v2889 = vadd.f32 0.0, %v2888
        %v2890 = vpop.f32.mrb[0].mxu0
        %2891 = vmatprep.mubr.f32.mxu0 0.0
        %2892 = vmatmul.mubr.f32.gmra.mrb[0].mxu0 %v2202
        %v2893 = vpop.f32.mrb[0].mxu0
        %v2894 = vadd.f32 0.0, %v2893
        %v2895 = vpop.f32.mrb[0].mxu0
        %2896 = vmatprep.mubr.f32.mxu0 0.0
        %2897 = vmatmul.mubr.f32.gmra.mrb[0].mxu0 %v2204
        %v2898 = vpop.f32.mrb[0].mxu0
        %v2899 = vadd.f32 0.0, %v2898
        %v2900 = vpop.f32.mrb[0].mxu0
        %2901 = vmatprep.mubr.f32.mxu0 0.0
        %2902 = vmatmul.mubr.f32.gmra.mrb[0].mxu0 %v2206
        %v2903 = vpop.f32.mrb[0].mxu0
        %v2904 = vadd.f32 0.0, %v2903
        %v2905 = vpop.f32.mrb[0].mxu0
        %2906 = vmatprep.mubr.f32.mxu0 0.0
        %2907 = vmatmul.mubr.f32.gmra.mrb[0].mxu0 %v2208
        %v2908 = vpop.f32.mrb[0].mxu0
        %v2909 = vadd.f32 0.0, %v2908
        %v2910 = vpop.f32.mrb[0].mxu0
        %2911 = vmatprep.mubr.f32.mxu0 0.0
        %2912 = vmatmul.mubr.f32.gmra.mrb[0].mxu0 %v2210
        %v2913 = vpop.f32.mrb[0].mxu0
        %v2914 = vadd.f32 0.0, %v2913
        %v2915 = vpop.f32.mrb[0].mxu0
        %2916 = vmatprep.mubr.f32.mxu0 0.0
        %2917 = vmatmul.mubr.f32.gmra.mrb[0].mxu0 %v2212
        %v2918 = vpop.f32.mrb[0].mxu0
        %v2919 = vadd.f32 0.0, %v2918
        %v2920 = vpop.f32.mrb[0].mxu0
        %2921 = vmatprep.mubr.f32.mxu0 0.0
        %2922 = vmatmul.mubr.f32.gmra.mrb[0].mxu0 %v2214
        %v2923 = vpop.f32.mrb[0].mxu0
        %v2924 = vadd.f32 0.0, %v2923
        %v2925 = vpop.f32.mrb[0].mxu0
        %2926 = vmatprep.mubr.f32.mxu0 0.0
        %2927 = vmatmul.mubr.f32.gmra.mrb[0].mxu0 %v2216
        %v2928 = vpop.f32.mrb[0].mxu0
        %v2929 = vadd.f32 0.0, %v2928
        %v2930 = vpop.f32.mrb[0].mxu0
        %2931 = vmatprep.mubr.f32.mxu0 0.0
        %2932 = vmatmul.mubr.f32.gmra.mrb[0].mxu0 %v2218
        %v2933 = vpop.f32.mrb[0].mxu0
        %v2934 = vadd.f32 0.0, %v2933
        %v2935 = vpop.f32.mrb[0].mxu0
        %2936 = vmatprep.mubr.f32.mxu0 0.0
        %2937 = vmatmul.mubr.f32.gmra.mrb[0].mxu0 %v2220
        %v2938 = vpop.f32.mrb[0].mxu0
        %v2939 = vadd.f32 0.0, %v2938
        %v2940 = vpop.f32.mrb[0].mxu0
        %2941 = vmatprep.mubr.f32.mxu0 0.0
        %2942 = vmatmul.mubr.f32.gmra.mrb[0].mxu0 %v2222
        %v2943 = vpop.f32.mrb[0].mxu0
        %v2944 = vadd.f32 0.0, %v2943
        %v2945 = vpop.f32.mrb[0].mxu0
        %2946 = vmatprep.mubr.f32.mxu0 0.0
        %2947 = vmatmul.mubr.f32.gmra.mrb[0].mxu0 %v2224
        %v2948 = vpop.f32.mrb[0].mxu0
        %v2949 = vadd.f32 0.0, %v2948
        %v2950 = vpop.f32.mrb[0].mxu0
        %2951 = vmatprep.mubr.f32.mxu0 0.0
        %2952 = vmatmul.mubr.f32.gmra.mrb[0].mxu0 %v2226
        %v2953 = vpop.f32.mrb[0].mxu0
        %v2954 = vadd.f32 0.0, %v2953
        %v2955 = vpop.f32.mrb[0].mxu0
        %2956 = vmatprep.mubr.f32.mxu0 0.0
        %2957 = vmatmul.mubr.f32.gmra.mrb[0].mxu0 %v2228
        %v2958 = vpop.f32.mrb[0].mxu0
        %v2959 = vadd.f32 0.0, %v2958
        %v2960 = vpop.f32.mrb[0].mxu0
        %2961 = vmatprep.mubr.f32.mxu0 0.0
        %2962 = vmatmul.mubr.f32.gmra.mrb[0].mxu0 %v2230
        %v2963 = vpop.f32.mrb[0].mxu0
        %v2964 = vadd.f32 0.0, %v2963
        %v2965 = vpop.f32.mrb[0].mxu0
        %2966 = vmatprep.mubr.f32.mxu0 0.0
        %2967 = vmatmul.mubr.f32.gmra.mrb[0].mxu0 %v2232
        %v2968 = vpop.f32.mrb[0].mxu0
        %v2969 = vadd.f32 0.0, %v2968
        %v2970 = vpop.f32.mrb[0].mxu0
        %2971 = vmatprep.mubr.f32.mxu0 0.0
        %2972 = vmatmul.mubr.f32.gmra.mrb[0].mxu0 %v2234
        %v2973 = vpop.f32.mrb[0].mxu0
        %v2974 = vadd.f32 0.0, %v2973
        %v2975 = vpop.f32.mrb[0].mxu0
        %2976 = vmatprep.mubr.f32.mxu0 0.0
        %2977 = vmatmul.mubr.f32.gmra.mrb[0].mxu0 %v2236
        %v2978 = vpop.f32.mrb[0].mxu0
        %v2979 = vadd.f32 0.0, %v2978
        %v2980 = vpop.f32.mrb[0].mxu0
        %2981 = vmatprep.mubr.f32.mxu0 0.0
        %2982 = vmatmul.mubr.f32.gmra.mrb[0].mxu0 %v2238
        %v2983 = vpop.f32.mrb[0].mxu0
        %v2984 = vadd.f32 0.0, %v2983
        %v2985 = vpop.f32.mrb[0].mxu0
        %2986 = vmatprep.mubr.f32.mxu0 0.0
        %2987 = vmatmul.mubr.f32.gmra.mrb[0].mxu0 %v2240
        %v2988 = vpop.f32.mrb[0].mxu0
        %v2989 = vadd.f32 0.0, %v2988
        %v2990 = vpop.f32.mrb[0].mxu0
        %2991 = vmatprep.mubr.f32.mxu0 0.0
        %2992 = vmatmul.mubr.f32.gmra.mrb[0].mxu0 %v2509
        %v2993 = vpop.f32.mrb[0].mxu0
        %v2994 = vadd.f32 0.0, %v2993
        %v2995 = vpop.f32.mrb[0].mxu0
        %2996 = vmatprep.mubr.f32.mxu0 0.0
        %2997 = vmatmul.mubr.f32.gmra.mrb[0].mxu0 %v2511
        %v2998 = vpop.f32.mrb[0].mxu0
        %v2999 = vadd.f32 0.0, %v2998
        %v3000 = vpop.f32.mrb[0].mxu0
        %3001 = vmatprep.mubr.f32.mxu0 0.0
        %3002 = vmatmul.mubr.f32.gmra.mrb[0].mxu0 %v2780
        %v3003 = vpop.f32.mrb[0].mxu0
        %v3004 = vadd.f32 0.0, %v3003
        %v3005 = vpop.f32.mrb[0].mxu0
        %3006 = vmatprep.mubr.f32.mxu0 0.0
        %3007 = vmatmul.mubr.f32.gmra.mrb[0].mxu0 %v2782
        %v3008 = vpop.f32.mrb[0].mxu0
        %v3009 = vadd.f32 0.0, %v3008
        %v3010 = vpop.f32.mrb[0].mxu0
        %3011 = vdwg.mxu0
        %v3012 = vadd.f32 %v2741, %v2854
        %v3013 = vadd.f32 %v2742, %v2859
        %v3014 = vadd.f32 %v2743, %v2864
        %v3015 = vadd.f32 %v2744, %v2869
        %v3016 = vadd.f32 %v2745, %v2874
        %v3017 = vadd.f32 %v2746, %v2879
        %v3018 = vadd.f32 %v2747, %v2884
        %v3019 = vadd.f32 %v2748, %v2889
        %v3020 = vadd.f32 %v2749, %v2894
        %v3021 = vadd.f32 %v2750, %v2899
        %v3022 = vadd.f32 %v2751, %v2904
        %v3023 = vadd.f32 %v2752, %v2909
        %v3024 = vadd.f32 %v2753, %v2914
        %v3025 = vadd.f32 %v2754, %v2919
        %v3026 = vadd.f32 %v2755, %v2924
        %v3027 = vadd.f32 %v2756, %v2929
        %v3028 = vadd.f32 %v2757, %v2934
        %v3029 = vadd.f32 %v2758, %v2939
        %v3030 = vadd.f32 %v2759, %v2944
        %v3031 = vadd.f32 %v2760, %v2949
        %v3032 = vadd.f32 %v2761, %v2954
        %v3033 = vadd.f32 %v2762, %v2959
        %v3034 = vadd.f32 %v2763, %v2964
        %v3035 = vadd.f32 %v2764, %v2969
        %v3036 = vadd.f32 %v2765, %v2974
        %v3037 = vadd.f32 %v2766, %v2979
        %v3038 = vadd.f32 %v2767, %v2984
        %v3039 = vadd.f32 %v2768, %v2989
        %v3040 = vadd.f32 %v2769, %v2994
        %v3041 = vadd.f32 %v2770, %v2999
        %v3042 = vadd.f32 %v2771, %v3004
        %v3043 = vadd.f32 %v2772, %v3009
        %v3044 = vld [vmem:[%s241] sm:$0x1]
        %v3046 = vlaneseq
        %v3047 = vshrl.u32 %v3046, 7
        %v3048 = vsub.s32 0, %v3047
        %v3049 = vrot.slane %v3044, %v3048
        %v3051 = vadd.f32 %v3012, %v3049
        %v3052 = vadd.f32 %v3013, %v3049
        %v3053 = vadd.f32 %v3014, %v3049
        %v3054 = vadd.f32 %v3015, %v3049
        %v3055 = vadd.f32 %v3016, %v3049
        %v3056 = vadd.f32 %v3017, %v3049
        %v3057 = vadd.f32 %v3018, %v3049
        %v3058 = vadd.f32 %v3019, %v3049
        %v3059 = vadd.f32 %v3020, %v3049
        %v3060 = vadd.f32 %v3021, %v3049
        %v3061 = vadd.f32 %v3022, %v3049
        %v3062 = vadd.f32 %v3023, %v3049
        %v3063 = vadd.f32 %v3024, %v3049
        %v3064 = vadd.f32 %v3025, %v3049
        %v3065 = vadd.f32 %v3026, %v3049
        %v3066 = vadd.f32 %v3027, %v3049
        %v3067 = vadd.f32 %v3028, %v3049
        %v3068 = vadd.f32 %v3029, %v3049
        %v3069 = vadd.f32 %v3030, %v3049
        %v3070 = vadd.f32 %v3031, %v3049
        %v3071 = vadd.f32 %v3032, %v3049
        %v3072 = vadd.f32 %v3033, %v3049
        %v3073 = vadd.f32 %v3034, %v3049
        %v3074 = vadd.f32 %v3035, %v3049
        %v3075 = vadd.f32 %v3036, %v3049
        %v3076 = vadd.f32 %v3037, %v3049
        %v3077 = vadd.f32 %v3038, %v3049
        %v3078 = vadd.f32 %v3039, %v3049
        %v3079 = vadd.f32 %v3040, %v3049
        %v3080 = vadd.f32 %v3041, %v3049
        %v3081 = vadd.f32 %v3042, %v3049
        %v3082 = vadd.f32 %v3043, %v3049
        %s3083 = sld [smem:[#allocation2]]
        %vm3084 = vcmp.gt.f32.partialorder %v3051, 0.0
        %vm3085 = vcmp.gt.f32.partialorder %v3052, 0.0
        %vm3086 = vcmp.gt.f32.partialorder %v3053, 0.0
        %vm3087 = vcmp.gt.f32.partialorder %v3054, 0.0
        %vm3088 = vcmp.gt.f32.partialorder %v3055, 0.0
        %vm3089 = vcmp.gt.f32.partialorder %v3056, 0.0
        %vm3090 = vcmp.gt.f32.partialorder %v3057, 0.0
        %vm3091 = vcmp.gt.f32.partialorder %v3058, 0.0
        %vm3092 = vcmp.gt.f32.partialorder %v3059, 0.0
        %vm3093 = vcmp.gt.f32.partialorder %v3060, 0.0
        %vm3094 = vcmp.gt.f32.partialorder %v3061, 0.0
        %vm3095 = vcmp.gt.f32.partialorder %v3062, 0.0
        %vm3096 = vcmp.gt.f32.partialorder %v3063, 0.0
        %vm3097 = vcmp.gt.f32.partialorder %v3064, 0.0
        %vm3098 = vcmp.gt.f32.partialorder %v3065, 0.0
        %vm3099 = vcmp.gt.f32.partialorder %v3066, 0.0
        %vm3100 = vcmp.gt.f32.partialorder %v3067, 0.0
        %vm3101 = vcmp.gt.f32.partialorder %v3068, 0.0
        %vm3102 = vcmp.gt.f32.partialorder %v3069, 0.0
        %vm3103 = vcmp.gt.f32.partialorder %v3070, 0.0
        %vm3104 = vcmp.gt.f32.partialorder %v3071, 0.0
        %vm3105 = vcmp.gt.f32.partialorder %v3072, 0.0
        %vm3106 = vcmp.gt.f32.partialorder %v3073, 0.0
        %vm3107 = vcmp.gt.f32.partialorder %v3074, 0.0
        %vm3108 = vcmp.gt.f32.partialorder %v3075, 0.0
        %vm3109 = vcmp.gt.f32.partialorder %v3076, 0.0
        %vm3110 = vcmp.gt.f32.partialorder %v3077, 0.0
        %vm3111 = vcmp.gt.f32.partialorder %v3078, 0.0
        %vm3112 = vcmp.gt.f32.partialorder %v3079, 0.0
        %vm3113 = vcmp.gt.f32.partialorder %v3080, 0.0
        %vm3114 = vcmp.gt.f32.partialorder %v3081, 0.0
        %vm3115 = vcmp.gt.f32.partialorder %v3082, 0.0
        %v3116 = vstv %s3083
        %v3117 = vmul.f32 %v3116, %v3051
        %v3118 = vmul.f32 %v3116, %v3052
        %v3119 = vmul.f32 %v3116, %v3053
        %v3120 = vmul.f32 %v3116, %v3054
        %v3121 = vmul.f32 %v3116, %v3055
        %v3122 = vmul.f32 %v3116, %v3056
        %v3123 = vmul.f32 %v3116, %v3057
        %v3124 = vmul.f32 %v3116, %v3058
        %v3125 = vmul.f32 %v3116, %v3059
        %v3126 = vmul.f32 %v3116, %v3060
        %v3127 = vmul.f32 %v3116, %v3061
        %v3128 = vmul.f32 %v3116, %v3062
        %v3129 = vmul.f32 %v3116, %v3063
        %v3130 = vmul.f32 %v3116, %v3064
        %v3131 = vmul.f32 %v3116, %v3065
        %v3132 = vmul.f32 %v3116, %v3066
        %v3133 = vmul.f32 %v3116, %v3067
        %v3134 = vmul.f32 %v3116, %v3068
        %v3135 = vmul.f32 %v3116, %v3069
        %v3136 = vmul.f32 %v3116, %v3070
        %v3137 = vmul.f32 %v3116, %v3071
        %v3138 = vmul.f32 %v3116, %v3072
        %v3139 = vmul.f32 %v3116, %v3073
        %v3140 = vmul.f32 %v3116, %v3074
        %v3141 = vmul.f32 %v3116, %v3075
        %v3142 = vmul.f32 %v3116, %v3076
        %v3143 = vmul.f32 %v3116, %v3077
        %v3144 = vmul.f32 %v3116, %v3078
        %v3145 = vmul.f32 %v3116, %v3079
        %v3146 = vmul.f32 %v3116, %v3080
        %v3147 = vmul.f32 %v3116, %v3081
        %v3148 = vmul.f32 %v3116, %v3082
        %v3149 = vsel %vm3084, %v3051, %v3117
        %v3150 = vsel %vm3085, %v3052, %v3118
        %v3151 = vsel %vm3086, %v3053, %v3119
        %v3152 = vsel %vm3087, %v3054, %v3120
        %v3153 = vsel %vm3088, %v3055, %v3121
        %v3154 = vsel %vm3089, %v3056, %v3122
        %v3155 = vsel %vm3090, %v3057, %v3123
        %v3156 = vsel %vm3091, %v3058, %v3124
        %v3157 = vsel %vm3092, %v3059, %v3125
        %v3158 = vsel %vm3093, %v3060, %v3126
        %v3159 = vsel %vm3094, %v3061, %v3127
        %v3160 = vsel %vm3095, %v3062, %v3128
        %v3161 = vsel %vm3096, %v3063, %v3129
        %v3162 = vsel %vm3097, %v3064, %v3130
        %v3163 = vsel %vm3098, %v3065, %v3131
        %v3164 = vsel %vm3099, %v3066, %v3132
        %v3165 = vsel %vm3100, %v3067, %v3133
        %v3166 = vsel %vm3101, %v3068, %v3134
        %v3167 = vsel %vm3102, %v3069, %v3135
        %v3168 = vsel %vm3103, %v3070, %v3136
        %v3169 = vsel %vm3104, %v3071, %v3137
        %v3170 = vsel %vm3105, %v3072, %v3138
        %v3171 = vsel %vm3106, %v3073, %v3139
        %v3172 = vsel %vm3107, %v3074, %v3140
        %v3173 = vsel %vm3108, %v3075, %v3141
        %v3174 = vsel %vm3109, %v3076, %v3142
        %v3175 = vsel %vm3110, %v3077, %v3143
        %v3176 = vsel %vm3111, %v3078, %v3144
        %v3177 = vsel %vm3112, %v3079, %v3145
        %v3178 = vsel %vm3113, %v3080, %v3146
        %v3179 = vsel %vm3114, %v3081, %v3147
        %v3180 = vsel %vm3115, %v3082, %v3148
        %3181 = vxpose.xlu0.b32.start [1/16] %v3149, 128
        %3182 = vxpose.xlu0.b32.cont [2/16] %v3150, 128
        %3183 = vxpose.xlu0.b32.cont [3/16] %v3151, 128
        %3184 = vxpose.xlu0.b32.cont [4/16] %v3152, 128
        %3185 = vxpose.xlu0.b32.cont [5/16] %v3153, 128
        %3186 = vxpose.xlu0.b32.cont [6/16] %v3154, 128
        %3187 = vxpose.xlu0.b32.cont [7/16] %v3155, 128
        %3188 = vxpose.xlu0.b32.cont [8/16] %v3156, 128
        %3189 = vxpose.xlu0.b32.cont [9/16] %v3157, 128
        %3190 = vxpose.xlu0.b32.cont [10/16] %v3158, 128
        %3191 = vxpose.xlu0.b32.cont [11/16] %v3159, 128
        %3192 = vxpose.xlu0.b32.cont [12/16] %v3160, 128
        %3193 = vxpose.xlu0.b32.cont [13/16] %v3161, 128
        %3194 = vxpose.xlu0.b32.cont [14/16] %v3162, 128
        %3195 = vxpose.xlu0.b32.cont [15/16] %v3163, 128
        %3196 = vxpose.xlu0.b32.end [16/16] %v3164, 128
        %v3197 = vpop.trf.xlu0
        %v3198 = vpop.trf.xlu0
        %v3199 = vpop.trf.xlu0
        %v3200 = vpop.trf.xlu0
        %v3201 = vpop.trf.xlu0
        %v3202 = vpop.trf.xlu0
        %v3203 = vpop.trf.xlu0
        %v3204 = vpop.trf.xlu0
        %v3205 = vpop.trf.xlu0
        %v3206 = vpop.trf.xlu0
        %v3207 = vpop.trf.xlu0
        %v3208 = vpop.trf.xlu0
        %v3209 = vpop.trf.xlu0
        %v3210 = vpop.trf.xlu0
        %v3211 = vpop.trf.xlu0
        %v3212 = vpop.trf.xlu0
        %3213 = vxpose.xlu0.b32.start [1/16] %v3165, 128
        %3214 = vxpose.xlu0.b32.cont [2/16] %v3166, 128
        %3215 = vxpose.xlu0.b32.cont [3/16] %v3167, 128
        %3216 = vxpose.xlu0.b32.cont [4/16] %v3168, 128
        %3217 = vxpose.xlu0.b32.cont [5/16] %v3169, 128
        %3218 = vxpose.xlu0.b32.cont [6/16] %v3170, 128
        %3219 = vxpose.xlu0.b32.cont [7/16] %v3171, 128
        %3220 = vxpose.xlu0.b32.cont [8/16] %v3172, 128
        %3221 = vxpose.xlu0.b32.cont [9/16] %v3173, 128
        %3222 = vxpose.xlu0.b32.cont [10/16] %v3174, 128
        %3223 = vxpose.xlu0.b32.cont [11/16] %v3175, 128
        %3224 = vxpose.xlu0.b32.cont [12/16] %v3176, 128
        %3225 = vxpose.xlu0.b32.cont [13/16] %v3177, 128
        %3226 = vxpose.xlu0.b32.cont [14/16] %v3178, 128
        %3227 = vxpose.xlu0.b32.cont [15/16] %v3179, 128
        %3228 = vxpose.xlu0.b32.end [16/16] %v3180, 128
        %v3229 = vpop.trf.xlu0
        %v3230 = vpop.trf.xlu0
        %v3231 = vpop.trf.xlu0
        %v3232 = vpop.trf.xlu0
        %v3233 = vpop.trf.xlu0
        %v3234 = vpop.trf.xlu0
        %v3235 = vpop.trf.xlu0
        %v3236 = vpop.trf.xlu0
        %v3237 = vpop.trf.xlu0
        %v3238 = vpop.trf.xlu0
        %v3239 = vpop.trf.xlu0
        %v3240 = vpop.trf.xlu0
        %v3241 = vpop.trf.xlu0
        %v3242 = vpop.trf.xlu0
        %v3243 = vpop.trf.xlu0
        %v3244 = vpop.trf.xlu0
        %3245 = vst [vmem:[%s229] sm:$0xff] %v3197
        %3246 = vst [vmem:[%s229 + $0x8] sm:$0xff] %v3229
        %3247 = vst [vmem:[%s229 + $0x10] sm:$0xff] %v3198
        %3248 = vst [vmem:[%s229 + $0x18] sm:$0xff] %v3230
        %s3249 = sand.u32 %s140, 1
        %s3250 = scalar_lea.sflag [#allocation4], %s3249
        %s3251 = sand.u32 %s140, 1
        %s3252 = smul.addr %s3251, 32
        %s3253 = scalar_lea.vmem [#allocation3], %s3252
        // Predicated region
        $region37: #{tpu_custom_call.1} parent=35 // pred_check
          %p3254 = pneg %p150
        $region38: #{tpu_custom_call.1} parent=35 // pred_check_branch
          %3256 = sbr.rel (%p3254) target = $region40
        $region39: #{tpu_custom_call.1} parent=35 // pred_region
          %s3257 = smul.u32 2, %s24
          %s3259 = ssub.s32 512, 512
          %3260 = vsyncadd %s3250, %s3259
          %s3261 = smul.addr %s3257, 2
          %s3262 = smul.addr %s23, 4
          %s3263 = sadd.s32 %s3261, %s3262
          %s3264 = smul.addr %s3263, 128
          %s3265 = scalar_lea.hbm %s4, %s3264
          %s3266 = sshll.u32 %s3253, 4
          %s3267 = int_to_ptr.vmem [resolvable:$true] %s3266
          %3272 = dma.vmem_to_hbm [thread:$0]  %s3267, 512, %s3265, %s3250, 256, 256, 16
        $region40: #{tpu_custom_call.1} parent=35 // pred_fallthru
          _
      $region36: #{tpu_custom_call.1} parent=5 // pred_fallthru
        _
      %p3273 = scmp.le.s32.totalorder 2, %s14
      // Predicated region
      $region41: #{tpu_custom_call.1} parent=5 // pred_check
        %p3274 = pneg %p3273
      $region42: #{tpu_custom_call.1} parent=5 // pred_check_branch
        %3276 = sbr.rel (%p3274) target = $region44
      $region43: #{tpu_custom_call.1} parent=5 // pred_region
        %s3277 = ssub.s32 %s14, 2
        // Predicated region
        $region45: #{tpu_custom_call.1} parent=43 // pred_check
          %p3278 = pneg %p156
        $region46: #{tpu_custom_call.1} parent=43 // pred_check_branch
          %3280 = sbr.rel (%p3278) target = $region48
        $region47: #{tpu_custom_call.1} parent=43 // pred_region
          %s3281 = sand.u32 %s141, 1
          %s3282 = scalar_lea.sflag [#allocation4], %s3281
          %s3283 = sand.u32 %s141, 1
          %s3284 = smul.addr %s3283, 32
          %s3285 = scalar_lea.vmem [#allocation3], %s3284
          %3286 = dma.done %s3282, 512
        $region48: #{tpu_custom_call.1} parent=43 // pred_fallthru
          _
      $region44: #{tpu_custom_call.1} parent=5 // pred_fallthru
        _
    $region6: #{tpu_custom_call.1} parent=1 // loop_footer
      %s18 = sadd.s32 1, %s14
    $region7: #{tpu_custom_call.1} parent=1 // loop_footer_branch
      %13 = sbr.rel target = $region3
    $region8: #{tpu_custom_call.1} parent=1 // loop_exit
      _
    %3287 = vsyncpa [#allocation4], 1
    %s3288 = scalar_lea.sflag [#allocation4], 1
    %3289 = vsyncpa %s3288, 1

</llo_original>
